<compile_context>
chip_gen: v6e
topology: v6e:2x2x1
jax: 0.10.0
libtpu: 0.0.40
codegen_flags: <defaults>
</compile_context>

<pallas_src>
import functools

import jax
import jax.numpy as jnp
from jax.experimental import pallas as pl
from jax.experimental.pallas import tpu as pltpu

CONFIG = dict(
    grid_size=8, time_lags=8,
    nb_rot_kernels=2, nb_rotations=4,
    rot_kernel_size=(2, 2, 2), conv_kernel_size=(2, 2, 2),
    nb_conv_units=[16],
    nb_spatial_units=[6, 4], nb_temporal_units=[5, 3],
    hidden_size=16,
    leaky_negative_slope=0.2, dropout=0.0,
    decoder_init_grid_size=4, nb_decoder_units=[8, 4],
    decoder_kernel_sizes=[2], decoder_strides=[2],
    beta=1.0, regularization=None,
)


# ----------------------------- fused Pallas kernel -----------------------------

def _shift_down(n, dtype):
    """(n,n) matrix S with S @ Y == Y shifted down one row (row 0 becomes zero) == causal time pad."""
    r = jax.lax.broadcasted_iota(jnp.int32, (n, n), 0)
    c = jax.lax.broadcasted_iota(jnp.int32, (n, n), 1)
    return (c + 1 == r).astype(dtype)


def _vae_kernel(x_ref, eps_ref,
                m0_ref, b0_ref, m1_ref, b1_ref, ds_ref, bd_ref,
                phw_ref, pt_ref,
                ws0_ref, bs0_ref, wt0_ref, bt0_ref,
                ws1_ref, bs1_ref, wt1_ref, bt1_ref,
                w12a_ref, w12b_ref, b12_ref,
                wdl_ref, bdl_ref, mdec_ref,
                z_ref, mu_ref, lv_ref, xr_ref,
                *, alpha, hidden):
    f32 = jnp.float32

    def mm(a, b):
        return jax.lax.dot_general(a, b, (((1,), (0,)), ((), ())),
                                   preferred_element_type=f32)

    def lrelu(v):
        return jnp.where(v > 0, v, alpha * v)

    x_in = x_ref[0]                                        # (T0, Cin*H0*W0)

    # ---- level 0: rotational Conv3d (causal in t, chomped in h/w) + LeakyReLU ----
    t0 = x_in.shape[0]
    out0 = mm(x_in, m0_ref[1]) + mm(_shift_down(t0, f32), mm(x_in, m0_ref[0]))
    out0 = lrelu(out0 + b0_ref[...])                       # (T0, C0*H0*W0)

    # ---- level 0: spatial FC -> permute -> temporal FC (leaky_relu2 fused, dropout=identity) ----
    a0 = mm(out0, ws0_ref[...]) + bs0_ref[...]             # (T0, C0*S0)
    f0 = lrelu(mm(wt0_ref[...], a0) + bt0_ref[...])        # (U0, C0*S0)

    # ---- AdaptiveAvgPool3d (exact 2x in t, h, w) as two small matmuls (lane-dense) ----
    x_pool = mm(pt_ref[...], mm(out0, phw_ref[...]))       # (T1, C0*H1*W1)

    # ---- level 1: Conv3d (chomped) + 1x1x1 downsample residual + LeakyReLU ----
    t1 = x_pool.shape[0]
    conv1 = mm(x_pool, m1_ref[1]) + mm(_shift_down(t1, f32), mm(x_pool, m1_ref[0]))
    conv1 = conv1 + b1_ref[...]
    res1 = mm(x_pool, ds_ref[...]) + bd_ref[...]
    act1 = lrelu(conv1 + res1)                             # (T1, C1*H1*W1)

    # ---- level 1: spatial FC -> temporal FC ----
    a1 = mm(act1, ws1_ref[...]) + bs1_ref[...]             # (T1, C1*S1)
    f1 = lrelu(mm(wt1_ref[...], a1) + bt1_ref[...])        # (U1, C1*S1)

    # ---- fc1 & fc2 fused into one (.., 2*hidden) contraction over the concatenated features ----
    ml = b12_ref[...]                                      # (1, 2*hidden)
    for u in range(f0.shape[0]):
        ml = ml + mm(f0[u:u + 1, :], w12a_ref[u])
    for u in range(f1.shape[0]):
        ml = ml + mm(f1[u:u + 1, :], w12b_ref[u])
    mu = ml[:, :hidden]
    logvar = ml[:, hidden:]

    # ---- reparametrize ----
    z = mu + jnp.exp(0.5 * logvar) * eps_ref[0]

    # ---- decoder: Linear -> view -> ConvTranspose2d (stride==kernel, as dense matmul) -> LeakyReLU ----
    h = mm(z, wdl_ref[...]) + bdl_ref[...]                 # (1, C0d*g0*g0)
    xr = lrelu(mm(h, mdec_ref[...]))                       # (1, Cd*gout*gout)

    z_ref[0] = z
    mu_ref[0] = mu
    lv_ref[0] = logvar
    xr_ref[0] = xr


# ----------------------------- weight preprocessing (plain JAX, tiny) -----------------------------

def _build_rot_weight(v, nb_rotations):
    """RotConv3d augmented weight: einsum('jkn,inlmo->ijklmo', R, v).flatten(end_dim=1)."""
    thetas = jnp.deg2rad(jnp.arange(0, 360, 360 / nb_rotations))
    c, s = jnp.cos(thetas), jnp.sin(thetas)
    rot = jnp.stack([jnp.stack([c, -s], -1), jnp.stack([s, c], -1)], -2)   # (R, 2, 2)
    w_aug = jnp.einsum('jkn,inlmo->ijklmo', rot, v)
    return w_aug.reshape(-1, *v.shape[1:])                                 # (Cout*R, Cin, kt, kh, kw)


def _conv_matrices(w, H, W):
    """Conv3d(padding=k-1)+Chomp(k-1) spatial part as dense matmuls, one per time tap.

    w: (Cout, Cin, 2, 2, 2) torch layout (kernel 2x2x2 only).
    Returns M (2, Cin*H*W, Cout*H*W); output[t] = sum_dt input_row[t + dt - 1] @ M[dt].
    """
    cout, cin, kt, kh, kw = w.shape
    assert (kt, kh, kw) == (2, 2, 2), "fused kernel is specialised to 2x2x2 conv kernels"
    eh = jnp.stack([jnp.eye(H, k=1 - d, dtype=jnp.float32) for d in range(kh)])   # eh[dh, hin, hout]
    ew = jnp.stack([jnp.eye(W, k=1 - d, dtype=jnp.float32) for d in range(kw)])
    mats = []
    for dt in range(kt):
        r = jnp.einsum('dap,ebq,ocde->cabopq', eh, ew, w[:, :, dt, :, :])
        mats.append(r.reshape(cin * H * W, cout * H * W))
    return jnp.stack(mats)


def _deconv_matrix(wt, g_in, stride):
    """ConvTranspose2d (bias=False) as a dense matmul. wt: torch layout (Cin, Cout, k, k)."""
    cin, cout, kh, kw = wt.shape
    g_out = (g_in - 1) * stride + kh
    ho = jnp.arange(g_out)
    hi = jnp.arange(g_in)
    e = jnp.stack([(ho[None, :] == stride * hi[:, None] + i).astype(jnp.float32)
                   for i in range(kh)])                                     # (k, g_in, g_out)
    m = jnp.einsum('ihp,jwq,coij->chwopq', e, e, wt)
    return m.reshape(cin * g_in * g_in, cout * g_out * g_out)


def _prepare_operands(params, cfg):
    """Fold convs / pooling / downsample / FC weights into lane-dense 2-D matmul operands."""
    G, T, H = cfg['grid_size'], cfg['time_lags'], cfg['hidden_size']
    C0 = cfg['nb_rotations'] * cfg['nb_rot_kernels']
    assert len(cfg['nb_conv_units']) == 1 and G % 2 == 0 and T % 2 == 0
    C1 = cfg['nb_conv_units'][0]
    S0, S1 = cfg['nb_spatial_units']
    U0, U1 = cfg['nb_temporal_units']
    G1 = G // 2
    eye = lambda n: jnp.eye(n, dtype=jnp.float32)

    # level-0 rotational conv
    w_rot = _build_rot_weight(params['rot_v'], cfg['nb_rotations'])
    m0 = _conv_matrices(w_rot, G, G)
    b0 = jnp.repeat(params['rot_b'], G * G)[None, :]

    # level-1 conv + 1x1x1 downsample
    m1 = _conv_matrices(params['conv_w'][0], G1, G1)
    b1 = jnp.repeat(params['conv_b'][0], G1 * G1)[None, :]
    if params['down_w'][0] is None:
        ds = eye(C0 * G1 * G1)
        bd = jnp.zeros((1, C0 * G1 * G1), jnp.float32)
    else:
        ds = jnp.kron(params['down_w'][0].T, eye(G1 * G1))
        bd = jnp.repeat(params['down_b'][0], G1 * G1)[None, :]

    # exact 2x adaptive average pooling as matmuls
    ph = jnp.kron(eye(G1), jnp.ones((2, 1), jnp.float32))
    p_hw = 0.25 * jnp.kron(ph, ph)
    phw = jnp.kron(eye(C0), p_hw)
    pt = 0.5 * jnp.kron(eye(T // 2), jnp.ones((1, 2), jnp.float32))

    # spatio-temporal FCs (block-diagonal over channels)
    ws0 = jnp.kron(eye(C0), params['spatial_w'][0].T)
    bs0 = jnp.tile(params['spatial_b'][0], C0)[None, :]
    wt0 = params['temporal_w'][0]
    bt0 = jnp.broadcast_to(params['temporal_b'][0][:, None], (U0, C0 * S0))

    ws1 = jnp.kron(eye(C1), params['spatial_w'][1].T)
    bs1 = jnp.tile(params['spatial_b'][1], C1)[None, :]
    wt1 = params['temporal_w'][1]
    bt1 = jnp.broadcast_to(params['temporal_b'][1][:, None], (U1, C1 * S1))

    # fused fc1/fc2, rearranged to match the (u, c*S+s) feature layout produced in-kernel
    wcat = jnp.concatenate([params['fc1_w'], params['fc2_w']], axis=0)       # (2H, feat)
    n0 = C0 * S0 * U0
    w12a = jnp.transpose(wcat[:, :n0].reshape(2 * H, C0 * S0, U0), (2, 1, 0))
    w12b = jnp.transpose(wcat[:, n0:].reshape(2 * H, C1 * S1, U1), (2, 1, 0))
    b12 = jnp.concatenate([params['fc1_b'], params['fc2_b']])[None, :]

    # decoder
    wdl = params['dec_lin_w'].T
    bdl = params['dec_lin_b'][None, :]
    mdec = _deconv_matrix(params['dec_w'][0], cfg['decoder_init_grid_size'],
                          cfg['decoder_strides'][0])

    return [m0, b0, m1, b1, ds, bd, phw, pt, ws0, bs0, wt0, bt0,
            ws1, bs1, wt1, bt1, w12a, w12b, b12, wdl, bdl, mdec]


# ----------------------------- parameters (torch layouts, deterministic init) -----------------------------

def init_params(key):
    cfg = CONFIG
    C0 = cfg['nb_rotations'] * cfg['nb_rot_kernels']
    nb_c = [C0] + list(cfg['nb_conv_units'])
    G, T, H = cfg['grid_size'], cfg['time_lags'], cfg['hidden_size']
    keys = iter(jax.random.split(key, 64))

    def nrm(shape, scale=0.05):
        return scale * jax.random.normal(next(keys), shape, dtype=jnp.float32)

    p = {}
    kt, kh, kw = cfg['rot_kernel_size']
    p['rot_v'] = nrm((cfg['nb_rot_kernels'], 2, kt, kh, kw))   # weight_norm at init == raw weight
    p['rot_b'] = nrm((C0,))

    sp_in = [G * G] + [(G // 2 ** i) ** 2 for i in range(1, len(nb_c))]
    tp_in = [T] + [T // 2 ** i for i in range(1, len(nb_c))]
    p['spatial_w'] = [nrm((cfg['nb_spatial_units'][i], sp_in[i])) for i in range(len(nb_c))]
    p['spatial_b'] = [nrm((cfg['nb_spatial_units'][i],)) for i in range(len(nb_c))]
    p['temporal_w'] = [nrm((cfg['nb_temporal_units'][i], tp_in[i])) for i in range(len(nb_c))]
    p['temporal_b'] = [nrm((cfg['nb_temporal_units'][i],)) for i in range(len(nb_c))]

    ckt, ckh, ckw = cfg['conv_kernel_size']
    p['conv_w'], p['conv_b'], p['down_w'], p['down_b'] = [], [], [], []
    for i in range(1, len(nb_c)):
        cin, cout = nb_c[i - 1], nb_c[i]
        p['conv_w'].append(nrm((cout, cin, ckt, ckh, ckw)))
        p['conv_b'].append(nrm((cout,)))
        p['down_w'].append(nrm((cout, cin)) if cin != cout else None)
        p['down_b'].append(nrm((cout,)) if cin != cout else None)

    feat = sum(a * b * c for a, b, c in
               zip(nb_c, cfg['nb_spatial_units'], cfg['nb_temporal_units']))
    p['fc1_w'], p['fc1_b'] = nrm((H, feat)), nrm((H,))
    p['fc2_w'], p['fc2_b'] = nrm((H, feat)), nrm((H,))

    # TODO(synk): reference ConvDecoder.linear expects 2*hidden_size inputs but the module's forward
    # feeds z of size hidden_size (would raise in PyTorch); we use hidden_size inputs here.
    g0, d0 = cfg['decoder_init_grid_size'], cfg['nb_decoder_units'][0]
    p['dec_lin_w'], p['dec_lin_b'] = nrm((d0 * g0 * g0, H)), nrm((d0 * g0 * g0,))
    p['dec_w'] = [nrm((cfg['nb_decoder_units'][j - 1], cfg['nb_decoder_units'][j],
                       cfg['decoder_kernel_sizes'][j - 1], cfg['decoder_kernel_sizes'][j - 1]))
                  for j in range(1, len(cfg['nb_decoder_units']))]
    return p


# ----------------------------- forward -----------------------------

def _const_index_map(ndim):
    zeros = (0,) * ndim
    return lambda i: zeros


def predictive_vae_forward(params, x, eps):
    cfg = CONFIG
    N = x.shape[0]
    G, T, H = cfg['grid_size'], cfg['time_lags'], cfg['hidden_size']
    g0 = cfg['decoder_init_grid_size']
    k_dec, s_dec = cfg['decoder_kernel_sizes'][0], cfg['decoder_strides'][0]
    g_out = (g0 - 1) * s_dec + k_dec
    rec_dim = cfg['nb_decoder_units'][-1] * g_out * g_out

    # weight preprocessing: tiny, pure-XLA; in a training/serving loop it can be hoisted & cached.
    ops = _prepare_operands(params, cfg)

    # per-sample encoder input laid out (T, Cin*H*W), channel-major columns (lane dense).
    x_arr = jnp.transpose(x, (0, 4, 1, 2, 3)).reshape(N, T, 2 * G * G).astype(jnp.float32)
    eps_arr = eps.reshape(N, 1, H).astype(jnp.float32)

    batch3 = lambda i: (i, 0, 0)
    in_specs = ([pl.BlockSpec((1, T, 2 * G * G), batch3),
                 pl.BlockSpec((1, 1, H), batch3)]
                + [pl.BlockSpec(a.shape, _const_index_map(a.ndim)) for a in ops])
    out_shape = (jax.ShapeDtypeStruct((N, 1, H), jnp.float32),
                 jax.ShapeDtypeStruct((N, 1, H), jnp.float32),
                 jax.ShapeDtypeStruct((N, 1, H), jnp.float32),
                 jax.ShapeDtypeStruct((N, 1, rec_dim), jnp.float32))
    out_specs = [pl.BlockSpec((1, 1, H), batch3),
                 pl.BlockSpec((1, 1, H), batch3),
                 pl.BlockSpec((1, 1, H), batch3),
                 pl.BlockSpec((1, 1, rec_dim), batch3)]

    kernel = functools.partial(_vae_kernel,
                               alpha=cfg['leaky_negative_slope'], hidden=H)

    z, mu, logvar, xr = pl.pallas_call(
        kernel,
        out_shape=out_shape,
        grid_spec=pltpu.PrefetchScalarGridSpec(
            num_scalar_prefetch=0, grid=(N,),
            in_specs=in_specs, out_specs=out_specs),
        compiler_params=pltpu.CompilerParams(
            dimension_semantics=("parallel",)),   # shard samples across TCs on v7x
    )(x_arr, eps_arr, *ops)

    return (z.reshape(N, H), mu.reshape(N, H), logvar.reshape(N, H),
            xr.reshape(N, rec_dim))


# ----------------------------- main -----------------------------

if __name__ == "__main__":
    key = jax.random.PRNGKey(0)
    k_x, k_eps, k_p = jax.random.split(key, 3)
    cfg = CONFIG
    N = 2
    x = jax.random.normal(
        k_x, (N, 2, cfg['grid_size'], cfg['grid_size'], cfg['time_lags']), jnp.float32)
    eps = jax.random.normal(k_eps, (N, cfg['hidden_size']), jnp.float32)
    params = init_params(k_p)

    fwd = jax.jit(predictive_vae_forward)
    z, mu, logvar, x_recon = fwd(params, x, eps)
    jax.block_until_ready((z, mu, logvar, x_recon))

    g_out = (cfg['decoder_init_grid_size'] - 1) * cfg['decoder_strides'][0] + cfg['decoder_kernel_sizes'][0]
    rec_dim = cfg['nb_decoder_units'][-1] * g_out * g_out
    assert z.shape == (N, cfg['hidden_size'])
    assert mu.shape == (N, cfg['hidden_size'])
    assert logvar.shape == (N, cfg['hidden_size'])
    assert x_recon.shape == (N, rec_dim)
    assert all(bool(jnp.isfinite(a).all()) for a in (z, mu, logvar, x_recon))
    print("KERNEL_OK")
</pallas_src>

<mosaic_0001>
module attributes {stable_mosaic.version = 11 : i64} {
  func.func @_vae_kernel(%arg0: i32, %arg1: memref<1x8x128xf32, #tpu.memory_space<vmem>>, %arg2: memref<1x1x16xf32, #tpu.memory_space<vmem>>, %arg3: memref<2x128x512xf32, #tpu.memory_space<vmem>>, %arg4: memref<1x512xf32, #tpu.memory_space<vmem>>, %arg5: memref<2x128x256xf32, #tpu.memory_space<vmem>>, %arg6: memref<1x256xf32, #tpu.memory_space<vmem>>, %arg7: memref<128x256xf32, #tpu.memory_space<vmem>>, %arg8: memref<1x256xf32, #tpu.memory_space<vmem>>, %arg9: memref<512x128xf32, #tpu.memory_space<vmem>>, %arg10: memref<4x8xf32, #tpu.memory_space<vmem>>, %arg11: memref<512x48xf32, #tpu.memory_space<vmem>>, %arg12: memref<1x48xf32, #tpu.memory_space<vmem>>, %arg13: memref<5x8xf32, #tpu.memory_space<vmem>>, %arg14: memref<5x48xf32, #tpu.memory_space<vmem>>, %arg15: memref<256x64xf32, #tpu.memory_space<vmem>>, %arg16: memref<1x64xf32, #tpu.memory_space<vmem>>, %arg17: memref<3x4xf32, #tpu.memory_space<vmem>>, %arg18: memref<3x64xf32, #tpu.memory_space<vmem>>, %arg19: memref<5x48x32xf32, #tpu.memory_space<vmem>>, %arg20: memref<3x64x32xf32, #tpu.memory_space<vmem>>, %arg21: memref<1x32xf32, #tpu.memory_space<vmem>>, %arg22: memref<16x128xf32, #tpu.memory_space<vmem>>, %arg23: memref<1x128xf32, #tpu.memory_space<vmem>>, %arg24: memref<128x256xf32, #tpu.memory_space<vmem>>, %arg25: memref<1x1x16xf32, #tpu.memory_space<vmem>>, %arg26: memref<1x1x16xf32, #tpu.memory_space<vmem>>, %arg27: memref<1x1x16xf32, #tpu.memory_space<vmem>>, %arg28: memref<1x1x256xf32, #tpu.memory_space<vmem>>) attributes {dimension_semantics = [#tpu.dimension_semantics<parallel>], iteration_bounds = array<i64: 2>, scalar_prefetch = 0 : i64, scratch_operands = 0 : i64, tpu.core_type = #tpu.core_type<tc>, window_params = [{transform_indices = @transform_0, window_bounds = array<i64: 1, 8, 128>}, {transform_indices = @transform_1, window_bounds = array<i64: 1, 1, 16>}, {pipeline_mode = #tpu.pipeline_mode<synchronous>, transform_indices = @transform_2, window_bounds = array<i64: 2, 128, 512>}, {pipeline_mode = #tpu.pipeline_mode<synchronous>, transform_indices = @transform_3, window_bounds = array<i64: 1, 512>}, {pipeline_mode = #tpu.pipeline_mode<synchronous>, transform_indices = @transform_4, window_bounds = array<i64: 2, 128, 256>}, {pipeline_mode = #tpu.pipeline_mode<synchronous>, transform_indices = @transform_5, window_bounds = array<i64: 1, 256>}, {pipeline_mode = #tpu.pipeline_mode<synchronous>, transform_indices = @transform_6, window_bounds = array<i64: 128, 256>}, {pipeline_mode = #tpu.pipeline_mode<synchronous>, transform_indices = @transform_7, window_bounds = array<i64: 1, 256>}, {pipeline_mode = #tpu.pipeline_mode<synchronous>, transform_indices = @transform_8, window_bounds = array<i64: 512, 128>}, {pipeline_mode = #tpu.pipeline_mode<synchronous>, transform_indices = @transform_9, window_bounds = array<i64: 4, 8>}, {pipeline_mode = #tpu.pipeline_mode<synchronous>, transform_indices = @transform_10, window_bounds = array<i64: 512, 48>}, {pipeline_mode = #tpu.pipeline_mode<synchronous>, transform_indices = @transform_11, window_bounds = array<i64: 1, 48>}, {pipeline_mode = #tpu.pipeline_mode<synchronous>, transform_indices = @transform_12, window_bounds = array<i64: 5, 8>}, {pipeline_mode = #tpu.pipeline_mode<synchronous>, transform_indices = @transform_13, window_bounds = array<i64: 5, 48>}, {pipeline_mode = #tpu.pipeline_mode<synchronous>, transform_indices = @transform_14, window_bounds = array<i64: 256, 64>}, {pipeline_mode = #tpu.pipeline_mode<synchronous>, transform_indices = @transform_15, window_bounds = array<i64: 1, 64>}, {pipeline_mode = #tpu.pipeline_mode<synchronous>, transform_indices = @transform_16, window_bounds = array<i64: 3, 4>}, {pipeline_mode = #tpu.pipeline_mode<synchronous>, transform_indices = @transform_17, window_bounds = array<i64: 3, 64>}, {pipeline_mode = #tpu.pipeline_mode<synchronous>, transform_indices = @transform_18, window_bounds = array<i64: 5, 48, 32>}, {pipeline_mode = #tpu.pipeline_mode<synchronous>, transform_indices = @transform_19, window_bounds = array<i64: 3, 64, 32>}, {pipeline_mode = #tpu.pipeline_mode<synchronous>, transform_indices = @transform_20, window_bounds = array<i64: 1, 32>}, {pipeline_mode = #tpu.pipeline_mode<synchronous>, transform_indices = @transform_21, window_bounds = array<i64: 16, 128>}, {pipeline_mode = #tpu.pipeline_mode<synchronous>, transform_indices = @transform_22, window_bounds = array<i64: 1, 128>}, {pipeline_mode = #tpu.pipeline_mode<synchronous>, transform_indices = @transform_23, window_bounds = array<i64: 128, 256>}, {transform_indices = @transform_24, window_bounds = array<i64: 1, 1, 16>}, {transform_indices = @transform_25, window_bounds = array<i64: 1, 1, 16>}, {transform_indices = @transform_26, window_bounds = array<i64: 1, 1, 16>}, {transform_indices = @transform_27, window_bounds = array<i64: 1, 1, 256>}]} {
    %c0 = arith.constant 0 : index
    %c0_0 = arith.constant 0 : index
    %c0_1 = arith.constant 0 : index
    %0 = vector.load %arg1[%c0, %c0_0, %c0_1] : memref<1x8x128xf32, #tpu.memory_space<vmem>>, vector<1x8x128xf32>
    %1 = vector.shape_cast %0 : vector<1x8x128xf32> to vector<8x128xf32>
    %c1 = arith.constant 1 : index
    %c0_2 = arith.constant 0 : index
    %c0_3 = arith.constant 0 : index
    %2 = vector.load %arg3[%c1, %c0_2, %c0_3] : memref<2x128x512xf32, #tpu.memory_space<vmem>>, vector<1x128x512xf32>
    %3 = vector.shape_cast %2 : vector<1x128x512xf32> to vector<128x512xf32>
    %cst = arith.constant dense<0.000000e+00> : vector<8x512xf32>
    %4 = tpu.matmul %1, %3, %cst {dimension_numbers = #tpu.dot_dimension_numbers<[1], [0], [0], [1], [0, 0, 1, 1], [], []>} : vector<8x128xf32>, vector<128x512xf32>, vector<8x512xf32> -> vector<8x512xf32>
    %5 = tpu.iota {dimensions = array<i32: 0>} : vector<8x8xi32>
    %6 = tpu.iota {dimensions = array<i32: 1>} : vector<8x8xi32>
    %c1_i32 = arith.constant 1 : i32
    %7 = vector.broadcast %c1_i32 : i32 to vector<8x8xi32>
    %8 = arith.addi %6, %7 : vector<8x8xi32>
    %9 = arith.cmpi eq, %8, %5 : vector<8x8xi32>
    %10 = arith.extui %9 : vector<8x8xi1> to vector<8x8xi32>
    %11 = arith.sitofp %10 : vector<8x8xi32> to vector<8x8xf32>
    %c0_4 = arith.constant 0 : index
    %c0_5 = arith.constant 0 : index
    %c0_6 = arith.constant 0 : index
    %12 = vector.load %arg3[%c0_4, %c0_5, %c0_6] : memref<2x128x512xf32, #tpu.memory_space<vmem>>, vector<1x128x512xf32>
    %13 = vector.shape_cast %12 : vector<1x128x512xf32> to vector<128x512xf32>
    %cst_7 = arith.constant dense<0.000000e+00> : vector<8x512xf32>
    %14 = tpu.matmul %1, %13, %cst_7 {dimension_numbers = #tpu.dot_dimension_numbers<[1], [0], [0], [1], [0, 0, 1, 1], [], []>} : vector<8x128xf32>, vector<128x512xf32>, vector<8x512xf32> -> vector<8x512xf32>
    %cst_8 = arith.constant dense<0.000000e+00> : vector<8x512xf32>
    %15 = tpu.matmul %11, %14, %cst_8 {dimension_numbers = #tpu.dot_dimension_numbers<[1], [0], [0], [1], [0, 0, 1, 1], [], []>} : vector<8x8xf32>, vector<8x512xf32>, vector<8x512xf32> -> vector<8x512xf32>
    %16 = arith.addf %4, %15 : vector<8x512xf32>
    %c0_9 = arith.constant 0 : index
    %c0_10 = arith.constant 0 : index
    %17 = vector.load %arg4[%c0_9, %c0_10] : memref<1x512xf32, #tpu.memory_space<vmem>>, vector<1x512xf32>
    %18 = vector.broadcast %17 : vector<1x512xf32> to vector<8x512xf32>
    %19 = arith.addf %16, %18 : vector<8x512xf32>
    %cst_11 = arith.constant 0.000000e+00 : f32
    %20 = vector.broadcast %cst_11 : f32 to vector<8x512xf32>
    %21 = arith.cmpf ogt, %19, %20 : vector<8x512xf32>
    %cst_12 = arith.constant 2.000000e-01 : f32
    %22 = vector.broadcast %cst_12 : f32 to vector<8x512xf32>
    %23 = arith.mulf %22, %19 : vector<8x512xf32>
    %24 = arith.select %21, %19, %23 : vector<8x512xi1>, vector<8x512xf32>
    %c0_13 = arith.constant 0 : index
    %c0_14 = arith.constant 0 : index
    %25 = vector.load %arg11[%c0_13, %c0_14] : memref<512x48xf32, #tpu.memory_space<vmem>>, vector<512x48xf32>
    %cst_15 = arith.constant dense<0.000000e+00> : vector<8x48xf32>
    %26 = tpu.matmul %24, %25, %cst_15 {dimension_numbers = #tpu.dot_dimension_numbers<[1], [0], [0], [1], [0, 0, 1, 1], [], []>} : vector<8x512xf32>, vector<512x48xf32>, vector<8x48xf32> -> vector<8x48xf32>
    %c0_16 = arith.constant 0 : index
    %c0_17 = arith.constant 0 : index
    %27 = vector.load %arg12[%c0_16, %c0_17] : memref<1x48xf32, #tpu.memory_space<vmem>>, vector<1x48xf32>
    %28 = vector.broadcast %27 : vector<1x48xf32> to vector<8x48xf32>
    %29 = arith.addf %26, %28 : vector<8x48xf32>
    %c0_18 = arith.constant 0 : index
    %c0_19 = arith.constant 0 : index
    %30 = vector.load %arg13[%c0_18, %c0_19] : memref<5x8xf32, #tpu.memory_space<vmem>>, vector<5x8xf32>
    %cst_20 = arith.constant dense<0.000000e+00> : vector<5x48xf32>
    %31 = tpu.matmul %30, %29, %cst_20 {dimension_numbers = #tpu.dot_dimension_numbers<[1], [0], [0], [1], [0, 0, 1, 1], [], []>} : vector<5x8xf32>, vector<8x48xf32>, vector<5x48xf32> -> vector<5x48xf32>
    %c0_21 = arith.constant 0 : index
    %c0_22 = arith.constant 0 : index
    %32 = vector.load %arg14[%c0_21, %c0_22] : memref<5x48xf32, #tpu.memory_space<vmem>>, vector<5x48xf32>
    %33 = arith.addf %31, %32 : vector<5x48xf32>
    %cst_23 = arith.constant 0.000000e+00 : f32
    %34 = vector.broadcast %cst_23 : f32 to vector<5x48xf32>
    %35 = arith.cmpf ogt, %33, %34 : vector<5x48xf32>
    %cst_24 = arith.constant 2.000000e-01 : f32
    %36 = vector.broadcast %cst_24 : f32 to vector<5x48xf32>
    %37 = arith.mulf %36, %33 : vector<5x48xf32>
    %38 = arith.select %35, %33, %37 : vector<5x48xi1>, vector<5x48xf32>
    %c0_25 = arith.constant 0 : index
    %c0_26 = arith.constant 0 : index
    %39 = vector.load %arg10[%c0_25, %c0_26] : memref<4x8xf32, #tpu.memory_space<vmem>>, vector<4x8xf32>
    %c0_27 = arith.constant 0 : index
    %c0_28 = arith.constant 0 : index
    %40 = vector.load %arg9[%c0_27, %c0_28] : memref<512x128xf32, #tpu.memory_space<vmem>>, vector<512x128xf32>
    %cst_29 = arith.constant dense<0.000000e+00> : vector<8x128xf32>
    %41 = tpu.matmul %24, %40, %cst_29 {dimension_numbers = #tpu.dot_dimension_numbers<[1], [0], [0], [1], [0, 0, 1, 1], [], []>} : vector<8x512xf32>, vector<512x128xf32>, vector<8x128xf32> -> vector<8x128xf32>
    %cst_30 = arith.constant dense<0.000000e+00> : vector<4x128xf32>
    %42 = tpu.matmul %39, %41, %cst_30 {dimension_numbers = #tpu.dot_dimension_numbers<[1], [0], [0], [1], [0, 0, 1, 1], [], []>} : vector<4x8xf32>, vector<8x128xf32>, vector<4x128xf32> -> vector<4x128xf32>
    %c1_31 = arith.constant 1 : index
    %c0_32 = arith.constant 0 : index
    %c0_33 = arith.constant 0 : index
    %43 = vector.load %arg5[%c1_31, %c0_32, %c0_33] : memref<2x128x256xf32, #tpu.memory_space<vmem>>, vector<1x128x256xf32>
    %44 = vector.shape_cast %43 : vector<1x128x256xf32> to vector<128x256xf32>
    %cst_34 = arith.constant dense<0.000000e+00> : vector<4x256xf32>
    %45 = tpu.matmul %42, %44, %cst_34 {dimension_numbers = #tpu.dot_dimension_numbers<[1], [0], [0], [1], [0, 0, 1, 1], [], []>} : vector<4x128xf32>, vector<128x256xf32>, vector<4x256xf32> -> vector<4x256xf32>
    %46 = tpu.iota {dimensions = array<i32: 0>} : vector<4x4xi32>
    %47 = tpu.iota {dimensions = array<i32: 1>} : vector<4x4xi32>
    %c1_i32_35 = arith.constant 1 : i32
    %48 = vector.broadcast %c1_i32_35 : i32 to vector<4x4xi32>
    %49 = arith.addi %47, %48 : vector<4x4xi32>
    %50 = arith.cmpi eq, %49, %46 : vector<4x4xi32>
    %51 = arith.extui %50 : vector<4x4xi1> to vector<4x4xi32>
    %52 = arith.sitofp %51 : vector<4x4xi32> to vector<4x4xf32>
    %c0_36 = arith.constant 0 : index
    %c0_37 = arith.constant 0 : index
    %c0_38 = arith.constant 0 : index
    %53 = vector.load %arg5[%c0_36, %c0_37, %c0_38] : memref<2x128x256xf32, #tpu.memory_space<vmem>>, vector<1x128x256xf32>
    %54 = vector.shape_cast %53 : vector<1x128x256xf32> to vector<128x256xf32>
    %cst_39 = arith.constant dense<0.000000e+00> : vector<4x256xf32>
    %55 = tpu.matmul %42, %54, %cst_39 {dimension_numbers = #tpu.dot_dimension_numbers<[1], [0], [0], [1], [0, 0, 1, 1], [], []>} : vector<4x128xf32>, vector<128x256xf32>, vector<4x256xf32> -> vector<4x256xf32>
    %cst_40 = arith.constant dense<0.000000e+00> : vector<4x256xf32>
    %56 = tpu.matmul %52, %55, %cst_40 {dimension_numbers = #tpu.dot_dimension_numbers<[1], [0], [0], [1], [0, 0, 1, 1], [], []>} : vector<4x4xf32>, vector<4x256xf32>, vector<4x256xf32> -> vector<4x256xf32>
    %57 = arith.addf %45, %56 : vector<4x256xf32>
    %c0_41 = arith.constant 0 : index
    %c0_42 = arith.constant 0 : index
    %58 = vector.load %arg6[%c0_41, %c0_42] : memref<1x256xf32, #tpu.memory_space<vmem>>, vector<1x256xf32>
    %59 = vector.broadcast %58 : vector<1x256xf32> to vector<4x256xf32>
    %60 = arith.addf %57, %59 : vector<4x256xf32>
    %c0_43 = arith.constant 0 : index
    %c0_44 = arith.constant 0 : index
    %61 = vector.load %arg7[%c0_43, %c0_44] : memref<128x256xf32, #tpu.memory_space<vmem>>, vector<128x256xf32>
    %cst_45 = arith.constant dense<0.000000e+00> : vector<4x256xf32>
    %62 = tpu.matmul %42, %61, %cst_45 {dimension_numbers = #tpu.dot_dimension_numbers<[1], [0], [0], [1], [0, 0, 1, 1], [], []>} : vector<4x128xf32>, vector<128x256xf32>, vector<4x256xf32> -> vector<4x256xf32>
    %c0_46 = arith.constant 0 : index
    %c0_47 = arith.constant 0 : index
    %63 = vector.load %arg8[%c0_46, %c0_47] : memref<1x256xf32, #tpu.memory_space<vmem>>, vector<1x256xf32>
    %64 = vector.broadcast %63 : vector<1x256xf32> to vector<4x256xf32>
    %65 = arith.addf %62, %64 : vector<4x256xf32>
    %66 = arith.addf %60, %65 : vector<4x256xf32>
    %cst_48 = arith.constant 0.000000e+00 : f32
    %67 = vector.broadcast %cst_48 : f32 to vector<4x256xf32>
    %68 = arith.cmpf ogt, %66, %67 : vector<4x256xf32>
    %cst_49 = arith.constant 2.000000e-01 : f32
    %69 = vector.broadcast %cst_49 : f32 to vector<4x256xf32>
    %70 = arith.mulf %69, %66 : vector<4x256xf32>
    %71 = arith.select %68, %66, %70 : vector<4x256xi1>, vector<4x256xf32>
    %c0_50 = arith.constant 0 : index
    %c0_51 = arith.constant 0 : index
    %72 = vector.load %arg15[%c0_50, %c0_51] : memref<256x64xf32, #tpu.memory_space<vmem>>, vector<256x64xf32>
    %cst_52 = arith.constant dense<0.000000e+00> : vector<4x64xf32>
    %73 = tpu.matmul %71, %72, %cst_52 {dimension_numbers = #tpu.dot_dimension_numbers<[1], [0], [0], [1], [0, 0, 1, 1], [], []>} : vector<4x256xf32>, vector<256x64xf32>, vector<4x64xf32> -> vector<4x64xf32>
    %c0_53 = arith.constant 0 : index
    %c0_54 = arith.constant 0 : index
    %74 = vector.load %arg16[%c0_53, %c0_54] : memref<1x64xf32, #tpu.memory_space<vmem>>, vector<1x64xf32>
    %75 = vector.broadcast %74 : vector<1x64xf32> to vector<4x64xf32>
    %76 = arith.addf %73, %75 : vector<4x64xf32>
    %c0_55 = arith.constant 0 : index
    %c0_56 = arith.constant 0 : index
    %77 = vector.load %arg17[%c0_55, %c0_56] : memref<3x4xf32, #tpu.memory_space<vmem>>, vector<3x4xf32>
    %cst_57 = arith.constant dense<0.000000e+00> : vector<3x64xf32>
    %78 = tpu.matmul %77, %76, %cst_57 {dimension_numbers = #tpu.dot_dimension_numbers<[1], [0], [0], [1], [0, 0, 1, 1], [], []>} : vector<3x4xf32>, vector<4x64xf32>, vector<3x64xf32> -> vector<3x64xf32>
    %c0_58 = arith.constant 0 : index
    %c0_59 = arith.constant 0 : index
    %79 = vector.load %arg18[%c0_58, %c0_59] : memref<3x64xf32, #tpu.memory_space<vmem>>, vector<3x64xf32>
    %80 = arith.addf %78, %79 : vector<3x64xf32>
    %cst_60 = arith.constant 0.000000e+00 : f32
    %81 = vector.broadcast %cst_60 : f32 to vector<3x64xf32>
    %82 = arith.cmpf ogt, %80, %81 : vector<3x64xf32>
    %cst_61 = arith.constant 2.000000e-01 : f32
    %83 = vector.broadcast %cst_61 : f32 to vector<3x64xf32>
    %84 = arith.mulf %83, %80 : vector<3x64xf32>
    %85 = arith.select %82, %80, %84 : vector<3x64xi1>, vector<3x64xf32>
    %c0_62 = arith.constant 0 : index
    %c0_63 = arith.constant 0 : index
    %86 = vector.load %arg21[%c0_62, %c0_63] : memref<1x32xf32, #tpu.memory_space<vmem>>, vector<1x32xf32>
    %87 = vector.extract_strided_slice %38 {offsets = [0, 0], sizes = [1, 48], strides = [1, 1]} : vector<5x48xf32> to vector<1x48xf32>
    %c0_64 = arith.constant 0 : index
    %c0_65 = arith.constant 0 : index
    %c0_66 = arith.constant 0 : index
    %88 = vector.load %arg19[%c0_64, %c0_65, %c0_66] : memref<5x48x32xf32, #tpu.memory_space<vmem>>, vector<1x48x32xf32>
    %89 = vector.shape_cast %88 : vector<1x48x32xf32> to vector<48x32xf32>
    %cst_67 = arith.constant dense<0.000000e+00> : vector<1x32xf32>
    %90 = tpu.matmul %87, %89, %cst_67 {dimension_numbers = #tpu.dot_dimension_numbers<[1], [0], [0], [1], [0, 0, 1, 1], [], []>} : vector<1x48xf32>, vector<48x32xf32>, vector<1x32xf32> -> vector<1x32xf32>
    %91 = arith.addf %86, %90 : vector<1x32xf32>
    %92 = vector.extract_strided_slice %38 {offsets = [1, 0], sizes = [1, 48], strides = [1, 1]} : vector<5x48xf32> to vector<1x48xf32>
    %c1_68 = arith.constant 1 : index
    %c0_69 = arith.constant 0 : index
    %c0_70 = arith.constant 0 : index
    %93 = vector.load %arg19[%c1_68, %c0_69, %c0_70] : memref<5x48x32xf32, #tpu.memory_space<vmem>>, vector<1x48x32xf32>
    %94 = vector.shape_cast %93 : vector<1x48x32xf32> to vector<48x32xf32>
    %cst_71 = arith.constant dense<0.000000e+00> : vector<1x32xf32>
    %95 = tpu.matmul %92, %94, %cst_71 {dimension_numbers = #tpu.dot_dimension_numbers<[1], [0], [0], [1], [0, 0, 1, 1], [], []>} : vector<1x48xf32>, vector<48x32xf32>, vector<1x32xf32> -> vector<1x32xf32>
    %96 = arith.addf %91, %95 : vector<1x32xf32>
    %97 = vector.extract_strided_slice %38 {offsets = [2, 0], sizes = [1, 48], strides = [1, 1]} : vector<5x48xf32> to vector<1x48xf32>
    %c2 = arith.constant 2 : index
    %c0_72 = arith.constant 0 : index
    %c0_73 = arith.constant 0 : index
    %98 = vector.load %arg19[%c2, %c0_72, %c0_73] : memref<5x48x32xf32, #tpu.memory_space<vmem>>, vector<1x48x32xf32>
    %99 = vector.shape_cast %98 : vector<1x48x32xf32> to vector<48x32xf32>
    %cst_74 = arith.constant dense<0.000000e+00> : vector<1x32xf32>
    %100 = tpu.matmul %97, %99, %cst_74 {dimension_numbers = #tpu.dot_dimension_numbers<[1], [0], [0], [1], [0, 0, 1, 1], [], []>} : vector<1x48xf32>, vector<48x32xf32>, vector<1x32xf32> -> vector<1x32xf32>
    %101 = arith.addf %96, %100 : vector<1x32xf32>
    %102 = vector.extract_strided_slice %38 {offsets = [3, 0], sizes = [1, 48], strides = [1, 1]} : vector<5x48xf32> to vector<1x48xf32>
    %c3 = arith.constant 3 : index
    %c0_75 = arith.constant 0 : index
    %c0_76 = arith.constant 0 : index
    %103 = vector.load %arg19[%c3, %c0_75, %c0_76] : memref<5x48x32xf32, #tpu.memory_space<vmem>>, vector<1x48x32xf32>
    %104 = vector.shape_cast %103 : vector<1x48x32xf32> to vector<48x32xf32>
    %cst_77 = arith.constant dense<0.000000e+00> : vector<1x32xf32>
    %105 = tpu.matmul %102, %104, %cst_77 {dimension_numbers = #tpu.dot_dimension_numbers<[1], [0], [0], [1], [0, 0, 1, 1], [], []>} : vector<1x48xf32>, vector<48x32xf32>, vector<1x32xf32> -> vector<1x32xf32>
    %106 = arith.addf %101, %105 : vector<1x32xf32>
    %107 = vector.extract_strided_slice %38 {offsets = [4, 0], sizes = [1, 48], strides = [1, 1]} : vector<5x48xf32> to vector<1x48xf32>
    %c4 = arith.constant 4 : index
    %c0_78 = arith.constant 0 : index
    %c0_79 = arith.constant 0 : index
    %108 = vector.load %arg19[%c4, %c0_78, %c0_79] : memref<5x48x32xf32, #tpu.memory_space<vmem>>, vector<1x48x32xf32>
    %109 = vector.shape_cast %108 : vector<1x48x32xf32> to vector<48x32xf32>
    %cst_80 = arith.constant dense<0.000000e+00> : vector<1x32xf32>
    %110 = tpu.matmul %107, %109, %cst_80 {dimension_numbers = #tpu.dot_dimension_numbers<[1], [0], [0], [1], [0, 0, 1, 1], [], []>} : vector<1x48xf32>, vector<48x32xf32>, vector<1x32xf32> -> vector<1x32xf32>
    %111 = arith.addf %106, %110 : vector<1x32xf32>
    %112 = vector.extract_strided_slice %85 {offsets = [0, 0], sizes = [1, 64], strides = [1, 1]} : vector<3x64xf32> to vector<1x64xf32>
    %c0_81 = arith.constant 0 : index
    %c0_82 = arith.constant 0 : index
    %c0_83 = arith.constant 0 : index
    %113 = vector.load %arg20[%c0_81, %c0_82, %c0_83] : memref<3x64x32xf32, #tpu.memory_space<vmem>>, vector<1x64x32xf32>
    %114 = vector.shape_cast %113 : vector<1x64x32xf32> to vector<64x32xf32>
    %cst_84 = arith.constant dense<0.000000e+00> : vector<1x32xf32>
    %115 = tpu.matmul %112, %114, %cst_84 {dimension_numbers = #tpu.dot_dimension_numbers<[1], [0], [0], [1], [0, 0, 1, 1], [], []>} : vector<1x64xf32>, vector<64x32xf32>, vector<1x32xf32> -> vector<1x32xf32>
    %116 = arith.addf %111, %115 : vector<1x32xf32>
    %117 = vector.extract_strided_slice %85 {offsets = [1, 0], sizes = [1, 64], strides = [1, 1]} : vector<3x64xf32> to vector<1x64xf32>
    %c1_85 = arith.constant 1 : index
    %c0_86 = arith.constant 0 : index
    %c0_87 = arith.constant 0 : index
    %118 = vector.load %arg20[%c1_85, %c0_86, %c0_87] : memref<3x64x32xf32, #tpu.memory_space<vmem>>, vector<1x64x32xf32>
    %119 = vector.shape_cast %118 : vector<1x64x32xf32> to vector<64x32xf32>
    %cst_88 = arith.constant dense<0.000000e+00> : vector<1x32xf32>
    %120 = tpu.matmul %117, %119, %cst_88 {dimension_numbers = #tpu.dot_dimension_numbers<[1], [0], [0], [1], [0, 0, 1, 1], [], []>} : vector<1x64xf32>, vector<64x32xf32>, vector<1x32xf32> -> vector<1x32xf32>
    %121 = arith.addf %116, %120 : vector<1x32xf32>
    %122 = vector.extract_strided_slice %85 {offsets = [2, 0], sizes = [1, 64], strides = [1, 1]} : vector<3x64xf32> to vector<1x64xf32>
    %c2_89 = arith.constant 2 : index
    %c0_90 = arith.constant 0 : index
    %c0_91 = arith.constant 0 : index
    %123 = vector.load %arg20[%c2_89, %c0_90, %c0_91] : memref<3x64x32xf32, #tpu.memory_space<vmem>>, vector<1x64x32xf32>
    %124 = vector.shape_cast %123 : vector<1x64x32xf32> to vector<64x32xf32>
    %cst_92 = arith.constant dense<0.000000e+00> : vector<1x32xf32>
    %125 = tpu.matmul %122, %124, %cst_92 {dimension_numbers = #tpu.dot_dimension_numbers<[1], [0], [0], [1], [0, 0, 1, 1], [], []>} : vector<1x64xf32>, vector<64x32xf32>, vector<1x32xf32> -> vector<1x32xf32>
    %126 = arith.addf %121, %125 : vector<1x32xf32>
    %127 = vector.extract_strided_slice %126 {offsets = [0, 0], sizes = [1, 16], strides = [1, 1]} : vector<1x32xf32> to vector<1x16xf32>
    %128 = vector.extract_strided_slice %126 {offsets = [0, 16], sizes = [1, 16], strides = [1, 1]} : vector<1x32xf32> to vector<1x16xf32>
    %cst_93 = arith.constant 5.000000e-01 : f32
    %129 = vector.broadcast %cst_93 : f32 to vector<1x16xf32>
    %130 = arith.mulf %129, %128 : vector<1x16xf32>
    %131 = math.exp %130 : vector<1x16xf32>
    %c0_94 = arith.constant 0 : index
    %c0_95 = arith.constant 0 : index
    %c0_96 = arith.constant 0 : index
    %132 = vector.load %arg2[%c0_94, %c0_95, %c0_96] : memref<1x1x16xf32, #tpu.memory_space<vmem>>, vector<1x1x16xf32>
    %133 = vector.shape_cast %132 : vector<1x1x16xf32> to vector<1x16xf32>
    %134 = arith.mulf %131, %133 : vector<1x16xf32>
    %135 = arith.addf %127, %134 : vector<1x16xf32>
    %c0_97 = arith.constant 0 : index
    %c0_98 = arith.constant 0 : index
    %136 = vector.load %arg22[%c0_97, %c0_98] : memref<16x128xf32, #tpu.memory_space<vmem>>, vector<16x128xf32>
    %cst_99 = arith.constant dense<0.000000e+00> : vector<1x128xf32>
    %137 = tpu.matmul %135, %136, %cst_99 {dimension_numbers = #tpu.dot_dimension_numbers<[1], [0], [0], [1], [0, 0, 1, 1], [], []>} : vector<1x16xf32>, vector<16x128xf32>, vector<1x128xf32> -> vector<1x128xf32>
    %c0_100 = arith.constant 0 : index
    %c0_101 = arith.constant 0 : index
    %138 = vector.load %arg23[%c0_100, %c0_101] : memref<1x128xf32, #tpu.memory_space<vmem>>, vector<1x128xf32>
    %139 = arith.addf %137, %138 : vector<1x128xf32>
    %c0_102 = arith.constant 0 : index
    %c0_103 = arith.constant 0 : index
    %140 = vector.load %arg24[%c0_102, %c0_103] : memref<128x256xf32, #tpu.memory_space<vmem>>, vector<128x256xf32>
    %cst_104 = arith.constant dense<0.000000e+00> : vector<1x256xf32>
    %141 = tpu.matmul %139, %140, %cst_104 {dimension_numbers = #tpu.dot_dimension_numbers<[1], [0], [0], [1], [0, 0, 1, 1], [], []>} : vector<1x128xf32>, vector<128x256xf32>, vector<1x256xf32> -> vector<1x256xf32>
    %cst_105 = arith.constant 0.000000e+00 : f32
    %142 = vector.broadcast %cst_105 : f32 to vector<1x256xf32>
    %143 = arith.cmpf ogt, %141, %142 : vector<1x256xf32>
    %cst_106 = arith.constant 2.000000e-01 : f32
    %144 = vector.broadcast %cst_106 : f32 to vector<1x256xf32>
    %145 = arith.mulf %144, %141 : vector<1x256xf32>
    %146 = arith.select %143, %141, %145 : vector<1x256xi1>, vector<1x256xf32>
    %c0_107 = arith.constant 0 : index
    %c0_108 = arith.constant 0 : index
    %c0_109 = arith.constant 0 : index
    %147 = vector.load %arg25[%c0_107, %c0_108, %c0_109] : memref<1x1x16xf32, #tpu.memory_space<vmem>>, vector<1x1x16xf32>
    %148 = vector.shape_cast %147 : vector<1x1x16xf32> to vector<1x16xf32>
    %149 = vector.shape_cast %135 : vector<1x16xf32> to vector<1x1x16xf32>
    tpu.vector_store %arg25[%c0_107, %c0_108, %c0_109], %149 {strides = array<i32>} : memref<1x1x16xf32, #tpu.memory_space<vmem>>, vector<1x1x16xf32>,
    %c0_110 = arith.constant 0 : index
    %c0_111 = arith.constant 0 : index
    %c0_112 = arith.constant 0 : index
    %150 = vector.load %arg26[%c0_110, %c0_111, %c0_112] : memref<1x1x16xf32, #tpu.memory_space<vmem>>, vector<1x1x16xf32>
    %151 = vector.shape_cast %150 : vector<1x1x16xf32> to vector<1x16xf32>
    %152 = vector.shape_cast %127 : vector<1x16xf32> to vector<1x1x16xf32>
    tpu.vector_store %arg26[%c0_110, %c0_111, %c0_112], %152 {strides = array<i32>} : memref<1x1x16xf32, #tpu.memory_space<vmem>>, vector<1x1x16xf32>,
    %c0_113 = arith.constant 0 : index
    %c0_114 = arith.constant 0 : index
    %c0_115 = arith.constant 0 : index
    %153 = vector.load %arg27[%c0_113, %c0_114, %c0_115] : memref<1x1x16xf32, #tpu.memory_space<vmem>>, vector<1x1x16xf32>
    %154 = vector.shape_cast %153 : vector<1x1x16xf32> to vector<1x16xf32>
    %155 = vector.shape_cast %128 : vector<1x16xf32> to vector<1x1x16xf32>
    tpu.vector_store %arg27[%c0_113, %c0_114, %c0_115], %155 {strides = array<i32>} : memref<1x1x16xf32, #tpu.memory_space<vmem>>, vector<1x1x16xf32>,
    %c0_116 = arith.constant 0 : index
    %c0_117 = arith.constant 0 : index
    %c0_118 = arith.constant 0 : index
    %156 = vector.load %arg28[%c0_116, %c0_117, %c0_118] : memref<1x1x256xf32, #tpu.memory_space<vmem>>, vector<1x1x256xf32>
    %157 = vector.shape_cast %156 : vector<1x1x256xf32> to vector<1x256xf32>
    %158 = vector.shape_cast %146 : vector<1x256xf32> to vector<1x1x256xf32>
    tpu.vector_store %arg28[%c0_116, %c0_117, %c0_118], %158 {strides = array<i32>} : memref<1x1x256xf32, #tpu.memory_space<vmem>>, vector<1x1x256xf32>,
    return
  }
  func.func @transform_0(%arg0: i32) -> (i32, i32, i32) {
    %c0_i32 = arith.constant 0 : i32
    %c0_i32_0 = arith.constant 0 : i32
    %c0_i32_1 = arith.constant 0 : i32
    return %arg0, %c0_i32, %c0_i32_0 : i32, i32, i32
  }
  func.func @transform_1(%arg0: i32) -> (i32, i32, i32) {
    %c0_i32 = arith.constant 0 : i32
    %c0_i32_0 = arith.constant 0 : i32
    %c0_i32_1 = arith.constant 0 : i32
    return %arg0, %c0_i32, %c0_i32_0 : i32, i32, i32
  }
  func.func @transform_2(%arg0: i32) -> (i32, i32, i32) {
    %c0_i32 = arith.constant 0 : i32
    %c0_i32_0 = arith.constant 0 : i32
    %c0_i32_1 = arith.constant 0 : i32
    %c0_i32_2 = arith.constant 0 : i32
    return %c0_i32, %c0_i32_0, %c0_i32_1 : i32, i32, i32
  }
  func.func @transform_3(%arg0: i32) -> (i32, i32) {
    %c0_i32 = arith.constant 0 : i32
    %c0_i32_0 = arith.constant 0 : i32
    %c0_i32_1 = arith.constant 0 : i32
    return %c0_i32, %c0_i32_0 : i32, i32
  }
  func.func @transform_4(%arg0: i32) -> (i32, i32, i32) {
    %c0_i32 = arith.constant 0 : i32
    %c0_i32_0 = arith.constant 0 : i32
    %c0_i32_1 = arith.constant 0 : i32
    %c0_i32_2 = arith.constant 0 : i32
    return %c0_i32, %c0_i32_0, %c0_i32_1 : i32, i32, i32
  }
  func.func @transform_5(%arg0: i32) -> (i32, i32) {
    %c0_i32 = arith.constant 0 : i32
    %c0_i32_0 = arith.constant 0 : i32
    %c0_i32_1 = arith.constant 0 : i32
    return %c0_i32, %c0_i32_0 : i32, i32
  }
  func.func @transform_6(%arg0: i32) -> (i32, i32) {
    %c0_i32 = arith.constant 0 : i32
    %c0_i32_0 = arith.constant 0 : i32
    %c0_i32_1 = arith.constant 0 : i32
    return %c0_i32, %c0_i32_0 : i32, i32
  }
  func.func @transform_7(%arg0: i32) -> (i32, i32) {
    %c0_i32 = arith.constant 0 : i32
    %c0_i32_0 = arith.constant 0 : i32
    %c0_i32_1 = arith.constant 0 : i32
    return %c0_i32, %c0_i32_0 : i32, i32
  }
  func.func @transform_8(%arg0: i32) -> (i32, i32) {
    %c0_i32 = arith.constant 0 : i32
    %c0_i32_0 = arith.constant 0 : i32
    %c0_i32_1 = arith.constant 0 : i32
    return %c0_i32, %c0_i32_0 : i32, i32
  }
  func.func @transform_9(%arg0: i32) -> (i32, i32) {
    %c0_i32 = arith.constant 0 : i32
    %c0_i32_0 = arith.constant 0 : i32
    %c0_i32_1 = arith.constant 0 : i32
    return %c0_i32, %c0_i32_0 : i32, i32
  }
  func.func @transform_10(%arg0: i32) -> (i32, i32) {
    %c0_i32 = arith.constant 0 : i32
    %c0_i32_0 = arith.constant 0 : i32
    %c0_i32_1 = arith.constant 0 : i32
    return %c0_i32, %c0_i32_0 : i32, i32
  }
  func.func @transform_11(%arg0: i32) -> (i32, i32) {
    %c0_i32 = arith.constant 0 : i32
    %c0_i32_0 = arith.constant 0 : i32
    %c0_i32_1 = arith.constant 0 : i32
    return %c0_i32, %c0_i32_0 : i32, i32
  }
  func.func @transform_12(%arg0: i32) -> (i32, i32) {
    %c0_i32 = arith.constant 0 : i32
    %c0_i32_0 = arith.constant 0 : i32
    %c0_i32_1 = arith.constant 0 : i32
    return %c0_i32, %c0_i32_0 : i32, i32
  }
  func.func @transform_13(%arg0: i32) -> (i32, i32) {
    %c0_i32 = arith.constant 0 : i32
    %c0_i32_0 = arith.constant 0 : i32
    %c0_i32_1 = arith.constant 0 : i32
    return %c0_i32, %c0_i32_0 : i32, i32
  }
  func.func @transform_14(%arg0: i32) -> (i32, i32) {
    %c0_i32 = arith.constant 0 : i32
    %c0_i32_0 = arith.constant 0 : i32
    %c0_i32_1 = arith.constant 0 : i32
    return %c0_i32, %c0_i32_0 : i32, i32
  }
  func.func @transform_15(%arg0: i32) -> (i32, i32) {
    %c0_i32 = arith.constant 0 : i32
    %c0_i32_0 = arith.constant 0 : i32
    %c0_i32_1 = arith.constant 0 : i32
    return %c0_i32, %c0_i32_0 : i32, i32
  }
  func.func @transform_16(%arg0: i32) -> (i32, i32) {
    %c0_i32 = arith.constant 0 : i32
    %c0_i32_0 = arith.constant 0 : i32
    %c0_i32_1 = arith.constant 0 : i32
    return %c0_i32, %c0_i32_0 : i32, i32
  }
  func.func @transform_17(%arg0: i32) -> (i32, i32) {
    %c0_i32 = arith.constant 0 : i32
    %c0_i32_0 = arith.constant 0 : i32
    %c0_i32_1 = arith.constant 0 : i32
    return %c0_i32, %c0_i32_0 : i32, i32
  }
  func.func @transform_18(%arg0: i32) -> (i32, i32, i32) {
    %c0_i32 = arith.constant 0 : i32
    %c0_i32_0 = arith.constant 0 : i32
    %c0_i32_1 = arith.constant 0 : i32
    %c0_i32_2 = arith.constant 0 : i32
    return %c0_i32, %c0_i32_0, %c0_i32_1 : i32, i32, i32
  }
  func.func @transform_19(%arg0: i32) -> (i32, i32, i32) {
    %c0_i32 = arith.constant 0 : i32
    %c0_i32_0 = arith.constant 0 : i32
    %c0_i32_1 = arith.constant 0 : i32
    %c0_i32_2 = arith.constant 0 : i32
    return %c0_i32, %c0_i32_0, %c0_i32_1 : i32, i32, i32
  }
  func.func @transform_20(%arg0: i32) -> (i32, i32) {
    %c0_i32 = arith.constant 0 : i32
    %c0_i32_0 = arith.constant 0 : i32
    %c0_i32_1 = arith.constant 0 : i32
    return %c0_i32, %c0_i32_0 : i32, i32
  }
  func.func @transform_21(%arg0: i32) -> (i32, i32) {
    %c0_i32 = arith.constant 0 : i32
    %c0_i32_0 = arith.constant 0 : i32
    %c0_i32_1 = arith.constant 0 : i32
    return %c0_i32, %c0_i32_0 : i32, i32
  }
  func.func @transform_22(%arg0: i32) -> (i32, i32) {
    %c0_i32 = arith.constant 0 : i32
    %c0_i32_0 = arith.constant 0 : i32
    %c0_i32_1 = arith.constant 0 : i32
    return %c0_i32, %c0_i32_0 : i32, i32
  }
  func.func @transform_23(%arg0: i32) -> (i32, i32) {
    %c0_i32 = arith.constant 0 : i32
    %c0_i32_0 = arith.constant 0 : i32
    %c0_i32_1 = arith.constant 0 : i32
    return %c0_i32, %c0_i32_0 : i32, i32
  }
  func.func @transform_24(%arg0: i32) -> (i32, i32, i32) {
    %c0_i32 = arith.constant 0 : i32
    %c0_i32_0 = arith.constant 0 : i32
    %c0_i32_1 = arith.constant 0 : i32
    return %arg0, %c0_i32, %c0_i32_0 : i32, i32, i32
  }
  func.func @transform_25(%arg0: i32) -> (i32, i32, i32) {
    %c0_i32 = arith.constant 0 : i32
    %c0_i32_0 = arith.constant 0 : i32
    %c0_i32_1 = arith.constant 0 : i32
    return %arg0, %c0_i32, %c0_i32_0 : i32, i32, i32
  }
  func.func @transform_26(%arg0: i32) -> (i32, i32, i32) {
    %c0_i32 = arith.constant 0 : i32
    %c0_i32_0 = arith.constant 0 : i32
    %c0_i32_1 = arith.constant 0 : i32
    return %arg0, %c0_i32, %c0_i32_0 : i32, i32, i32
  }
  func.func @transform_27(%arg0: i32) -> (i32, i32, i32) {
    %c0_i32 = arith.constant 0 : i32
    %c0_i32_0 = arith.constant 0 : i32
    %c0_i32_1 = arith.constant 0 : i32
    return %arg0, %c0_i32, %c0_i32_0 : i32, i32, i32
  }
}

</mosaic_0001>

<llo_original>
// kernel: tile.18
$region0: #{tile.18}
  #allocation0 [shape = 's32[1]{0}', space=sflag, size = 0x4, scoped, tag = 'scoped memory for tile.18']
  %s0 = inlined_call_operand.vmem [shape: f32[4], index: 0, kind: input, shape index: {}]
  %s1 = inlined_call_operand.vmem [shape: f32[16,4], index: 1, kind: output, shape index: {}]
  // Predicated region
  $region2: #{tile.18} parent=0 // pred_check
    _
  $region3: #{tile.18} parent=0 // pred_check_branch
    %3 = sbr.rel (0) target = $region5
  $region4: #{tile.18} parent=0 // pred_region
    _
  $region5: #{tile.18} parent=0 // pred_fallthru
    _
  %v4 = vld [vmem:[%s0] ss:$0 sm:$0xff]
  %5 = vst [vmem:[%s1] sm:$0xff] %v4
  %s6 = scalar_lea.vmem %s1, 8
  %7 = vst [vmem:[%s6] sm:$0xff] %v4

// kernel: tile.19
$region0: #{tile.19}
  %s0 = inlined_call_operand.vmem [shape: f32[16,4], index: 0, kind: input, shape index: {}]
  %s1 = inlined_call_operand.vmem [shape: f32[1,64], index: 1, kind: output, shape index: {}]
  $region1: #{tile.19} parent=0
    #allocation0 [shape = 'u8[4096]{0}', space=vmem, size = 0x1000, scoped, tag = 'scoped mem for output reshape']
    %v2 = vld [vmem:[%s0] sm:$0x1]
    %vm3 = vcmask 31744
    %4 = vst.msk [vmem:[#allocation0] sm:$0x1] %vm3, %v2
    %s5 = scalar_lea.vmem %s0, 15
    %v6 = vld [vmem:[%s5] sm:$0x1]
    %7 = vrot.lane.b32.xlu0 %v6, 60
    %v8 = vpop.permute.xlu0 %7
    %vm9 = vcmask 523744
    %10 = vst.msk [vmem:[#allocation0] sm:$0x1] %vm9, %v8
    %s11 = scalar_lea.vmem %s0, 14
    %v12 = vld [vmem:[%s11] sm:$0x1]
    %13 = vrot.lane.b32.xlu0 %v12, 56
    %v14 = vpop.permute.xlu0 %13
    %vm15 = vcmask 490944
    %16 = vst.msk [vmem:[#allocation0] sm:$0x1] %vm15, %v14
    %s17 = scalar_lea.vmem %s0, 13
    %v18 = vld [vmem:[%s17] sm:$0x1]
    %19 = vrot.lane.b32.xlu0 %v18, 52
    %v20 = vpop.permute.xlu0 %19
    %vm21 = vcmask 458144
    %22 = vst.msk [vmem:[#allocation0] sm:$0x1] %vm21, %v20
    %s23 = scalar_lea.vmem %s0, 12
    %v24 = vld [vmem:[%s23] sm:$0x1]
    %25 = vrot.lane.b32.xlu0 %v24, 48
    %v26 = vpop.permute.xlu0 %25
    %vm27 = vcmask 425344
    %28 = vst.msk [vmem:[#allocation0] sm:$0x1] %vm27, %v26
    %s29 = scalar_lea.vmem %s0, 11
    %v30 = vld [vmem:[%s29] sm:$0x1]
    %31 = vrot.lane.b32.xlu0 %v30, 44
    %v32 = vpop.permute.xlu0 %31
    %vm33 = vcmask 392544
    %34 = vst.msk [vmem:[#allocation0] sm:$0x1] %vm33, %v32
    %s35 = scalar_lea.vmem %s0, 10
    %v36 = vld [vmem:[%s35] sm:$0x1]
    %37 = vrot.lane.b32.xlu0 %v36, 40
    %v38 = vpop.permute.xlu0 %37
    %vm39 = vcmask 359744
    %40 = vst.msk [vmem:[#allocation0] sm:$0x1] %vm39, %v38
    %s41 = scalar_lea.vmem %s0, 9
    %v42 = vld [vmem:[%s41] sm:$0x1]
    %43 = vrot.lane.b32.xlu0 %v42, 36
    %v44 = vpop.permute.xlu0 %43
    %vm45 = vcmask 326944
    %46 = vst.msk [vmem:[#allocation0] sm:$0x1] %vm45, %v44
    %s47 = scalar_lea.vmem %s0, 8
    %v48 = vld [vmem:[%s47] sm:$0x1]
    %49 = vrot.lane.b32.xlu0 %v48, 32
    %v50 = vpop.permute.xlu0 %49
    %vm51 = vcmask 294144
    %52 = vst.msk [vmem:[#allocation0] sm:$0x1] %vm51, %v50
    %s53 = scalar_lea.vmem %s0, 7
    %v54 = vld [vmem:[%s53] sm:$0x1]
    %55 = vrot.lane.b32.xlu0 %v54, 28
    %v56 = vpop.permute.xlu0 %55
    %vm57 = vcmask 261344
    %58 = vst.msk [vmem:[#allocation0] sm:$0x1] %vm57, %v56
    %s59 = scalar_lea.vmem %s0, 6
    %v60 = vld [vmem:[%s59] sm:$0x1]
    %61 = vrot.lane.b32.xlu0 %v60, 24
    %v62 = vpop.permute.xlu0 %61
    %vm63 = vcmask 228544
    %64 = vst.msk [vmem:[#allocation0] sm:$0x1] %vm63, %v62
    %s65 = scalar_lea.vmem %s0, 5
    %v66 = vld [vmem:[%s65] sm:$0x1]
    %67 = vrot.lane.b32.xlu0 %v66, 20
    %v68 = vpop.permute.xlu0 %67
    %vm69 = vcmask 195744
    %70 = vst.msk [vmem:[#allocation0] sm:$0x1] %vm69, %v68
    %s71 = scalar_lea.vmem %s0, 4
    %v72 = vld [vmem:[%s71] sm:$0x1]
    %73 = vrot.lane.b32.xlu0 %v72, 16
    %v74 = vpop.permute.xlu0 %73
    %vm75 = vcmask 162944
    %76 = vst.msk [vmem:[#allocation0] sm:$0x1] %vm75, %v74
    %s77 = scalar_lea.vmem %s0, 3
    %v78 = vld [vmem:[%s77] sm:$0x1]
    %79 = vrot.lane.b32.xlu0 %v78, 12
    %v80 = vpop.permute.xlu0 %79
    %vm81 = vcmask 130144
    %82 = vst.msk [vmem:[#allocation0] sm:$0x1] %vm81, %v80
    %s83 = scalar_lea.vmem %s0, 2
    %v84 = vld [vmem:[%s83] sm:$0x1]
    %85 = vrot.lane.b32.xlu0 %v84, 8
    %v86 = vpop.permute.xlu0 %85
    %vm87 = vcmask 97344
    %88 = vst.msk [vmem:[#allocation0] sm:$0x1] %vm87, %v86
    %s89 = scalar_lea.vmem %s0, 1
    %v90 = vld [vmem:[%s89] sm:$0x1]
    %91 = vrot.lane.b32.xlu0 %v90, 4
    %v92 = vpop.permute.xlu0 %91
    %vm93 = vcmask 64544
    %94 = vst.msk [vmem:[#allocation0] sm:$0x1] %vm93, %v92
    %s96 = sshll.u32 1, 1
    %s97 = ssub.s32 %s96, 1
    %v99 = vld [vmem:[#allocation0] sm:%s97]
    %s100 = sshll.u32 1, 1
    %s101 = ssub.s32 %s100, 1
    %102 = vst [vmem:[%s1] sm:%s101] %v99

// kernel: tile.13
$region0: #{tile.13}
  #allocation0 [shape = 's32[1]{0}', space=sflag, size = 0x4, scoped, tag = 'scoped memory for tile.13']
  %s0 = inlined_call_operand.vmem [shape: f32[6], index: 0, kind: input, shape index: {}]
  %s1 = inlined_call_operand.vmem [shape: f32[8,6], index: 1, kind: output, shape index: {}]
  // Predicated region
  $region2: #{tile.13} parent=0 // pred_check
    _
  $region3: #{tile.13} parent=0 // pred_check_branch
    %3 = sbr.rel (0) target = $region5
  $region4: #{tile.13} parent=0 // pred_region
    _
  $region5: #{tile.13} parent=0 // pred_fallthru
    _
  %v4 = vld [vmem:[%s0] ss:$0 sm:$0xff]
  %5 = vst [vmem:[%s1] sm:$0xff] %v4

// kernel: tile.14
$region0: #{tile.14}
  %s0 = inlined_call_operand.vmem [shape: f32[8,6], index: 0, kind: input, shape index: {}]
  %s1 = inlined_call_operand.vmem [shape: f32[1,48], index: 1, kind: output, shape index: {}]
  $region1: #{tile.14} parent=0
    #allocation0 [shape = 'u8[4096]{0}', space=vmem, size = 0x1000, scoped, tag = 'scoped mem for output reshape']
    %v2 = vld [vmem:[%s0] sm:$0x1]
    %vm3 = vcmask 48128
    %4 = vst.msk [vmem:[#allocation0] sm:$0x1] %vm3, %v2
    %s5 = scalar_lea.vmem %s0, 7
    %v6 = vld [vmem:[%s5] sm:$0x1]
    %7 = vrot.lane.b32.xlu0 %v6, 42
    %v8 = vpop.permute.xlu0 %7
    %vm9 = vcmask 392528
    %10 = vst.msk [vmem:[#allocation0] sm:$0x1] %vm9, %v8
    %s11 = scalar_lea.vmem %s0, 6
    %v12 = vld [vmem:[%s11] sm:$0x1]
    %13 = vrot.lane.b32.xlu0 %v12, 36
    %v14 = vpop.permute.xlu0 %13
    %vm15 = vcmask 343328
    %16 = vst.msk [vmem:[#allocation0] sm:$0x1] %vm15, %v14
    %s17 = scalar_lea.vmem %s0, 5
    %v18 = vld [vmem:[%s17] sm:$0x1]
    %19 = vrot.lane.b32.xlu0 %v18, 30
    %v20 = vpop.permute.xlu0 %19
    %vm21 = vcmask 294128
    %22 = vst.msk [vmem:[#allocation0] sm:$0x1] %vm21, %v20
    %s23 = scalar_lea.vmem %s0, 4
    %v24 = vld [vmem:[%s23] sm:$0x1]
    %25 = vrot.lane.b32.xlu0 %v24, 24
    %v26 = vpop.permute.xlu0 %25
    %vm27 = vcmask 244928
    %28 = vst.msk [vmem:[#allocation0] sm:$0x1] %vm27, %v26
    %s29 = scalar_lea.vmem %s0, 3
    %v30 = vld [vmem:[%s29] sm:$0x1]
    %31 = vrot.lane.b32.xlu0 %v30, 18
    %v32 = vpop.permute.xlu0 %31
    %vm33 = vcmask 195728
    %34 = vst.msk [vmem:[#allocation0] sm:$0x1] %vm33, %v32
    %s35 = scalar_lea.vmem %s0, 2
    %v36 = vld [vmem:[%s35] sm:$0x1]
    %37 = vrot.lane.b32.xlu0 %v36, 12
    %v38 = vpop.permute.xlu0 %37
    %vm39 = vcmask 146528
    %40 = vst.msk [vmem:[#allocation0] sm:$0x1] %vm39, %v38
    %s41 = scalar_lea.vmem %s0, 1
    %v42 = vld [vmem:[%s41] sm:$0x1]
    %43 = vrot.lane.b32.xlu0 %v42, 6
    %v44 = vpop.permute.xlu0 %43
    %vm45 = vcmask 97328
    %46 = vst.msk [vmem:[#allocation0] sm:$0x1] %vm45, %v44
    %s48 = sshll.u32 1, 1
    %s49 = ssub.s32 %s48, 1
    %v51 = vld [vmem:[#allocation0] sm:%s49]
    %s52 = sshll.u32 1, 1
    %s53 = ssub.s32 %s52, 1
    %54 = vst [vmem:[%s1] sm:%s53] %v51

// kernel: predictive_vae_forward.1
$region0: #{predictive_vae_forward.1}
  #allocation0 [shape = 'u32[]', space=smem, size = 0x4, offset = 0x4, fixed_abs, tag = 'smem constant byte address 0x4 - core index']
  #allocation1 [shape = 'u32[144,128]{1,0:T(1,128)}', space=vmem, size = 0x12000, scoped, tag = 'internal scratch']
  %s0 = inlined_call_operand.vmem [shape: f32[2,8,128], index: 0, kind: input, shape index: {}]
  %s1 = inlined_call_operand.vmem [shape: f32[2,1,16], index: 1, kind: input, shape index: {}]
  %s2 = inlined_call_operand.vmem [shape: f32[2,128,512], index: 2, kind: input, shape index: {}]
  %s3 = inlined_call_operand.vmem [shape: f32[1,512], index: 3, kind: input, shape index: {}]
  %s4 = inlined_call_operand.vmem [shape: f32[2,128,256], index: 4, kind: input, shape index: {}]
  %s5 = inlined_call_operand.vmem [shape: f32[1,256], index: 5, kind: input, shape index: {}]
  %s6 = inlined_call_operand.vmem [shape: f32[128,256], index: 6, kind: input, shape index: {}]
  %s7 = inlined_call_operand.vmem [shape: f32[1,256], index: 7, kind: input, shape index: {}]
  %s8 = inlined_call_operand.vmem [shape: f32[512,128], index: 8, kind: input, shape index: {}]
  %s9 = inlined_call_operand.vmem [shape: f32[4,8], index: 9, kind: input, shape index: {}]
  %s10 = inlined_call_operand.vmem [shape: f32[512,48], index: 10, kind: input, shape index: {}]
  %s11 = inlined_call_operand.vmem [shape: f32[1,48], index: 11, kind: input, shape index: {}]
  %s12 = inlined_call_operand.vmem [shape: f32[5,8], index: 12, kind: input, shape index: {}]
  %s13 = inlined_call_operand.vmem [shape: f32[5,48], index: 13, kind: input, shape index: {}]
  %s14 = inlined_call_operand.vmem [shape: f32[256,64], index: 14, kind: input, shape index: {}]
  %s15 = inlined_call_operand.vmem [shape: f32[1,64], index: 15, kind: input, shape index: {}]
  %s16 = inlined_call_operand.vmem [shape: f32[3,4], index: 16, kind: input, shape index: {}]
  %s17 = inlined_call_operand.vmem [shape: f32[3,64], index: 17, kind: input, shape index: {}]
  %s18 = inlined_call_operand.vmem [shape: f32[5,48,32], index: 18, kind: input, shape index: {}]
  %s19 = inlined_call_operand.vmem [shape: f32[3,64,32], index: 19, kind: input, shape index: {}]
  %s20 = inlined_call_operand.vmem [shape: f32[1,32], index: 20, kind: input, shape index: {}]
  %s21 = inlined_call_operand.vmem [shape: f32[16,128], index: 21, kind: input, shape index: {}]
  %s22 = inlined_call_operand.vmem [shape: f32[1,128], index: 22, kind: input, shape index: {}]
  %s23 = inlined_call_operand.vmem [shape: f32[128,256], index: 23, kind: input, shape index: {}]
  %s24 = inlined_call_operand.hbm [shape: f32[2,1,16], index: 24, kind: output, shape index: {0}]
  %s25 = inlined_call_operand.hbm [shape: f32[2,1,16], index: 25, kind: output, shape index: {1}]
  %s26 = inlined_call_operand.hbm [shape: f32[2,1,16], index: 26, kind: output, shape index: {2}]
  %s27 = inlined_call_operand.vmem [shape: f32[2,1,256], index: 27, kind: output, shape index: {3}]
  %28 = xla_tuple %s24, %s25, %s26, %s27
  %s29 = sld [smem:[#allocation0]]
  $region153: #{predictive_vae_forward.1} parent=0
    _
  %s31 = ssub.s32 1, %s29
  %s32 = scalar_select 0, %s31, %s29
  $region1: #{predictive_vae_forward.1} parent=0
    #allocation2 [shape = 'u8[1024]{0}', space=vmem, size = 0x400, scoped, tag = 'output window, operand 0']
    #allocation3 [shape = 's32[2]{0}', space=sflag, size = 0x8, scoped, tag = 'scoped memory for predictive_vae_forward.1']
    #allocation4 [shape = 'u8[1024]{0}', space=vmem, size = 0x400, scoped, tag = 'output window, operand 1']
    #allocation5 [shape = 's32[2]{0}', space=sflag, size = 0x8, scoped, tag = 'scoped memory for predictive_vae_forward.1']
    #allocation6 [shape = 'u8[1024]{0}', space=vmem, size = 0x400, scoped, tag = 'output window, operand 2']
    %33 = vsyncpa [#allocation3], 0
    %s34 = scalar_lea.sflag [#allocation3], 1
    %35 = vsyncpa %s34, 0
    %36 = vsyncpa [#allocation5], 0
    %s37 = scalar_lea.sflag [#allocation5], 1
    %38 = vsyncpa %s37, 0
    loop: start=0, step=1, limit=4
    $region2: #{predictive_vae_forward.1} parent=1 // loop_pre_header
      _
    $region3: #{predictive_vae_forward.1} parent=1 // loop_header
      %s40 = sphi 0, %s44
      %p41 = scmp.ge.s32.totalorder %s40, 4
      %s50 = sphi 0, %s52
      %s53 = sphi 0, %s50
      %s54 = sphi 0, %s53
      %s70 = sphi 0, %s54
      %s76 = sphi 0, %s78
      %s79 = sphi 0, %s76
      %s80 = sphi 0, %s79
      %s96 = sphi 0, %s80
      %s100 = sphi 0, %s100
      %s102 = sphi 0, %s100
      %s103 = sphi 0, %s102
      %s117 = sphi 0, %s103
      %s121 = sphi 0, %s121
      %s123 = sphi 0, %s121
      %s124 = sphi 0, %s123
      %s138 = sphi 0, %s124
      %s142 = sphi 0, %s142
      %s144 = sphi 0, %s142
      %s145 = sphi 0, %s144
      %s159 = sphi 0, %s145
      %s163 = sphi 0, %s163
      %s165 = sphi 0, %s163
      %s166 = sphi 0, %s165
      %s180 = sphi 0, %s166
      %s184 = sphi 0, %s184
      %s186 = sphi 0, %s184
      %s187 = sphi 0, %s186
      %s201 = sphi 0, %s187
      %s205 = sphi 0, %s205
      %s207 = sphi 0, %s205
      %s208 = sphi 0, %s207
      %s222 = sphi 0, %s208
      %s226 = sphi 0, %s226
      %s228 = sphi 0, %s226
      %s229 = sphi 0, %s228
      %s243 = sphi 0, %s229
      %s247 = sphi 0, %s247
      %s249 = sphi 0, %s247
      %s250 = sphi 0, %s249
      %s264 = sphi 0, %s250
      %s268 = sphi 0, %s268
      %s270 = sphi 0, %s268
      %s271 = sphi 0, %s270
      %s285 = sphi 0, %s271
      %s289 = sphi 0, %s289
      %s291 = sphi 0, %s289
      %s292 = sphi 0, %s291
      %s306 = sphi 0, %s292
      %s310 = sphi 0, %s310
      %s312 = sphi 0, %s310
      %s313 = sphi 0, %s312
      %s327 = sphi 0, %s313
      %s331 = sphi 0, %s331
      %s333 = sphi 0, %s331
      %s334 = sphi 0, %s333
      %s348 = sphi 0, %s334
      %s352 = sphi 0, %s352
      %s354 = sphi 0, %s352
      %s355 = sphi 0, %s354
      %s369 = sphi 0, %s355
      %s373 = sphi 0, %s373
      %s375 = sphi 0, %s373
      %s376 = sphi 0, %s375
      %s390 = sphi 0, %s376
      %s394 = sphi 0, %s394
      %s396 = sphi 0, %s394
      %s397 = sphi 0, %s396
      %s411 = sphi 0, %s397
      %s415 = sphi 0, %s415
      %s417 = sphi 0, %s415
      %s418 = sphi 0, %s417
      %s432 = sphi 0, %s418
      %s436 = sphi 0, %s436
      %s438 = sphi 0, %s436
      %s439 = sphi 0, %s438
      %s453 = sphi 0, %s439
      %s457 = sphi 0, %s457
      %s459 = sphi 0, %s457
      %s460 = sphi 0, %s459
      %s474 = sphi 0, %s460
      %s478 = sphi 0, %s478
      %s480 = sphi 0, %s478
      %s481 = sphi 0, %s480
      %s495 = sphi 0, %s481
      %s499 = sphi 0, %s499
      %s501 = sphi 0, %s499
      %s502 = sphi 0, %s501
      %s516 = sphi 0, %s502
      %s520 = sphi 0, %s520
      %s522 = sphi 0, %s520
      %s523 = sphi 0, %s522
      %s537 = sphi 0, %s523
      %s541 = sphi 0, %s541
      %s543 = sphi 0, %s541
      %s544 = sphi 0, %s543
      %s558 = sphi 0, %s544
      %s564 = sphi 0, %s566
      %s567 = sphi 0, %s564
      %s568 = sphi 0, %s567
      %s584 = sphi 0, %s568
      %s590 = sphi 0, %s592
      %s593 = sphi 0, %s590
      %s594 = sphi 0, %s593
      %s610 = sphi 0, %s594
      %s616 = sphi 0, %s618
      %s619 = sphi 0, %s616
      %s620 = sphi 0, %s619
      %s636 = sphi 0, %s620
      %s642 = sphi 0, %s644
      %s645 = sphi 0, %s642
      %s646 = sphi 0, %s645
      %s662 = sphi 0, %s646
    $region4: #{predictive_vae_forward.1} parent=1 // loop_header_branch
      %43 = sbr.rel (%p41) target = $region8
    $region5: #{predictive_vae_forward.1} parent=1 // loop_body
      %s45 = ssub.s32 %s40, 1
      %s46 = ssub.s32 %s40, 2
      %s47 = sadd.s32 %s40, 1
      %s48 = ssub.s32 %s40, %s47
      %p49 = scmp.eq.s32.totalorder %s48, 0
      %s51 = sadd.s32 %s50, 1
      %s52 = scalar_select %p49, %s50, %s51
      %p55 = pneg %p49
      %p56 = scmp.eq.s32.totalorder %s40, 1
      %p57 = por %p55, %p56
      %p58 = scmp.ne.s32.totalorder %s50, %s53
      %p59 = scmp.eq.s32.totalorder %s40, 0
      %p60 = por %p58, %p59
      %p61 = scmp.ne.s32.totalorder %s50, %s53
      %p62 = scmp.eq.s32.totalorder %s45, 1
      %p63 = por %p61, %p62
      %p64 = scmp.ne.s32.totalorder %s53, %s54
      %p65 = scmp.eq.s32.totalorder %s45, 0
      %p66 = por %p64, %p65
      %p67 = scmp.ne.s32.totalorder %s53, %s54
      %p68 = scmp.eq.s32.totalorder %s46, 1
      %p69 = por %p67, %p68
      %p71 = scmp.ne.s32.totalorder %s54, %s70
      %p72 = scmp.eq.s32.totalorder %s46, 0
      %p73 = por %p71, %p72
      %s74 = ssub.s32 %s40, %s47
      %p75 = scmp.eq.s32.totalorder %s74, 0
      %s77 = sadd.s32 %s76, 1
      %s78 = scalar_select %p75, %s76, %s77
      %p81 = pneg %p75
      %p82 = scmp.eq.s32.totalorder %s40, 1
      %p83 = por %p81, %p82
      %p84 = scmp.ne.s32.totalorder %s76, %s79
      %p85 = scmp.eq.s32.totalorder %s40, 0
      %p86 = por %p84, %p85
      %p87 = scmp.ne.s32.totalorder %s76, %s79
      %p88 = scmp.eq.s32.totalorder %s45, 1
      %p89 = por %p87, %p88
      %p90 = scmp.ne.s32.totalorder %s79, %s80
      %p91 = scmp.eq.s32.totalorder %s45, 0
      %p92 = por %p90, %p91
      %p93 = scmp.ne.s32.totalorder %s79, %s80
      %p94 = scmp.eq.s32.totalorder %s46, 1
      %p95 = por %p93, %p94
      %p97 = scmp.ne.s32.totalorder %s80, %s96
      %p98 = scmp.eq.s32.totalorder %s46, 0
      %p99 = por %p97, %p98
      %s101 = sadd.s32 %s100, 1
      %p104 = scmp.eq.s32.totalorder %s40, 1
      %p105 = scmp.ne.s32.totalorder %s100, %s102
      %p106 = scmp.eq.s32.totalorder %s40, 0
      %p107 = por %p105, %p106
      %p108 = scmp.ne.s32.totalorder %s100, %s102
      %p109 = scmp.eq.s32.totalorder %s45, 1
      %p110 = por %p108, %p109
      %p111 = scmp.ne.s32.totalorder %s102, %s103
      %p112 = scmp.eq.s32.totalorder %s45, 0
      %p113 = por %p111, %p112
      %p114 = scmp.ne.s32.totalorder %s102, %s103
      %p115 = scmp.eq.s32.totalorder %s46, 1
      %p116 = por %p114, %p115
      %p118 = scmp.ne.s32.totalorder %s103, %s117
      %p119 = scmp.eq.s32.totalorder %s46, 0
      %p120 = por %p118, %p119
      %s122 = sadd.s32 %s121, 1
      %p125 = scmp.eq.s32.totalorder %s40, 1
      %p126 = scmp.ne.s32.totalorder %s121, %s123
      %p127 = scmp.eq.s32.totalorder %s40, 0
      %p128 = por %p126, %p127
      %p129 = scmp.ne.s32.totalorder %s121, %s123
      %p130 = scmp.eq.s32.totalorder %s45, 1
      %p131 = por %p129, %p130
      %p132 = scmp.ne.s32.totalorder %s123, %s124
      %p133 = scmp.eq.s32.totalorder %s45, 0
      %p134 = por %p132, %p133
      %p135 = scmp.ne.s32.totalorder %s123, %s124
      %p136 = scmp.eq.s32.totalorder %s46, 1
      %p137 = por %p135, %p136
      %p139 = scmp.ne.s32.totalorder %s124, %s138
      %p140 = scmp.eq.s32.totalorder %s46, 0
      %p141 = por %p139, %p140
      %s143 = sadd.s32 %s142, 1
      %p146 = scmp.eq.s32.totalorder %s40, 1
      %p147 = scmp.ne.s32.totalorder %s142, %s144
      %p148 = scmp.eq.s32.totalorder %s40, 0
      %p149 = por %p147, %p148
      %p150 = scmp.ne.s32.totalorder %s142, %s144
      %p151 = scmp.eq.s32.totalorder %s45, 1
      %p152 = por %p150, %p151
      %p153 = scmp.ne.s32.totalorder %s144, %s145
      %p154 = scmp.eq.s32.totalorder %s45, 0
      %p155 = por %p153, %p154
      %p156 = scmp.ne.s32.totalorder %s144, %s145
      %p157 = scmp.eq.s32.totalorder %s46, 1
      %p158 = por %p156, %p157
      %p160 = scmp.ne.s32.totalorder %s145, %s159
      %p161 = scmp.eq.s32.totalorder %s46, 0
      %p162 = por %p160, %p161
      %s164 = sadd.s32 %s163, 1
      %p167 = scmp.eq.s32.totalorder %s40, 1
      %p168 = scmp.ne.s32.totalorder %s163, %s165
      %p169 = scmp.eq.s32.totalorder %s40, 0
      %p170 = por %p168, %p169
      %p171 = scmp.ne.s32.totalorder %s163, %s165
      %p172 = scmp.eq.s32.totalorder %s45, 1
      %p173 = por %p171, %p172
      %p174 = scmp.ne.s32.totalorder %s165, %s166
      %p175 = scmp.eq.s32.totalorder %s45, 0
      %p176 = por %p174, %p175
      %p177 = scmp.ne.s32.totalorder %s165, %s166
      %p178 = scmp.eq.s32.totalorder %s46, 1
      %p179 = por %p177, %p178
      %p181 = scmp.ne.s32.totalorder %s166, %s180
      %p182 = scmp.eq.s32.totalorder %s46, 0
      %p183 = por %p181, %p182
      %s185 = sadd.s32 %s184, 1
      %p188 = scmp.eq.s32.totalorder %s40, 1
      %p189 = scmp.ne.s32.totalorder %s184, %s186
      %p190 = scmp.eq.s32.totalorder %s40, 0
      %p191 = por %p189, %p190
      %p192 = scmp.ne.s32.totalorder %s184, %s186
      %p193 = scmp.eq.s32.totalorder %s45, 1
      %p194 = por %p192, %p193
      %p195 = scmp.ne.s32.totalorder %s186, %s187
      %p196 = scmp.eq.s32.totalorder %s45, 0
      %p197 = por %p195, %p196
      %p198 = scmp.ne.s32.totalorder %s186, %s187
      %p199 = scmp.eq.s32.totalorder %s46, 1
      %p200 = por %p198, %p199
      %p202 = scmp.ne.s32.totalorder %s187, %s201
      %p203 = scmp.eq.s32.totalorder %s46, 0
      %p204 = por %p202, %p203
      %s206 = sadd.s32 %s205, 1
      %p209 = scmp.eq.s32.totalorder %s40, 1
      %p210 = scmp.ne.s32.totalorder %s205, %s207
      %p211 = scmp.eq.s32.totalorder %s40, 0
      %p212 = por %p210, %p211
      %p213 = scmp.ne.s32.totalorder %s205, %s207
      %p214 = scmp.eq.s32.totalorder %s45, 1
      %p215 = por %p213, %p214
      %p216 = scmp.ne.s32.totalorder %s207, %s208
      %p217 = scmp.eq.s32.totalorder %s45, 0
      %p218 = por %p216, %p217
      %p219 = scmp.ne.s32.totalorder %s207, %s208
      %p220 = scmp.eq.s32.totalorder %s46, 1
      %p221 = por %p219, %p220
      %p223 = scmp.ne.s32.totalorder %s208, %s222
      %p224 = scmp.eq.s32.totalorder %s46, 0
      %p225 = por %p223, %p224
      %s227 = sadd.s32 %s226, 1
      %p230 = scmp.eq.s32.totalorder %s40, 1
      %p231 = scmp.ne.s32.totalorder %s226, %s228
      %p232 = scmp.eq.s32.totalorder %s40, 0
      %p233 = por %p231, %p232
      %p234 = scmp.ne.s32.totalorder %s226, %s228
      %p235 = scmp.eq.s32.totalorder %s45, 1
      %p236 = por %p234, %p235
      %p237 = scmp.ne.s32.totalorder %s228, %s229
      %p238 = scmp.eq.s32.totalorder %s45, 0
      %p239 = por %p237, %p238
      %p240 = scmp.ne.s32.totalorder %s228, %s229
      %p241 = scmp.eq.s32.totalorder %s46, 1
      %p242 = por %p240, %p241
      %p244 = scmp.ne.s32.totalorder %s229, %s243
      %p245 = scmp.eq.s32.totalorder %s46, 0
      %p246 = por %p244, %p245
      %s248 = sadd.s32 %s247, 1
      %p251 = scmp.eq.s32.totalorder %s40, 1
      %p252 = scmp.ne.s32.totalorder %s247, %s249
      %p253 = scmp.eq.s32.totalorder %s40, 0
      %p254 = por %p252, %p253
      %p255 = scmp.ne.s32.totalorder %s247, %s249
      %p256 = scmp.eq.s32.totalorder %s45, 1
      %p257 = por %p255, %p256
      %p258 = scmp.ne.s32.totalorder %s249, %s250
      %p259 = scmp.eq.s32.totalorder %s45, 0
      %p260 = por %p258, %p259
      %p261 = scmp.ne.s32.totalorder %s249, %s250
      %p262 = scmp.eq.s32.totalorder %s46, 1
      %p263 = por %p261, %p262
      %p265 = scmp.ne.s32.totalorder %s250, %s264
      %p266 = scmp.eq.s32.totalorder %s46, 0
      %p267 = por %p265, %p266
      %s269 = sadd.s32 %s268, 1
      %p272 = scmp.eq.s32.totalorder %s40, 1
      %p273 = scmp.ne.s32.totalorder %s268, %s270
      %p274 = scmp.eq.s32.totalorder %s40, 0
      %p275 = por %p273, %p274
      %p276 = scmp.ne.s32.totalorder %s268, %s270
      %p277 = scmp.eq.s32.totalorder %s45, 1
      %p278 = por %p276, %p277
      %p279 = scmp.ne.s32.totalorder %s270, %s271
      %p280 = scmp.eq.s32.totalorder %s45, 0
      %p281 = por %p279, %p280
      %p282 = scmp.ne.s32.totalorder %s270, %s271
      %p283 = scmp.eq.s32.totalorder %s46, 1
      %p284 = por %p282, %p283
      %p286 = scmp.ne.s32.totalorder %s271, %s285
      %p287 = scmp.eq.s32.totalorder %s46, 0
      %p288 = por %p286, %p287
      %s290 = sadd.s32 %s289, 1
      %p293 = scmp.eq.s32.totalorder %s40, 1
      %p294 = scmp.ne.s32.totalorder %s289, %s291
      %p295 = scmp.eq.s32.totalorder %s40, 0
      %p296 = por %p294, %p295
      %p297 = scmp.ne.s32.totalorder %s289, %s291
      %p298 = scmp.eq.s32.totalorder %s45, 1
      %p299 = por %p297, %p298
      %p300 = scmp.ne.s32.totalorder %s291, %s292
      %p301 = scmp.eq.s32.totalorder %s45, 0
      %p302 = por %p300, %p301
      %p303 = scmp.ne.s32.totalorder %s291, %s292
      %p304 = scmp.eq.s32.totalorder %s46, 1
      %p305 = por %p303, %p304
      %p307 = scmp.ne.s32.totalorder %s292, %s306
      %p308 = scmp.eq.s32.totalorder %s46, 0
      %p309 = por %p307, %p308
      %s311 = sadd.s32 %s310, 1
      %p314 = scmp.eq.s32.totalorder %s40, 1
      %p315 = scmp.ne.s32.totalorder %s310, %s312
      %p316 = scmp.eq.s32.totalorder %s40, 0
      %p317 = por %p315, %p316
      %p318 = scmp.ne.s32.totalorder %s310, %s312
      %p319 = scmp.eq.s32.totalorder %s45, 1
      %p320 = por %p318, %p319
      %p321 = scmp.ne.s32.totalorder %s312, %s313
      %p322 = scmp.eq.s32.totalorder %s45, 0
      %p323 = por %p321, %p322
      %p324 = scmp.ne.s32.totalorder %s312, %s313
      %p325 = scmp.eq.s32.totalorder %s46, 1
      %p326 = por %p324, %p325
      %p328 = scmp.ne.s32.totalorder %s313, %s327
      %p329 = scmp.eq.s32.totalorder %s46, 0
      %p330 = por %p328, %p329
      %s332 = sadd.s32 %s331, 1
      %p335 = scmp.eq.s32.totalorder %s40, 1
      %p336 = scmp.ne.s32.totalorder %s331, %s333
      %p337 = scmp.eq.s32.totalorder %s40, 0
      %p338 = por %p336, %p337
      %p339 = scmp.ne.s32.totalorder %s331, %s333
      %p340 = scmp.eq.s32.totalorder %s45, 1
      %p341 = por %p339, %p340
      %p342 = scmp.ne.s32.totalorder %s333, %s334
      %p343 = scmp.eq.s32.totalorder %s45, 0
      %p344 = por %p342, %p343
      %p345 = scmp.ne.s32.totalorder %s333, %s334
      %p346 = scmp.eq.s32.totalorder %s46, 1
      %p347 = por %p345, %p346
      %p349 = scmp.ne.s32.totalorder %s334, %s348
      %p350 = scmp.eq.s32.totalorder %s46, 0
      %p351 = por %p349, %p350
      %s353 = sadd.s32 %s352, 1
      %p356 = scmp.eq.s32.totalorder %s40, 1
      %p357 = scmp.ne.s32.totalorder %s352, %s354
      %p358 = scmp.eq.s32.totalorder %s40, 0
      %p359 = por %p357, %p358
      %p360 = scmp.ne.s32.totalorder %s352, %s354
      %p361 = scmp.eq.s32.totalorder %s45, 1
      %p362 = por %p360, %p361
      %p363 = scmp.ne.s32.totalorder %s354, %s355
      %p364 = scmp.eq.s32.totalorder %s45, 0
      %p365 = por %p363, %p364
      %p366 = scmp.ne.s32.totalorder %s354, %s355
      %p367 = scmp.eq.s32.totalorder %s46, 1
      %p368 = por %p366, %p367
      %p370 = scmp.ne.s32.totalorder %s355, %s369
      %p371 = scmp.eq.s32.totalorder %s46, 0
      %p372 = por %p370, %p371
      %s374 = sadd.s32 %s373, 1
      %p377 = scmp.eq.s32.totalorder %s40, 1
      %p378 = scmp.ne.s32.totalorder %s373, %s375
      %p379 = scmp.eq.s32.totalorder %s40, 0
      %p380 = por %p378, %p379
      %p381 = scmp.ne.s32.totalorder %s373, %s375
      %p382 = scmp.eq.s32.totalorder %s45, 1
      %p383 = por %p381, %p382
      %p384 = scmp.ne.s32.totalorder %s375, %s376
      %p385 = scmp.eq.s32.totalorder %s45, 0
      %p386 = por %p384, %p385
      %p387 = scmp.ne.s32.totalorder %s375, %s376
      %p388 = scmp.eq.s32.totalorder %s46, 1
      %p389 = por %p387, %p388
      %p391 = scmp.ne.s32.totalorder %s376, %s390
      %p392 = scmp.eq.s32.totalorder %s46, 0
      %p393 = por %p391, %p392
      %s395 = sadd.s32 %s394, 1
      %p398 = scmp.eq.s32.totalorder %s40, 1
      %p399 = scmp.ne.s32.totalorder %s394, %s396
      %p400 = scmp.eq.s32.totalorder %s40, 0
      %p401 = por %p399, %p400
      %p402 = scmp.ne.s32.totalorder %s394, %s396
      %p403 = scmp.eq.s32.totalorder %s45, 1
      %p404 = por %p402, %p403
      %p405 = scmp.ne.s32.totalorder %s396, %s397
      %p406 = scmp.eq.s32.totalorder %s45, 0
      %p407 = por %p405, %p406
      %p408 = scmp.ne.s32.totalorder %s396, %s397
      %p409 = scmp.eq.s32.totalorder %s46, 1
      %p410 = por %p408, %p409
      %p412 = scmp.ne.s32.totalorder %s397, %s411
      %p413 = scmp.eq.s32.totalorder %s46, 0
      %p414 = por %p412, %p413
      %s416 = sadd.s32 %s415, 1
      %p419 = scmp.eq.s32.totalorder %s40, 1
      %p420 = scmp.ne.s32.totalorder %s415, %s417
      %p421 = scmp.eq.s32.totalorder %s40, 0
      %p422 = por %p420, %p421
      %p423 = scmp.ne.s32.totalorder %s415, %s417
      %p424 = scmp.eq.s32.totalorder %s45, 1
      %p425 = por %p423, %p424
      %p426 = scmp.ne.s32.totalorder %s417, %s418
      %p427 = scmp.eq.s32.totalorder %s45, 0
      %p428 = por %p426, %p427
      %p429 = scmp.ne.s32.totalorder %s417, %s418
      %p430 = scmp.eq.s32.totalorder %s46, 1
      %p431 = por %p429, %p430
      %p433 = scmp.ne.s32.totalorder %s418, %s432
      %p434 = scmp.eq.s32.totalorder %s46, 0
      %p435 = por %p433, %p434
      %s437 = sadd.s32 %s436, 1
      %p440 = scmp.eq.s32.totalorder %s40, 1
      %p441 = scmp.ne.s32.totalorder %s436, %s438
      %p442 = scmp.eq.s32.totalorder %s40, 0
      %p443 = por %p441, %p442
      %p444 = scmp.ne.s32.totalorder %s436, %s438
      %p445 = scmp.eq.s32.totalorder %s45, 1
      %p446 = por %p444, %p445
      %p447 = scmp.ne.s32.totalorder %s438, %s439
      %p448 = scmp.eq.s32.totalorder %s45, 0
      %p449 = por %p447, %p448
      %p450 = scmp.ne.s32.totalorder %s438, %s439
      %p451 = scmp.eq.s32.totalorder %s46, 1
      %p452 = por %p450, %p451
      %p454 = scmp.ne.s32.totalorder %s439, %s453
      %p455 = scmp.eq.s32.totalorder %s46, 0
      %p456 = por %p454, %p455
      %s458 = sadd.s32 %s457, 1
      %p461 = scmp.eq.s32.totalorder %s40, 1
      %p462 = scmp.ne.s32.totalorder %s457, %s459
      %p463 = scmp.eq.s32.totalorder %s40, 0
      %p464 = por %p462, %p463
      %p465 = scmp.ne.s32.totalorder %s457, %s459
      %p466 = scmp.eq.s32.totalorder %s45, 1
      %p467 = por %p465, %p466
      %p468 = scmp.ne.s32.totalorder %s459, %s460
      %p469 = scmp.eq.s32.totalorder %s45, 0
      %p470 = por %p468, %p469
      %p471 = scmp.ne.s32.totalorder %s459, %s460
      %p472 = scmp.eq.s32.totalorder %s46, 1
      %p473 = por %p471, %p472
      %p475 = scmp.ne.s32.totalorder %s460, %s474
      %p476 = scmp.eq.s32.totalorder %s46, 0
      %p477 = por %p475, %p476
      %s479 = sadd.s32 %s478, 1
      %p482 = scmp.eq.s32.totalorder %s40, 1
      %p483 = scmp.ne.s32.totalorder %s478, %s480
      %p484 = scmp.eq.s32.totalorder %s40, 0
      %p485 = por %p483, %p484
      %p486 = scmp.ne.s32.totalorder %s478, %s480
      %p487 = scmp.eq.s32.totalorder %s45, 1
      %p488 = por %p486, %p487
      %p489 = scmp.ne.s32.totalorder %s480, %s481
      %p490 = scmp.eq.s32.totalorder %s45, 0
      %p491 = por %p489, %p490
      %p492 = scmp.ne.s32.totalorder %s480, %s481
      %p493 = scmp.eq.s32.totalorder %s46, 1
      %p494 = por %p492, %p493
      %p496 = scmp.ne.s32.totalorder %s481, %s495
      %p497 = scmp.eq.s32.totalorder %s46, 0
      %p498 = por %p496, %p497
      %s500 = sadd.s32 %s499, 1
      %p503 = scmp.eq.s32.totalorder %s40, 1
      %p504 = scmp.ne.s32.totalorder %s499, %s501
      %p505 = scmp.eq.s32.totalorder %s40, 0
      %p506 = por %p504, %p505
      %p507 = scmp.ne.s32.totalorder %s499, %s501
      %p508 = scmp.eq.s32.totalorder %s45, 1
      %p509 = por %p507, %p508
      %p510 = scmp.ne.s32.totalorder %s501, %s502
      %p511 = scmp.eq.s32.totalorder %s45, 0
      %p512 = por %p510, %p511
      %p513 = scmp.ne.s32.totalorder %s501, %s502
      %p514 = scmp.eq.s32.totalorder %s46, 1
      %p515 = por %p513, %p514
      %p517 = scmp.ne.s32.totalorder %s502, %s516
      %p518 = scmp.eq.s32.totalorder %s46, 0
      %p519 = por %p517, %p518
      %s521 = sadd.s32 %s520, 1
      %p524 = scmp.eq.s32.totalorder %s40, 1
      %p525 = scmp.ne.s32.totalorder %s520, %s522
      %p526 = scmp.eq.s32.totalorder %s40, 0
      %p527 = por %p525, %p526
      %p528 = scmp.ne.s32.totalorder %s520, %s522
      %p529 = scmp.eq.s32.totalorder %s45, 1
      %p530 = por %p528, %p529
      %p531 = scmp.ne.s32.totalorder %s522, %s523
      %p532 = scmp.eq.s32.totalorder %s45, 0
      %p533 = por %p531, %p532
      %p534 = scmp.ne.s32.totalorder %s522, %s523
      %p535 = scmp.eq.s32.totalorder %s46, 1
      %p536 = por %p534, %p535
      %p538 = scmp.ne.s32.totalorder %s523, %s537
      %p539 = scmp.eq.s32.totalorder %s46, 0
      %p540 = por %p538, %p539
      %s542 = sadd.s32 %s541, 1
      %p545 = scmp.eq.s32.totalorder %s40, 1
      %p546 = scmp.ne.s32.totalorder %s541, %s543
      %p547 = scmp.eq.s32.totalorder %s40, 0
      %p548 = por %p546, %p547
      %p549 = scmp.ne.s32.totalorder %s541, %s543
      %p550 = scmp.eq.s32.totalorder %s45, 1
      %p551 = por %p549, %p550
      %p552 = scmp.ne.s32.totalorder %s543, %s544
      %p553 = scmp.eq.s32.totalorder %s45, 0
      %p554 = por %p552, %p553
      %p555 = scmp.ne.s32.totalorder %s543, %s544
      %p556 = scmp.eq.s32.totalorder %s46, 1
      %p557 = por %p555, %p556
      %p559 = scmp.ne.s32.totalorder %s544, %s558
      %p560 = scmp.eq.s32.totalorder %s46, 0
      %p561 = por %p559, %p560
      %s562 = ssub.s32 %s40, %s47
      %p563 = scmp.eq.s32.totalorder %s562, 0
      %s565 = sadd.s32 %s564, 1
      %s566 = scalar_select %p563, %s564, %s565
      %p569 = pneg %p563
      %p570 = scmp.eq.s32.totalorder %s40, 1
      %p571 = por %p569, %p570
      %p572 = scmp.ne.s32.totalorder %s564, %s567
      %p573 = scmp.eq.s32.totalorder %s40, 0
      %p574 = por %p572, %p573
      %p575 = scmp.ne.s32.totalorder %s564, %s567
      %p576 = scmp.eq.s32.totalorder %s45, 1
      %p577 = por %p575, %p576
      %p578 = scmp.ne.s32.totalorder %s567, %s568
      %p579 = scmp.eq.s32.totalorder %s45, 0
      %p580 = por %p578, %p579
      %p581 = scmp.ne.s32.totalorder %s567, %s568
      %p582 = scmp.eq.s32.totalorder %s46, 1
      %p583 = por %p581, %p582
      %p585 = scmp.ne.s32.totalorder %s568, %s584
      %p586 = scmp.eq.s32.totalorder %s46, 0
      %p587 = por %p585, %p586
      %s588 = ssub.s32 %s40, %s47
      %p589 = scmp.eq.s32.totalorder %s588, 0
      %s591 = sadd.s32 %s590, 1
      %s592 = scalar_select %p589, %s590, %s591
      %p595 = pneg %p589
      %p596 = scmp.eq.s32.totalorder %s40, 1
      %p597 = por %p595, %p596
      %p598 = scmp.ne.s32.totalorder %s590, %s593
      %p599 = scmp.eq.s32.totalorder %s40, 0
      %p600 = por %p598, %p599
      %p601 = scmp.ne.s32.totalorder %s590, %s593
      %p602 = scmp.eq.s32.totalorder %s45, 1
      %p603 = por %p601, %p602
      %p604 = scmp.ne.s32.totalorder %s593, %s594
      %p605 = scmp.eq.s32.totalorder %s45, 0
      %p606 = por %p604, %p605
      %p607 = scmp.ne.s32.totalorder %s593, %s594
      %p608 = scmp.eq.s32.totalorder %s46, 1
      %p609 = por %p607, %p608
      %p611 = scmp.ne.s32.totalorder %s594, %s610
      %p612 = scmp.eq.s32.totalorder %s46, 0
      %p613 = por %p611, %p612
      %s614 = ssub.s32 %s40, %s47
      %p615 = scmp.eq.s32.totalorder %s614, 0
      %s617 = sadd.s32 %s616, 1
      %s618 = scalar_select %p615, %s616, %s617
      %p621 = pneg %p615
      %p622 = scmp.eq.s32.totalorder %s40, 1
      %p623 = por %p621, %p622
      %p624 = scmp.ne.s32.totalorder %s616, %s619
      %p625 = scmp.eq.s32.totalorder %s40, 0
      %p626 = por %p624, %p625
      %p627 = scmp.ne.s32.totalorder %s616, %s619
      %p628 = scmp.eq.s32.totalorder %s45, 1
      %p629 = por %p627, %p628
      %p630 = scmp.ne.s32.totalorder %s619, %s620
      %p631 = scmp.eq.s32.totalorder %s45, 0
      %p632 = por %p630, %p631
      %p633 = scmp.ne.s32.totalorder %s619, %s620
      %p634 = scmp.eq.s32.totalorder %s46, 1
      %p635 = por %p633, %p634
      %p637 = scmp.ne.s32.totalorder %s620, %s636
      %p638 = scmp.eq.s32.totalorder %s46, 0
      %p639 = por %p637, %p638
      %s640 = ssub.s32 %s40, %s47
      %p641 = scmp.eq.s32.totalorder %s640, 0
      %s643 = sadd.s32 %s642, 1
      %s644 = scalar_select %p641, %s642, %s643
      %p647 = pneg %p641
      %p648 = scmp.eq.s32.totalorder %s40, 1
      %p649 = por %p647, %p648
      %p650 = scmp.ne.s32.totalorder %s642, %s645
      %p651 = scmp.eq.s32.totalorder %s40, 0
      %p652 = por %p650, %p651
      %p653 = scmp.ne.s32.totalorder %s642, %s645
      %p654 = scmp.eq.s32.totalorder %s45, 1
      %p655 = por %p653, %p654
      %p656 = scmp.ne.s32.totalorder %s645, %s646
      %p657 = scmp.eq.s32.totalorder %s45, 0
      %p658 = por %p656, %p657
      %p659 = scmp.ne.s32.totalorder %s645, %s646
      %p660 = scmp.eq.s32.totalorder %s46, 1
      %p661 = por %p659, %p660
      %p663 = scmp.ne.s32.totalorder %s646, %s662
      %p664 = scmp.eq.s32.totalorder %s46, 0
      %p665 = por %p663, %p664
      %p666 = scmp.le.s32.totalorder 1, %s40
      %p667 = scmp.lt.s32.totalorder %s40, 3
      %p668 = pnand %p666, %p667
      %p669 = pneg %p668
      // Predicated region
      $region9: #{predictive_vae_forward.1} parent=5 // pred_check
        _
      $region10: #{predictive_vae_forward.1} parent=5 // pred_check_branch
        %671 = sbr.rel (%p668) target = $region12
      $region11: #{predictive_vae_forward.1} parent=5 // pred_region
        %s672 = ssub.s32 %s40, 1
        // Predicated region
        $region13: #{predictive_vae_forward.1} parent=11 // pred_check
          %p673 = pneg %p113
        $region14: #{predictive_vae_forward.1} parent=11 // pred_check_branch
          %675 = sbr.rel (%p673) target = $region16
        $region15: #{predictive_vae_forward.1} parent=11 // pred_region
          _
        $region16: #{predictive_vae_forward.1} parent=11 // pred_fallthru
          _
        // Predicated region
        $region17: #{predictive_vae_forward.1} parent=11 // pred_check
          %p676 = pneg %p134
        $region18: #{predictive_vae_forward.1} parent=11 // pred_check_branch
          %678 = sbr.rel (%p676) target = $region20
        $region19: #{predictive_vae_forward.1} parent=11 // pred_region
          _
        $region20: #{predictive_vae_forward.1} parent=11 // pred_fallthru
          _
        // Predicated region
        $region21: #{predictive_vae_forward.1} parent=11 // pred_check
          %p679 = pneg %p155
        $region22: #{predictive_vae_forward.1} parent=11 // pred_check_branch
          %681 = sbr.rel (%p679) target = $region24
        $region23: #{predictive_vae_forward.1} parent=11 // pred_region
          _
        $region24: #{predictive_vae_forward.1} parent=11 // pred_fallthru
          _
        // Predicated region
        $region25: #{predictive_vae_forward.1} parent=11 // pred_check
          %p682 = pneg %p176
        $region26: #{predictive_vae_forward.1} parent=11 // pred_check_branch
          %684 = sbr.rel (%p682) target = $region28
        $region27: #{predictive_vae_forward.1} parent=11 // pred_region
          _
        $region28: #{predictive_vae_forward.1} parent=11 // pred_fallthru
          _
        // Predicated region
        $region29: #{predictive_vae_forward.1} parent=11 // pred_check
          %p685 = pneg %p197
        $region30: #{predictive_vae_forward.1} parent=11 // pred_check_branch
          %687 = sbr.rel (%p685) target = $region32
        $region31: #{predictive_vae_forward.1} parent=11 // pred_region
          _
        $region32: #{predictive_vae_forward.1} parent=11 // pred_fallthru
          _
        // Predicated region
        $region33: #{predictive_vae_forward.1} parent=11 // pred_check
          %p688 = pneg %p218
        $region34: #{predictive_vae_forward.1} parent=11 // pred_check_branch
          %690 = sbr.rel (%p688) target = $region36
        $region35: #{predictive_vae_forward.1} parent=11 // pred_region
          _
        $region36: #{predictive_vae_forward.1} parent=11 // pred_fallthru
          _
        // Predicated region
        $region37: #{predictive_vae_forward.1} parent=11 // pred_check
          %p691 = pneg %p239
        $region38: #{predictive_vae_forward.1} parent=11 // pred_check_branch
          %693 = sbr.rel (%p691) target = $region40
        $region39: #{predictive_vae_forward.1} parent=11 // pred_region
          _
        $region40: #{predictive_vae_forward.1} parent=11 // pred_fallthru
          _
        // Predicated region
        $region41: #{predictive_vae_forward.1} parent=11 // pred_check
          %p694 = pneg %p260
        $region42: #{predictive_vae_forward.1} parent=11 // pred_check_branch
          %696 = sbr.rel (%p694) target = $region44
        $region43: #{predictive_vae_forward.1} parent=11 // pred_region
          _
        $region44: #{predictive_vae_forward.1} parent=11 // pred_fallthru
          _
        // Predicated region
        $region45: #{predictive_vae_forward.1} parent=11 // pred_check
          %p697 = pneg %p281
        $region46: #{predictive_vae_forward.1} parent=11 // pred_check_branch
          %699 = sbr.rel (%p697) target = $region48
        $region47: #{predictive_vae_forward.1} parent=11 // pred_region
          _
        $region48: #{predictive_vae_forward.1} parent=11 // pred_fallthru
          _
        // Predicated region
        $region49: #{predictive_vae_forward.1} parent=11 // pred_check
          %p700 = pneg %p302
        $region50: #{predictive_vae_forward.1} parent=11 // pred_check_branch
          %702 = sbr.rel (%p700) target = $region52
        $region51: #{predictive_vae_forward.1} parent=11 // pred_region
          _
        $region52: #{predictive_vae_forward.1} parent=11 // pred_fallthru
          _
        // Predicated region
        $region53: #{predictive_vae_forward.1} parent=11 // pred_check
          %p703 = pneg %p323
        $region54: #{predictive_vae_forward.1} parent=11 // pred_check_branch
          %705 = sbr.rel (%p703) target = $region56
        $region55: #{predictive_vae_forward.1} parent=11 // pred_region
          _
        $region56: #{predictive_vae_forward.1} parent=11 // pred_fallthru
          _
        // Predicated region
        $region57: #{predictive_vae_forward.1} parent=11 // pred_check
          %p706 = pneg %p344
        $region58: #{predictive_vae_forward.1} parent=11 // pred_check_branch
          %708 = sbr.rel (%p706) target = $region60
        $region59: #{predictive_vae_forward.1} parent=11 // pred_region
          _
        $region60: #{predictive_vae_forward.1} parent=11 // pred_fallthru
          _
        // Predicated region
        $region61: #{predictive_vae_forward.1} parent=11 // pred_check
          %p709 = pneg %p365
        $region62: #{predictive_vae_forward.1} parent=11 // pred_check_branch
          %711 = sbr.rel (%p709) target = $region64
        $region63: #{predictive_vae_forward.1} parent=11 // pred_region
          _
        $region64: #{predictive_vae_forward.1} parent=11 // pred_fallthru
          _
        // Predicated region
        $region65: #{predictive_vae_forward.1} parent=11 // pred_check
          %p712 = pneg %p386
        $region66: #{predictive_vae_forward.1} parent=11 // pred_check_branch
          %714 = sbr.rel (%p712) target = $region68
        $region67: #{predictive_vae_forward.1} parent=11 // pred_region
          _
        $region68: #{predictive_vae_forward.1} parent=11 // pred_fallthru
          _
        // Predicated region
        $region69: #{predictive_vae_forward.1} parent=11 // pred_check
          %p715 = pneg %p407
        $region70: #{predictive_vae_forward.1} parent=11 // pred_check_branch
          %717 = sbr.rel (%p715) target = $region72
        $region71: #{predictive_vae_forward.1} parent=11 // pred_region
          _
        $region72: #{predictive_vae_forward.1} parent=11 // pred_fallthru
          _
        // Predicated region
        $region73: #{predictive_vae_forward.1} parent=11 // pred_check
          %p718 = pneg %p428
        $region74: #{predictive_vae_forward.1} parent=11 // pred_check_branch
          %720 = sbr.rel (%p718) target = $region76
        $region75: #{predictive_vae_forward.1} parent=11 // pred_region
          _
        $region76: #{predictive_vae_forward.1} parent=11 // pred_fallthru
          _
        // Predicated region
        $region77: #{predictive_vae_forward.1} parent=11 // pred_check
          %p721 = pneg %p449
        $region78: #{predictive_vae_forward.1} parent=11 // pred_check_branch
          %723 = sbr.rel (%p721) target = $region80
        $region79: #{predictive_vae_forward.1} parent=11 // pred_region
          _
        $region80: #{predictive_vae_forward.1} parent=11 // pred_fallthru
          _
        // Predicated region
        $region81: #{predictive_vae_forward.1} parent=11 // pred_check
          %p724 = pneg %p470
        $region82: #{predictive_vae_forward.1} parent=11 // pred_check_branch
          %726 = sbr.rel (%p724) target = $region84
        $region83: #{predictive_vae_forward.1} parent=11 // pred_region
          _
        $region84: #{predictive_vae_forward.1} parent=11 // pred_fallthru
          _
        // Predicated region
        $region85: #{predictive_vae_forward.1} parent=11 // pred_check
          %p727 = pneg %p491
        $region86: #{predictive_vae_forward.1} parent=11 // pred_check_branch
          %729 = sbr.rel (%p727) target = $region88
        $region87: #{predictive_vae_forward.1} parent=11 // pred_region
          _
        $region88: #{predictive_vae_forward.1} parent=11 // pred_fallthru
          _
        // Predicated region
        $region89: #{predictive_vae_forward.1} parent=11 // pred_check
          %p730 = pneg %p512
        $region90: #{predictive_vae_forward.1} parent=11 // pred_check_branch
          %732 = sbr.rel (%p730) target = $region92
        $region91: #{predictive_vae_forward.1} parent=11 // pred_region
          _
        $region92: #{predictive_vae_forward.1} parent=11 // pred_fallthru
          _
        // Predicated region
        $region93: #{predictive_vae_forward.1} parent=11 // pred_check
          %p733 = pneg %p533
        $region94: #{predictive_vae_forward.1} parent=11 // pred_check_branch
          %735 = sbr.rel (%p733) target = $region96
        $region95: #{predictive_vae_forward.1} parent=11 // pred_region
          _
        $region96: #{predictive_vae_forward.1} parent=11 // pred_fallthru
          _
        // Predicated region
        $region97: #{predictive_vae_forward.1} parent=11 // pred_check
          %p736 = pneg %p554
        $region98: #{predictive_vae_forward.1} parent=11 // pred_check_branch
          %738 = sbr.rel (%p736) target = $region100
        $region99: #{predictive_vae_forward.1} parent=11 // pred_region
          _
        $region100: #{predictive_vae_forward.1} parent=11 // pred_fallthru
          _
      $region12: #{predictive_vae_forward.1} parent=5 // pred_fallthru
        _
      %p739 = scmp.lt.s32.totalorder %s40, 2
      // Predicated region
      $region101: #{predictive_vae_forward.1} parent=5 // pred_check
        %p740 = pneg %p739
      $region102: #{predictive_vae_forward.1} parent=5 // pred_check_branch
        %742 = sbr.rel (%p740) target = $region104
      $region103: #{predictive_vae_forward.1} parent=5 // pred_region
        // Predicated region
        $region105: #{predictive_vae_forward.1} parent=103 // pred_check
          %p743 = pneg %p60
        $region106: #{predictive_vae_forward.1} parent=103 // pred_check_branch
          %745 = sbr.rel (%p743) target = $region108
        $region107: #{predictive_vae_forward.1} parent=103 // pred_region
          %p746 = scmp.lt.s32.totalorder %s40, 1
          %s747 = scalar_select %p746, %s40, 1
          %s748 = smul.addr %s747, 8
          %s749 = scalar_lea.vmem %s0, %s748
        $region108: #{predictive_vae_forward.1} parent=103 // pred_fallthru
          _
        // Predicated region
        $region109: #{predictive_vae_forward.1} parent=103 // pred_check
          %p750 = pneg %p86
        $region110: #{predictive_vae_forward.1} parent=103 // pred_check_branch
          %752 = sbr.rel (%p750) target = $region112
        $region111: #{predictive_vae_forward.1} parent=103 // pred_region
          %p753 = scmp.lt.s32.totalorder %s40, 1
          %s754 = scalar_select %p753, %s40, 1
          %s755 = scalar_lea.vmem %s1, %s754
        $region112: #{predictive_vae_forward.1} parent=103 // pred_fallthru
          _
      $region104: #{predictive_vae_forward.1} parent=5 // pred_fallthru
        _
      %p756 = scmp.le.s32.totalorder 1, %s40
      %p757 = scmp.lt.s32.totalorder %s40, 3
      %p758 = pnand %p756, %p757
      %p759 = pneg %p758
      // Predicated region
      $region113: #{predictive_vae_forward.1} parent=5 // pred_check
        _
      $region114: #{predictive_vae_forward.1} parent=5 // pred_check_branch
        %761 = sbr.rel (%p758) target = $region116
      $region115: #{predictive_vae_forward.1} parent=5 // pred_region
        %s762 = ssub.s32 %s40, 1
        %p763 = scmp.lt.s32.totalorder %s45, 1
        %s764 = scalar_select %p763, %s45, 1
        %s765 = smul.addr %s764, 8
        %s766 = scalar_lea.vmem %s0, %s765
        %p767 = pneg %p66
        %p768 = pneg %p63
        %p769 = scmp.lt.s32.totalorder %s45, 1
        %s770 = scalar_select %p769, %s45, 1
        %s771 = scalar_lea.vmem %s1, %s770
        %p772 = pneg %p92
        %p773 = pneg %p89
        %p774 = pneg %p113
        %p775 = pneg %p110
        %p776 = pneg %p134
        %p777 = pneg %p131
        %p778 = pneg %p155
        %p779 = pneg %p152
        %p780 = pneg %p176
        %p781 = pneg %p173
        %p782 = pneg %p197
        %p783 = pneg %p194
        %p784 = pneg %p218
        %p785 = pneg %p215
        %p786 = pneg %p239
        %p787 = pneg %p236
        %p788 = pneg %p260
        %p789 = pneg %p257
        %p790 = pneg %p281
        %p791 = pneg %p278
        %p792 = pneg %p302
        %p793 = pneg %p299
        %p794 = pneg %p323
        %p795 = pneg %p320
        %p796 = pneg %p344
        %p797 = pneg %p341
        %p798 = pneg %p365
        %p799 = pneg %p362
        %p800 = pneg %p386
        %p801 = pneg %p383
        %p802 = pneg %p407
        %p803 = pneg %p404
        %p804 = pneg %p428
        %p805 = pneg %p425
        %p806 = pneg %p449
        %p807 = pneg %p446
        %p808 = pneg %p470
        %p809 = pneg %p467
        %p810 = pneg %p491
        %p811 = pneg %p488
        %p812 = pneg %p512
        %p813 = pneg %p509
        %p814 = pneg %p533
        %p815 = pneg %p530
        %p816 = pneg %p554
        %p817 = pneg %p551
        %p818 = pneg %p580
        %p819 = pneg %p577
        %s820 = sand.u32 %s567, 1
        %s821 = scalar_lea.sflag [#allocation3], %s820
        %s822 = sand.u32 %s567, 1
        %s823 = scalar_lea.vmem [#allocation2], %s822
        %p824 = pneg %p606
        %p825 = pneg %p603
        %s826 = sand.u32 %s45, 1
        %s827 = scalar_lea.sflag [#allocation5], %s826
        %s828 = sand.u32 %s593, 1
        %s829 = scalar_lea.vmem [#allocation4], %s828
        %p830 = pneg %p632
        %p831 = pneg %p629
        %s832 = sand.u32 %s45, 1
        %s833 = scalar_lea.sflag [#allocation5], %s832
        %s834 = sand.u32 %s619, 1
        %s835 = scalar_lea.vmem [#allocation6], %s834
        %p836 = pneg %p658
        %p837 = pneg %p655
        %p838 = scmp.lt.s32.totalorder %s45, 1
        %s839 = scalar_select %p838, %s45, 1
        %s840 = smul.addr %s839, 2
        %s841 = scalar_lea.vmem %s27, %s840
        %p842 = scmp.lt.s32.totalorder %s45, 1
        %s843 = scalar_select %p842, %s45, 1
        %s844 = smul.addr %s843, 8
        %s845 = scalar_lea.vmem %s0, %s844
        %p846 = scmp.lt.s32.totalorder %s45, 1
        %s847 = scalar_select %p846, %s45, 1
        %s848 = scalar_lea.vmem %s1, %s847
        %p849 = scmp.lt.s32.totalorder %s45, 1
        %s850 = scalar_select %p849, %s45, 1
        %s851 = smul.addr %s850, 2
        %s852 = scalar_lea.vmem %s27, %s851
        %v853 = vld [vmem:[%s845] sm:$0xff]
        %s854 = scalar_lea.vmem %s2, 512
        %v855 = vld [vmem:[%s854] sm:$0xff]
        %v856 = vld [vmem:[%s854 + $0x8] sm:$0xff]
        %v857 = vld [vmem:[%s854 + $0x10] sm:$0xff]
        %v858 = vld [vmem:[%s854 + $0x18] sm:$0xff]
        %v859 = vld [vmem:[%s854 + $0x20] sm:$0xff]
        %v860 = vld [vmem:[%s854 + $0x28] sm:$0xff]
        %v861 = vld [vmem:[%s854 + $0x30] sm:$0xff]
        %v862 = vld [vmem:[%s854 + $0x38] sm:$0xff]
        %v863 = vld [vmem:[%s854 + $0x40] sm:$0xff]
        %v864 = vld [vmem:[%s854 + $0x48] sm:$0xff]
        %v865 = vld [vmem:[%s854 + $0x50] sm:$0xff]
        %v866 = vld [vmem:[%s854 + $0x58] sm:$0xff]
        %v867 = vld [vmem:[%s854 + $0x60] sm:$0xff]
        %v868 = vld [vmem:[%s854 + $0x68] sm:$0xff]
        %v869 = vld [vmem:[%s854 + $0x70] sm:$0xff]
        %v870 = vld [vmem:[%s854 + $0x78] sm:$0xff]
        %v871 = vld [vmem:[%s854 + $0x80] sm:$0xff]
        %v872 = vld [vmem:[%s854 + $0x88] sm:$0xff]
        %v873 = vld [vmem:[%s854 + $0x90] sm:$0xff]
        %v874 = vld [vmem:[%s854 + $0x98] sm:$0xff]
        %v875 = vld [vmem:[%s854 + $0xa0] sm:$0xff]
        %v876 = vld [vmem:[%s854 + $0xa8] sm:$0xff]
        %v877 = vld [vmem:[%s854 + $0xb0] sm:$0xff]
        %v878 = vld [vmem:[%s854 + $0xb8] sm:$0xff]
        %v879 = vld [vmem:[%s854 + $0xc0] sm:$0xff]
        %v880 = vld [vmem:[%s854 + $0xc8] sm:$0xff]
        %v881 = vld [vmem:[%s854 + $0xd0] sm:$0xff]
        %v882 = vld [vmem:[%s854 + $0xd8] sm:$0xff]
        %v883 = vld [vmem:[%s854 + $0xe0] sm:$0xff]
        %v884 = vld [vmem:[%s854 + $0xe8] sm:$0xff]
        %v885 = vld [vmem:[%s854 + $0xf0] sm:$0xff]
        %v886 = vld [vmem:[%s854 + $0xf8] sm:$0xff]
        %v887 = vld [vmem:[%s854 + $0x100] sm:$0xff]
        %v888 = vld [vmem:[%s854 + $0x108] sm:$0xff]
        %v889 = vld [vmem:[%s854 + $0x110] sm:$0xff]
        %v890 = vld [vmem:[%s854 + $0x118] sm:$0xff]
        %v891 = vld [vmem:[%s854 + $0x120] sm:$0xff]
        %v892 = vld [vmem:[%s854 + $0x128] sm:$0xff]
        %v893 = vld [vmem:[%s854 + $0x130] sm:$0xff]
        %v894 = vld [vmem:[%s854 + $0x138] sm:$0xff]
        %v895 = vld [vmem:[%s854 + $0x140] sm:$0xff]
        %v896 = vld [vmem:[%s854 + $0x148] sm:$0xff]
        %v897 = vld [vmem:[%s854 + $0x150] sm:$0xff]
        %v898 = vld [vmem:[%s854 + $0x158] sm:$0xff]
        %v899 = vld [vmem:[%s854 + $0x160] sm:$0xff]
        %v900 = vld [vmem:[%s854 + $0x168] sm:$0xff]
        %v901 = vld [vmem:[%s854 + $0x170] sm:$0xff]
        %v902 = vld [vmem:[%s854 + $0x178] sm:$0xff]
        %v903 = vld [vmem:[%s854 + $0x180] sm:$0xff]
        %v904 = vld [vmem:[%s854 + $0x188] sm:$0xff]
        %v905 = vld [vmem:[%s854 + $0x190] sm:$0xff]
        %v906 = vld [vmem:[%s854 + $0x198] sm:$0xff]
        %v907 = vld [vmem:[%s854 + $0x1a0] sm:$0xff]
        %v908 = vld [vmem:[%s854 + $0x1a8] sm:$0xff]
        %v909 = vld [vmem:[%s854 + $0x1b0] sm:$0xff]
        %v910 = vld [vmem:[%s854 + $0x1b8] sm:$0xff]
        %v911 = vld [vmem:[%s854 + $0x1c0] sm:$0xff]
        %v912 = vld [vmem:[%s854 + $0x1c8] sm:$0xff]
        %v913 = vld [vmem:[%s854 + $0x1d0] sm:$0xff]
        %v914 = vld [vmem:[%s854 + $0x1d8] sm:$0xff]
        %v915 = vld [vmem:[%s854 + $0x1e0] sm:$0xff]
        %v916 = vld [vmem:[%s854 + $0x1e8] sm:$0xff]
        %v917 = vld [vmem:[%s854 + $0x1f0] sm:$0xff]
        %v918 = vld [vmem:[%s854 + $0x1f8] sm:$0xff]
        %v919 = vlaneseq
        %v920 = vshrl.u32 %v919, 7
        %v921 = vlaneseq
        %v922 = vand.u32 %v921, 127
        %v923 = vadd.s32 %v922, 1
        %vm924 = vcmp.eq.s32.totalorder %v923, %v920
        %v925 = vsel %vm924, 1, 0
        %v926 = vcvt.s32.f32 %v925
        %v927 = vld [vmem:[%s2] sm:$0xff]
        %v928 = vld [vmem:[%s2 + $0x8] sm:$0xff]
        %v929 = vld [vmem:[%s2 + $0x10] sm:$0xff]
        %v930 = vld [vmem:[%s2 + $0x18] sm:$0xff]
        %v931 = vld [vmem:[%s2 + $0x20] sm:$0xff]
        %v932 = vld [vmem:[%s2 + $0x28] sm:$0xff]
        %v933 = vld [vmem:[%s2 + $0x30] sm:$0xff]
        %v934 = vld [vmem:[%s2 + $0x38] sm:$0xff]
        %v935 = vld [vmem:[%s2 + $0x40] sm:$0xff]
        %v936 = vld [vmem:[%s2 + $0x48] sm:$0xff]
        %v937 = vld [vmem:[%s2 + $0x50] sm:$0xff]
        %v938 = vld [vmem:[%s2 + $0x58] sm:$0xff]
        %v939 = vld [vmem:[%s2 + $0x60] sm:$0xff]
        %v940 = vld [vmem:[%s2 + $0x68] sm:$0xff]
        %v941 = vld [vmem:[%s2 + $0x70] sm:$0xff]
        %v942 = vld [vmem:[%s2 + $0x78] sm:$0xff]
        %v943 = vld [vmem:[%s2 + $0x80] sm:$0xff]
        %v944 = vld [vmem:[%s2 + $0x88] sm:$0xff]
        %v945 = vld [vmem:[%s2 + $0x90] sm:$0xff]
        %v946 = vld [vmem:[%s2 + $0x98] sm:$0xff]
        %v947 = vld [vmem:[%s2 + $0xa0] sm:$0xff]
        %v948 = vld [vmem:[%s2 + $0xa8] sm:$0xff]
        %v949 = vld [vmem:[%s2 + $0xb0] sm:$0xff]
        %v950 = vld [vmem:[%s2 + $0xb8] sm:$0xff]
        %v951 = vld [vmem:[%s2 + $0xc0] sm:$0xff]
        %v952 = vld [vmem:[%s2 + $0xc8] sm:$0xff]
        %v953 = vld [vmem:[%s2 + $0xd0] sm:$0xff]
        %v954 = vld [vmem:[%s2 + $0xd8] sm:$0xff]
        %v955 = vld [vmem:[%s2 + $0xe0] sm:$0xff]
        %v956 = vld [vmem:[%s2 + $0xe8] sm:$0xff]
        %v957 = vld [vmem:[%s2 + $0xf0] sm:$0xff]
        %v958 = vld [vmem:[%s2 + $0xf8] sm:$0xff]
        %v959 = vld [vmem:[%s2 + $0x100] sm:$0xff]
        %v960 = vld [vmem:[%s2 + $0x108] sm:$0xff]
        %v961 = vld [vmem:[%s2 + $0x110] sm:$0xff]
        %v962 = vld [vmem:[%s2 + $0x118] sm:$0xff]
        %v963 = vld [vmem:[%s2 + $0x120] sm:$0xff]
        %v964 = vld [vmem:[%s2 + $0x128] sm:$0xff]
        %v965 = vld [vmem:[%s2 + $0x130] sm:$0xff]
        %v966 = vld [vmem:[%s2 + $0x138] sm:$0xff]
        %v967 = vld [vmem:[%s2 + $0x140] sm:$0xff]
        %v968 = vld [vmem:[%s2 + $0x148] sm:$0xff]
        %v969 = vld [vmem:[%s2 + $0x150] sm:$0xff]
        %v970 = vld [vmem:[%s2 + $0x158] sm:$0xff]
        %v971 = vld [vmem:[%s2 + $0x160] sm:$0xff]
        %v972 = vld [vmem:[%s2 + $0x168] sm:$0xff]
        %v973 = vld [vmem:[%s2 + $0x170] sm:$0xff]
        %v974 = vld [vmem:[%s2 + $0x178] sm:$0xff]
        %v975 = vld [vmem:[%s2 + $0x180] sm:$0xff]
        %v976 = vld [vmem:[%s2 + $0x188] sm:$0xff]
        %v977 = vld [vmem:[%s2 + $0x190] sm:$0xff]
        %v978 = vld [vmem:[%s2 + $0x198] sm:$0xff]
        %v979 = vld [vmem:[%s2 + $0x1a0] sm:$0xff]
        %v980 = vld [vmem:[%s2 + $0x1a8] sm:$0xff]
        %v981 = vld [vmem:[%s2 + $0x1b0] sm:$0xff]
        %v982 = vld [vmem:[%s2 + $0x1b8] sm:$0xff]
        %v983 = vld [vmem:[%s2 + $0x1c0] sm:$0xff]
        %v984 = vld [vmem:[%s2 + $0x1c8] sm:$0xff]
        %v985 = vld [vmem:[%s2 + $0x1d0] sm:$0xff]
        %v986 = vld [vmem:[%s2 + $0x1d8] sm:$0xff]
        %v987 = vld [vmem:[%s2 + $0x1e0] sm:$0xff]
        %v988 = vld [vmem:[%s2 + $0x1e8] sm:$0xff]
        %v989 = vld [vmem:[%s2 + $0x1f0] sm:$0xff]
        %v990 = vld [vmem:[%s2 + $0x1f8] sm:$0xff]
        %991 = vmatprep.subr.mxu0 %v988
        %992 = vmatpush1.msra.mxu0 %v987
        %993 = vmatprep.subr.mxu0 %v984
        %994 = vmatpush1.msra.mxu0 %v983
        %995 = vmatprep.subr.mxu0 %v980
        %996 = vmatpush1.msra.mxu0 %v979
        %997 = vmatprep.subr.mxu0 %v976
        %998 = vmatpush1.msra.mxu0 %v975
        %999 = vmatprep.subr.mxu0 %v972
        %1000 = vmatpush1.msra.mxu0 %v971
        %1001 = vmatprep.subr.mxu0 %v968
        %1002 = vmatpush1.msra.mxu0 %v967
        %1003 = vmatprep.subr.mxu0 %v964
        %1004 = vmatpush1.msra.mxu0 %v963
        %1005 = vmatprep.subr.mxu0 %v960
        %1006 = vmatpush1.msra.mxu0 %v959
        %1007 = vmatprep.subr.mxu0 %v956
        %1008 = vmatpush1.msra.mxu0 %v955
        %1009 = vmatprep.subr.mxu0 %v952
        %1010 = vmatpush1.msra.mxu0 %v951
        %1011 = vmatprep.subr.mxu0 %v948
        %1012 = vmatpush1.msra.mxu0 %v947
        %1013 = vmatprep.subr.mxu0 %v944
        %1014 = vmatpush1.msra.mxu0 %v943
        %1015 = vmatprep.subr.mxu0 %v940
        %1016 = vmatpush1.msra.mxu0 %v939
        %1017 = vmatprep.subr.mxu0 %v936
        %1018 = vmatpush1.msra.mxu0 %v935
        %1019 = vmatprep.subr.mxu0 %v932
        %1020 = vmatpush1.msra.mxu0 %v931
        %1021 = vmatprep.subr.mxu0 %v928
        %1022 = vmatpush1.msra.mxu0 %v927
        %1023 = vmatprep.subr.mxu0 0.0
        %1024 = vmatpush2.msra.mxu0 0.0
        %1025 = vmatprep.subr.mxu0 0.0
        %1026 = vmatpush2.msra.mxu0 0.0
        %1027 = vmatprep.subr.mxu0 0.0
        %1028 = vmatpush2.msra.mxu0 0.0
        %1029 = vmatprep.subr.mxu0 0.0
        %1030 = vmatpush2.msra.mxu0 0.0
        %1031 = vmatprep.subr.mxu0 0.0
        %1032 = vmatpush2.msra.mxu0 0.0
        %1033 = vmatprep.subr.mxu0 0.0
        %1034 = vmatpush2.msra.mxu0 0.0
        %1035 = vmatprep.subr.mxu0 0.0
        %1036 = vmatpush2.msra.mxu0 0.0
        %1037 = vmatprep.subr.mxu0 0.0
        %1038 = vmatpush2.msra.mxu0 0.0
        %1039 = vmatprep.subr.mxu0 0.0
        %1040 = vmatpush2.msra.mxu0 0.0
        %1041 = vmatprep.subr.mxu0 0.0
        %1042 = vmatpush2.msra.mxu0 0.0
        %1043 = vmatprep.subr.mxu0 0.0
        %1044 = vmatpush2.msra.mxu0 0.0
        %1045 = vmatprep.subr.mxu0 0.0
        %1046 = vmatpush2.msra.mxu0 0.0
        %1047 = vmatprep.subr.mxu0 0.0
        %1048 = vmatpush2.msra.mxu0 0.0
        %1049 = vmatprep.subr.mxu0 0.0
        %1050 = vmatpush2.msra.mxu0 0.0
        %1051 = vmatprep.subr.mxu0 0.0
        %1052 = vmatpush2.msra.mxu0 0.0
        %1053 = vmatprep.subr.mxu0 0.0
        %1054 = vmatpush2.msra.mxu0 0.0
        %1055 = vmatprep.mubr.f32.mxu0 0.0
        %1056 = vmatmul.mubr.f32.gmra.mxu0 %v853
        %v1057 = vpop.f32.mrf.mxu0
        %v1058 = vadd.f32 0.0, %v1057
        %v1059 = vpop.f32.mrf.mxu0
        %v1060 = vadd.f32 0.0, %v1059
        %1061 = vdwg.mxu0
        %1062 = vmatprep.subr.mxu0 %v990
        %1063 = vmatpush1.msra.mxu0 %v989
        %1064 = vmatprep.subr.mxu0 %v986
        %1065 = vmatpush1.msra.mxu0 %v985
        %1066 = vmatprep.subr.mxu0 %v982
        %1067 = vmatpush1.msra.mxu0 %v981
        %1068 = vmatprep.subr.mxu0 %v978
        %1069 = vmatpush1.msra.mxu0 %v977
        %1070 = vmatprep.subr.mxu0 %v974
        %1071 = vmatpush1.msra.mxu0 %v973
        %1072 = vmatprep.subr.mxu0 %v970
        %1073 = vmatpush1.msra.mxu0 %v969
        %1074 = vmatprep.subr.mxu0 %v966
        %1075 = vmatpush1.msra.mxu0 %v965
        %1076 = vmatprep.subr.mxu0 %v962
        %1077 = vmatpush1.msra.mxu0 %v961
        %1078 = vmatprep.subr.mxu0 %v958
        %1079 = vmatpush1.msra.mxu0 %v957
        %1080 = vmatprep.subr.mxu0 %v954
        %1081 = vmatpush1.msra.mxu0 %v953
        %1082 = vmatprep.subr.mxu0 %v950
        %1083 = vmatpush1.msra.mxu0 %v949
        %1084 = vmatprep.subr.mxu0 %v946
        %1085 = vmatpush1.msra.mxu0 %v945
        %1086 = vmatprep.subr.mxu0 %v942
        %1087 = vmatpush1.msra.mxu0 %v941
        %1088 = vmatprep.subr.mxu0 %v938
        %1089 = vmatpush1.msra.mxu0 %v937
        %1090 = vmatprep.subr.mxu0 %v934
        %1091 = vmatpush1.msra.mxu0 %v933
        %1092 = vmatprep.subr.mxu0 %v930
        %1093 = vmatpush1.msra.mxu0 %v929
        %1094 = vmatprep.subr.mxu0 0.0
        %1095 = vmatpush2.msra.mxu0 0.0
        %1096 = vmatprep.subr.mxu0 0.0
        %1097 = vmatpush2.msra.mxu0 0.0
        %1098 = vmatprep.subr.mxu0 0.0
        %1099 = vmatpush2.msra.mxu0 0.0
        %1100 = vmatprep.subr.mxu0 0.0
        %1101 = vmatpush2.msra.mxu0 0.0
        %1102 = vmatprep.subr.mxu0 0.0
        %1103 = vmatpush2.msra.mxu0 0.0
        %1104 = vmatprep.subr.mxu0 0.0
        %1105 = vmatpush2.msra.mxu0 0.0
        %1106 = vmatprep.subr.mxu0 0.0
        %1107 = vmatpush2.msra.mxu0 0.0
        %1108 = vmatprep.subr.mxu0 0.0
        %1109 = vmatpush2.msra.mxu0 0.0
        %1110 = vmatprep.subr.mxu0 0.0
        %1111 = vmatpush2.msra.mxu0 0.0
        %1112 = vmatprep.subr.mxu0 0.0
        %1113 = vmatpush2.msra.mxu0 0.0
        %1114 = vmatprep.subr.mxu0 0.0
        %1115 = vmatpush2.msra.mxu0 0.0
        %1116 = vmatprep.subr.mxu0 0.0
        %1117 = vmatpush2.msra.mxu0 0.0
        %1118 = vmatprep.subr.mxu0 0.0
        %1119 = vmatpush2.msra.mxu0 0.0
        %1120 = vmatprep.subr.mxu0 0.0
        %1121 = vmatpush2.msra.mxu0 0.0
        %1122 = vmatprep.subr.mxu0 0.0
        %1123 = vmatpush2.msra.mxu0 0.0
        %1124 = vmatprep.subr.mxu0 0.0
        %1125 = vmatpush2.msra.mxu0 0.0
        %1126 = vmatprep.mubr.f32.mxu0 0.0
        %1127 = vmatmul.mubr.f32.gmra.mxu0 %v853
        %v1128 = vpop.f32.mrf.mxu0
        %v1129 = vadd.f32 0.0, %v1128
        %v1130 = vpop.f32.mrf.mxu0
        %v1131 = vadd.f32 0.0, %v1130
        %1132 = vdwg.mxu0
        %vm1133 = vcmask 64512
        %v1135 = vsel %vm1133, %v926, 0
        %1137 = vmatprep.subr.mxu0 0.0
        %1138 = vmatpush1.msra.mxu0 0.0
        %1139 = vmatprep.subr.mxu0 0.0
        %1140 = vmatpush1.msra.mxu0 0.0
        %1141 = vmatprep.subr.mxu0 0.0
        %1142 = vmatpush1.msra.mxu0 0.0
        %1143 = vmatprep.subr.mxu0 0.0
        %1144 = vmatpush1.msra.mxu0 0.0
        %1145 = vmatprep.subr.mxu0 0.0
        %1146 = vmatpush1.msra.mxu0 0.0
        %1147 = vmatprep.subr.mxu0 0.0
        %1148 = vmatpush1.msra.mxu0 0.0
        %1149 = vmatprep.subr.mxu0 0.0
        %1150 = vmatpush1.msra.mxu0 0.0
        %1151 = vmatprep.subr.mxu0 0.0
        %1152 = vmatpush1.msra.mxu0 0.0
        %1153 = vmatprep.subr.mxu0 0.0
        %1154 = vmatpush1.msra.mxu0 0.0
        %1155 = vmatprep.subr.mxu0 0.0
        %1156 = vmatpush1.msra.mxu0 0.0
        %1157 = vmatprep.subr.mxu0 0.0
        %1158 = vmatpush1.msra.mxu0 0.0
        %1159 = vmatprep.subr.mxu0 0.0
        %1160 = vmatpush1.msra.mxu0 0.0
        %1161 = vmatprep.subr.mxu0 0.0
        %1162 = vmatpush1.msra.mxu0 0.0
        %1163 = vmatprep.subr.mxu0 0.0
        %1164 = vmatpush1.msra.mxu0 0.0
        %1165 = vmatprep.subr.mxu0 0.0
        %1166 = vmatpush1.msra.mxu0 0.0
        %1167 = vmatprep.subr.mxu0 %v1060
        %1168 = vmatpush1.msra.mxu0 %v1058
        %1169 = vmatprep.subr.mxu0 0.0
        %1170 = vmatpush2.msra.mxu0 0.0
        %1171 = vmatprep.subr.mxu0 0.0
        %1172 = vmatpush2.msra.mxu0 0.0
        %1173 = vmatprep.subr.mxu0 0.0
        %1174 = vmatpush2.msra.mxu0 0.0
        %1175 = vmatprep.subr.mxu0 0.0
        %1176 = vmatpush2.msra.mxu0 0.0
        %1177 = vmatprep.subr.mxu0 0.0
        %1178 = vmatpush2.msra.mxu0 0.0
        %1179 = vmatprep.subr.mxu0 0.0
        %1180 = vmatpush2.msra.mxu0 0.0
        %1181 = vmatprep.subr.mxu0 0.0
        %1182 = vmatpush2.msra.mxu0 0.0
        %1183 = vmatprep.subr.mxu0 0.0
        %1184 = vmatpush2.msra.mxu0 0.0
        %1185 = vmatprep.subr.mxu0 0.0
        %1186 = vmatpush2.msra.mxu0 0.0
        %1187 = vmatprep.subr.mxu0 0.0
        %1188 = vmatpush2.msra.mxu0 0.0
        %1189 = vmatprep.subr.mxu0 0.0
        %1190 = vmatpush2.msra.mxu0 0.0
        %1191 = vmatprep.subr.mxu0 0.0
        %1192 = vmatpush2.msra.mxu0 0.0
        %1193 = vmatprep.subr.mxu0 0.0
        %1194 = vmatpush2.msra.mxu0 0.0
        %1195 = vmatprep.subr.mxu0 0.0
        %1196 = vmatpush2.msra.mxu0 0.0
        %1197 = vmatprep.subr.mxu0 0.0
        %1198 = vmatpush2.msra.mxu0 0.0
        %1199 = vmatprep.subr.mxu0 0.0
        %1200 = vmatpush2.msra.mxu0 0.0
        %1201 = vmatprep.mubr.f32.mxu0 0.0
        %1202 = vmatmul.mubr.f32.gmra.mxu0 %v1135
        %v1203 = vpop.f32.mrf.mxu0
        %v1204 = vadd.f32 0.0, %v1203
        %v1205 = vpop.f32.mrf.mxu0
        %v1206 = vadd.f32 0.0, %v1205
        %1207 = vdwg.mxu0
        %1208 = vmatprep.subr.mxu0 0.0
        %1209 = vmatpush1.msra.mxu0 0.0
        %1210 = vmatprep.subr.mxu0 0.0
        %1211 = vmatpush1.msra.mxu0 0.0
        %1212 = vmatprep.subr.mxu0 0.0
        %1213 = vmatpush1.msra.mxu0 0.0
        %1214 = vmatprep.subr.mxu0 0.0
        %1215 = vmatpush1.msra.mxu0 0.0
        %1216 = vmatprep.subr.mxu0 0.0
        %1217 = vmatpush1.msra.mxu0 0.0
        %1218 = vmatprep.subr.mxu0 0.0
        %1219 = vmatpush1.msra.mxu0 0.0
        %1220 = vmatprep.subr.mxu0 0.0
        %1221 = vmatpush1.msra.mxu0 0.0
        %1222 = vmatprep.subr.mxu0 0.0
        %1223 = vmatpush1.msra.mxu0 0.0
        %1224 = vmatprep.subr.mxu0 0.0
        %1225 = vmatpush1.msra.mxu0 0.0
        %1226 = vmatprep.subr.mxu0 0.0
        %1227 = vmatpush1.msra.mxu0 0.0
        %1228 = vmatprep.subr.mxu0 0.0
        %1229 = vmatpush1.msra.mxu0 0.0
        %1230 = vmatprep.subr.mxu0 0.0
        %1231 = vmatpush1.msra.mxu0 0.0
        %1232 = vmatprep.subr.mxu0 0.0
        %1233 = vmatpush1.msra.mxu0 0.0
        %1234 = vmatprep.subr.mxu0 0.0
        %1235 = vmatpush1.msra.mxu0 0.0
        %1236 = vmatprep.subr.mxu0 0.0
        %1237 = vmatpush1.msra.mxu0 0.0
        %1238 = vmatprep.subr.mxu0 %v1131
        %1239 = vmatpush1.msra.mxu0 %v1129
        %1240 = vmatprep.subr.mxu0 0.0
        %1241 = vmatpush2.msra.mxu0 0.0
        %1242 = vmatprep.subr.mxu0 0.0
        %1243 = vmatpush2.msra.mxu0 0.0
        %1244 = vmatprep.subr.mxu0 0.0
        %1245 = vmatpush2.msra.mxu0 0.0
        %1246 = vmatprep.subr.mxu0 0.0
        %1247 = vmatpush2.msra.mxu0 0.0
        %1248 = vmatprep.subr.mxu0 0.0
        %1249 = vmatpush2.msra.mxu0 0.0
        %1250 = vmatprep.subr.mxu0 0.0
        %1251 = vmatpush2.msra.mxu0 0.0
        %1252 = vmatprep.subr.mxu0 0.0
        %1253 = vmatpush2.msra.mxu0 0.0
        %1254 = vmatprep.subr.mxu0 0.0
        %1255 = vmatpush2.msra.mxu0 0.0
        %1256 = vmatprep.subr.mxu0 0.0
        %1257 = vmatpush2.msra.mxu0 0.0
        %1258 = vmatprep.subr.mxu0 0.0
        %1259 = vmatpush2.msra.mxu0 0.0
        %1260 = vmatprep.subr.mxu0 0.0
        %1261 = vmatpush2.msra.mxu0 0.0
        %1262 = vmatprep.subr.mxu0 0.0
        %1263 = vmatpush2.msra.mxu0 0.0
        %1264 = vmatprep.subr.mxu0 0.0
        %1265 = vmatpush2.msra.mxu0 0.0
        %1266 = vmatprep.subr.mxu0 0.0
        %1267 = vmatpush2.msra.mxu0 0.0
        %1268 = vmatprep.subr.mxu0 0.0
        %1269 = vmatpush2.msra.mxu0 0.0
        %1270 = vmatprep.subr.mxu0 0.0
        %1271 = vmatpush2.msra.mxu0 0.0
        %1272 = vmatprep.mubr.f32.mxu0 0.0
        %1273 = vmatmul.mubr.f32.gmra.mxu0 %v1135
        %v1274 = vpop.f32.mrf.mxu0
        %v1275 = vadd.f32 0.0, %v1274
        %v1276 = vpop.f32.mrf.mxu0
        %v1277 = vadd.f32 0.0, %v1276
        %1278 = vdwg.mxu0
        %1279 = vmatprep.subr.mxu0 %v916
        %1280 = vmatpush1.msra.mxu0 %v915
        %1281 = vmatprep.subr.mxu0 %v912
        %1282 = vmatpush1.msra.mxu0 %v911
        %1283 = vmatprep.subr.mxu0 %v908
        %1284 = vmatpush1.msra.mxu0 %v907
        %1285 = vmatprep.subr.mxu0 %v904
        %1286 = vmatpush1.msra.mxu0 %v903
        %1287 = vmatprep.subr.mxu0 %v900
        %1288 = vmatpush1.msra.mxu0 %v899
        %1289 = vmatprep.subr.mxu0 %v896
        %1290 = vmatpush1.msra.mxu0 %v895
        %1291 = vmatprep.subr.mxu0 %v892
        %1292 = vmatpush1.msra.mxu0 %v891
        %1293 = vmatprep.subr.mxu0 %v888
        %1294 = vmatpush1.msra.mxu0 %v887
        %1295 = vmatprep.subr.mxu0 %v884
        %1296 = vmatpush1.msra.mxu0 %v883
        %1297 = vmatprep.subr.mxu0 %v880
        %1298 = vmatpush1.msra.mxu0 %v879
        %1299 = vmatprep.subr.mxu0 %v876
        %1300 = vmatpush1.msra.mxu0 %v875
        %1301 = vmatprep.subr.mxu0 %v872
        %1302 = vmatpush1.msra.mxu0 %v871
        %1303 = vmatprep.subr.mxu0 %v868
        %1304 = vmatpush1.msra.mxu0 %v867
        %1305 = vmatprep.subr.mxu0 %v864
        %1306 = vmatpush1.msra.mxu0 %v863
        %1307 = vmatprep.subr.mxu0 %v860
        %1308 = vmatpush1.msra.mxu0 %v859
        %1309 = vmatprep.subr.mxu0 %v856
        %1310 = vmatpush1.msra.mxu0 %v855
        %1311 = vmatprep.subr.mxu0 0.0
        %1312 = vmatpush2.msra.mxu0 0.0
        %1313 = vmatprep.subr.mxu0 0.0
        %1314 = vmatpush2.msra.mxu0 0.0
        %1315 = vmatprep.subr.mxu0 0.0
        %1316 = vmatpush2.msra.mxu0 0.0
        %1317 = vmatprep.subr.mxu0 0.0
        %1318 = vmatpush2.msra.mxu0 0.0
        %1319 = vmatprep.subr.mxu0 0.0
        %1320 = vmatpush2.msra.mxu0 0.0
        %1321 = vmatprep.subr.mxu0 0.0
        %1322 = vmatpush2.msra.mxu0 0.0
        %1323 = vmatprep.subr.mxu0 0.0
        %1324 = vmatpush2.msra.mxu0 0.0
        %1325 = vmatprep.subr.mxu0 0.0
        %1326 = vmatpush2.msra.mxu0 0.0
        %1327 = vmatprep.subr.mxu0 0.0
        %1328 = vmatpush2.msra.mxu0 0.0
        %1329 = vmatprep.subr.mxu0 0.0
        %1330 = vmatpush2.msra.mxu0 0.0
        %1331 = vmatprep.subr.mxu0 0.0
        %1332 = vmatpush2.msra.mxu0 0.0
        %1333 = vmatprep.subr.mxu0 0.0
        %1334 = vmatpush2.msra.mxu0 0.0
        %1335 = vmatprep.subr.mxu0 0.0
        %1336 = vmatpush2.msra.mxu0 0.0
        %1337 = vmatprep.subr.mxu0 0.0
        %1338 = vmatpush2.msra.mxu0 0.0
        %1339 = vmatprep.subr.mxu0 0.0
        %1340 = vmatpush2.msra.mxu0 0.0
        %1341 = vmatprep.subr.mxu0 0.0
        %1342 = vmatpush2.msra.mxu0 0.0
        %1343 = vmatprep.mubr.f32.mxu0 0.0
        %1344 = vmatmul.mubr.f32.gmra.mxu0 %v853
        %v1345 = vpop.f32.mrf.mxu0
        %v1346 = vadd.f32 %v1204, %v1345
        %v1347 = vpop.f32.mrf.mxu0
        %v1348 = vadd.f32 %v1206, %v1347
        %1349 = vdwg.mxu0
        %1350 = vmatprep.subr.mxu0 %v918
        %1351 = vmatpush1.msra.mxu0 %v917
        %1352 = vmatprep.subr.mxu0 %v914
        %1353 = vmatpush1.msra.mxu0 %v913
        %1354 = vmatprep.subr.mxu0 %v910
        %1355 = vmatpush1.msra.mxu0 %v909
        %1356 = vmatprep.subr.mxu0 %v906
        %1357 = vmatpush1.msra.mxu0 %v905
        %1358 = vmatprep.subr.mxu0 %v902
        %1359 = vmatpush1.msra.mxu0 %v901
        %1360 = vmatprep.subr.mxu0 %v898
        %1361 = vmatpush1.msra.mxu0 %v897
        %1362 = vmatprep.subr.mxu0 %v894
        %1363 = vmatpush1.msra.mxu0 %v893
        %1364 = vmatprep.subr.mxu0 %v890
        %1365 = vmatpush1.msra.mxu0 %v889
        %1366 = vmatprep.subr.mxu0 %v886
        %1367 = vmatpush1.msra.mxu0 %v885
        %1368 = vmatprep.subr.mxu0 %v882
        %1369 = vmatpush1.msra.mxu0 %v881
        %1370 = vmatprep.subr.mxu0 %v878
        %1371 = vmatpush1.msra.mxu0 %v877
        %1372 = vmatprep.subr.mxu0 %v874
        %1373 = vmatpush1.msra.mxu0 %v873
        %1374 = vmatprep.subr.mxu0 %v870
        %1375 = vmatpush1.msra.mxu0 %v869
        %1376 = vmatprep.subr.mxu0 %v866
        %1377 = vmatpush1.msra.mxu0 %v865
        %1378 = vmatprep.subr.mxu0 %v862
        %1379 = vmatpush1.msra.mxu0 %v861
        %1380 = vmatprep.subr.mxu0 %v858
        %1381 = vmatpush1.msra.mxu0 %v857
        %1382 = vmatprep.subr.mxu0 0.0
        %1383 = vmatpush2.msra.mxu0 0.0
        %1384 = vmatprep.subr.mxu0 0.0
        %1385 = vmatpush2.msra.mxu0 0.0
        %1386 = vmatprep.subr.mxu0 0.0
        %1387 = vmatpush2.msra.mxu0 0.0
        %1388 = vmatprep.subr.mxu0 0.0
        %1389 = vmatpush2.msra.mxu0 0.0
        %1390 = vmatprep.subr.mxu0 0.0
        %1391 = vmatpush2.msra.mxu0 0.0
        %1392 = vmatprep.subr.mxu0 0.0
        %1393 = vmatpush2.msra.mxu0 0.0
        %1394 = vmatprep.subr.mxu0 0.0
        %1395 = vmatpush2.msra.mxu0 0.0
        %1396 = vmatprep.subr.mxu0 0.0
        %1397 = vmatpush2.msra.mxu0 0.0
        %1398 = vmatprep.subr.mxu0 0.0
        %1399 = vmatpush2.msra.mxu0 0.0
        %1400 = vmatprep.subr.mxu0 0.0
        %1401 = vmatpush2.msra.mxu0 0.0
        %1402 = vmatprep.subr.mxu0 0.0
        %1403 = vmatpush2.msra.mxu0 0.0
        %1404 = vmatprep.subr.mxu0 0.0
        %1405 = vmatpush2.msra.mxu0 0.0
        %1406 = vmatprep.subr.mxu0 0.0
        %1407 = vmatpush2.msra.mxu0 0.0
        %1408 = vmatprep.subr.mxu0 0.0
        %1409 = vmatpush2.msra.mxu0 0.0
        %1410 = vmatprep.subr.mxu0 0.0
        %1411 = vmatpush2.msra.mxu0 0.0
        %1412 = vmatprep.subr.mxu0 0.0
        %1413 = vmatpush2.msra.mxu0 0.0
        %1414 = vmatprep.mubr.f32.mxu0 0.0
        %1415 = vmatmul.mubr.f32.gmra.mxu0 %v853
        %v1416 = vpop.f32.mrf.mxu0
        %v1417 = vadd.f32 %v1275, %v1416
        %v1418 = vpop.f32.mrf.mxu0
        %v1419 = vadd.f32 %v1277, %v1418
        %1420 = vdwg.mxu0
        %v1421 = vld [vmem:[%s3] sm:$0xf]
        %v1423 = vlaneseq
        %v1424 = vshrl.u32 %v1423, 7
        %v1425 = vsub.s32 0, %v1424
        %v1426 = vrot.slane %v1421, %v1425
        %v1427 = vlaneseq
        %v1428 = vshrl.u32 %v1427, 7
        %v1429 = vsub.s32 1, %v1428
        %v1430 = vrot.slane %v1421, %v1429
        %v1431 = vlaneseq
        %v1432 = vshrl.u32 %v1431, 7
        %v1433 = vsub.s32 2, %v1432
        %v1434 = vrot.slane %v1421, %v1433
        %v1435 = vlaneseq
        %v1436 = vshrl.u32 %v1435, 7
        %v1437 = vsub.s32 3, %v1436
        %v1438 = vrot.slane %v1421, %v1437
        %v1443 = vadd.f32 %v1346, %v1426
        %v1444 = vadd.f32 %v1348, %v1430
        %v1445 = vadd.f32 %v1417, %v1434
        %v1446 = vadd.f32 %v1419, %v1438
        %vm1447 = vcmp.gt.f32.partialorder %v1443, 0.0
        %vm1448 = vcmp.gt.f32.partialorder %v1444, 0.0
        %vm1449 = vcmp.gt.f32.partialorder %v1445, 0.0
        %vm1450 = vcmp.gt.f32.partialorder %v1446, 0.0
        %v1451 = vmul.f32 %v1443, 0.2
        %v1452 = vmul.f32 %v1444, 0.2
        %v1453 = vmul.f32 %v1445, 0.2
        %v1454 = vmul.f32 %v1446, 0.2
        %v1455 = vsel %vm1447, %v1443, %v1451
        %v1456 = vsel %vm1448, %v1444, %v1452
        %v1457 = vsel %vm1449, %v1445, %v1453
        %v1458 = vsel %vm1450, %v1446, %v1454
        %v1459 = vld [vmem:[%s10] sm:$0xff]
        %v1460 = vld [vmem:[%s10 + $0x8] sm:$0xff]
        %v1461 = vld [vmem:[%s10 + $0x10] sm:$0xff]
        %v1462 = vld [vmem:[%s10 + $0x18] sm:$0xff]
        %v1463 = vld [vmem:[%s10 + $0x20] sm:$0xff]
        %v1464 = vld [vmem:[%s10 + $0x28] sm:$0xff]
        %v1465 = vld [vmem:[%s10 + $0x30] sm:$0xff]
        %v1466 = vld [vmem:[%s10 + $0x38] sm:$0xff]
        %v1467 = vld [vmem:[%s10 + $0x40] sm:$0xff]
        %v1468 = vld [vmem:[%s10 + $0x48] sm:$0xff]
        %v1469 = vld [vmem:[%s10 + $0x50] sm:$0xff]
        %v1470 = vld [vmem:[%s10 + $0x58] sm:$0xff]
        %v1471 = vld [vmem:[%s10 + $0x60] sm:$0xff]
        %v1472 = vld [vmem:[%s10 + $0x68] sm:$0xff]
        %v1473 = vld [vmem:[%s10 + $0x70] sm:$0xff]
        %v1474 = vld [vmem:[%s10 + $0x78] sm:$0xff]
        %v1475 = vld [vmem:[%s10 + $0x80] sm:$0xff]
        %v1476 = vld [vmem:[%s10 + $0x88] sm:$0xff]
        %v1477 = vld [vmem:[%s10 + $0x90] sm:$0xff]
        %v1478 = vld [vmem:[%s10 + $0x98] sm:$0xff]
        %v1479 = vld [vmem:[%s10 + $0xa0] sm:$0xff]
        %v1480 = vld [vmem:[%s10 + $0xa8] sm:$0xff]
        %v1481 = vld [vmem:[%s10 + $0xb0] sm:$0xff]
        %v1482 = vld [vmem:[%s10 + $0xb8] sm:$0xff]
        %v1483 = vld [vmem:[%s10 + $0xc0] sm:$0xff]
        %v1484 = vld [vmem:[%s10 + $0xc8] sm:$0xff]
        %v1485 = vld [vmem:[%s10 + $0xd0] sm:$0xff]
        %v1486 = vld [vmem:[%s10 + $0xd8] sm:$0xff]
        %v1487 = vld [vmem:[%s10 + $0xe0] sm:$0xff]
        %v1488 = vld [vmem:[%s10 + $0xe8] sm:$0xff]
        %v1489 = vld [vmem:[%s10 + $0xf0] sm:$0xff]
        %v1490 = vld [vmem:[%s10 + $0xf8] sm:$0xff]
        %v1491 = vld [vmem:[%s10 + $0x100] sm:$0xff]
        %v1492 = vld [vmem:[%s10 + $0x108] sm:$0xff]
        %v1493 = vld [vmem:[%s10 + $0x110] sm:$0xff]
        %v1494 = vld [vmem:[%s10 + $0x118] sm:$0xff]
        %v1495 = vld [vmem:[%s10 + $0x120] sm:$0xff]
        %v1496 = vld [vmem:[%s10 + $0x128] sm:$0xff]
        %v1497 = vld [vmem:[%s10 + $0x130] sm:$0xff]
        %v1498 = vld [vmem:[%s10 + $0x138] sm:$0xff]
        %v1499 = vld [vmem:[%s10 + $0x140] sm:$0xff]
        %v1500 = vld [vmem:[%s10 + $0x148] sm:$0xff]
        %v1501 = vld [vmem:[%s10 + $0x150] sm:$0xff]
        %v1502 = vld [vmem:[%s10 + $0x158] sm:$0xff]
        %v1503 = vld [vmem:[%s10 + $0x160] sm:$0xff]
        %v1504 = vld [vmem:[%s10 + $0x168] sm:$0xff]
        %v1505 = vld [vmem:[%s10 + $0x170] sm:$0xff]
        %v1506 = vld [vmem:[%s10 + $0x178] sm:$0xff]
        %v1507 = vld [vmem:[%s10 + $0x180] sm:$0xff]
        %v1508 = vld [vmem:[%s10 + $0x188] sm:$0xff]
        %v1509 = vld [vmem:[%s10 + $0x190] sm:$0xff]
        %v1510 = vld [vmem:[%s10 + $0x198] sm:$0xff]
        %v1511 = vld [vmem:[%s10 + $0x1a0] sm:$0xff]
        %v1512 = vld [vmem:[%s10 + $0x1a8] sm:$0xff]
        %v1513 = vld [vmem:[%s10 + $0x1b0] sm:$0xff]
        %v1514 = vld [vmem:[%s10 + $0x1b8] sm:$0xff]
        %v1515 = vld [vmem:[%s10 + $0x1c0] sm:$0xff]
        %v1516 = vld [vmem:[%s10 + $0x1c8] sm:$0xff]
        %v1517 = vld [vmem:[%s10 + $0x1d0] sm:$0xff]
        %v1518 = vld [vmem:[%s10 + $0x1d8] sm:$0xff]
        %v1519 = vld [vmem:[%s10 + $0x1e0] sm:$0xff]
        %v1520 = vld [vmem:[%s10 + $0x1e8] sm:$0xff]
        %v1521 = vld [vmem:[%s10 + $0x1f0] sm:$0xff]
        %v1522 = vld [vmem:[%s10 + $0x1f8] sm:$0xff]
        %v1523 = vld [vmem:[%s11] sm:$0x1]
        %v1525 = vlaneseq
        %v1526 = vshrl.u32 %v1525, 7
        %v1527 = vsub.s32 0, %v1526
        %v1528 = vrot.slane %v1523, %v1527
        %1530 = vmatprep.subr.mxu0 0.0
        %1531 = vmatpush1.msra.mxu0 %v1474
        %1532 = vmatprep.subr.mxu0 0.0
        %1533 = vmatpush1.msra.mxu0 %v1473
        %1534 = vmatprep.subr.mxu0 0.0
        %1535 = vmatpush1.msra.mxu0 %v1472
        %1536 = vmatprep.subr.mxu0 0.0
        %1537 = vmatpush1.msra.mxu0 %v1471
        %1538 = vmatprep.subr.mxu0 0.0
        %1539 = vmatpush1.msra.mxu0 %v1470
        %1540 = vmatprep.subr.mxu0 0.0
        %1541 = vmatpush1.msra.mxu0 %v1469
        %1542 = vmatprep.subr.mxu0 0.0
        %1543 = vmatpush1.msra.mxu0 %v1468
        %1544 = vmatprep.subr.mxu0 0.0
        %1545 = vmatpush1.msra.mxu0 %v1467
        %1546 = vmatprep.subr.mxu0 0.0
        %1547 = vmatpush1.msra.mxu0 %v1466
        %1548 = vmatprep.subr.mxu0 0.0
        %1549 = vmatpush1.msra.mxu0 %v1465
        %1550 = vmatprep.subr.mxu0 0.0
        %1551 = vmatpush1.msra.mxu0 %v1464
        %1552 = vmatprep.subr.mxu0 0.0
        %1553 = vmatpush1.msra.mxu0 %v1463
        %1554 = vmatprep.subr.mxu0 0.0
        %1555 = vmatpush1.msra.mxu0 %v1462
        %1556 = vmatprep.subr.mxu0 0.0
        %1557 = vmatpush1.msra.mxu0 %v1461
        %1558 = vmatprep.subr.mxu0 0.0
        %1559 = vmatpush1.msra.mxu0 %v1460
        %1560 = vmatprep.subr.mxu0 0.0
        %1561 = vmatpush1.msra.mxu0 %v1459
        %1562 = vmatprep.subr.mxu0 0.0
        %1563 = vmatpush2.msra.mxu0 %v1490
        %1564 = vmatprep.subr.mxu0 0.0
        %1565 = vmatpush2.msra.mxu0 %v1489
        %1566 = vmatprep.subr.mxu0 0.0
        %1567 = vmatpush2.msra.mxu0 %v1488
        %1568 = vmatprep.subr.mxu0 0.0
        %1569 = vmatpush2.msra.mxu0 %v1487
        %1570 = vmatprep.subr.mxu0 0.0
        %1571 = vmatpush2.msra.mxu0 %v1486
        %1572 = vmatprep.subr.mxu0 0.0
        %1573 = vmatpush2.msra.mxu0 %v1485
        %1574 = vmatprep.subr.mxu0 0.0
        %1575 = vmatpush2.msra.mxu0 %v1484
        %1576 = vmatprep.subr.mxu0 0.0
        %1577 = vmatpush2.msra.mxu0 %v1483
        %1578 = vmatprep.subr.mxu0 0.0
        %1579 = vmatpush2.msra.mxu0 %v1482
        %1580 = vmatprep.subr.mxu0 0.0
        %1581 = vmatpush2.msra.mxu0 %v1481
        %1582 = vmatprep.subr.mxu0 0.0
        %1583 = vmatpush2.msra.mxu0 %v1480
        %1584 = vmatprep.subr.mxu0 0.0
        %1585 = vmatpush2.msra.mxu0 %v1479
        %1586 = vmatprep.subr.mxu0 0.0
        %1587 = vmatpush2.msra.mxu0 %v1478
        %1588 = vmatprep.subr.mxu0 0.0
        %1589 = vmatpush2.msra.mxu0 %v1477
        %1590 = vmatprep.subr.mxu0 0.0
        %1591 = vmatpush2.msra.mxu0 %v1476
        %1592 = vmatprep.subr.mxu0 0.0
        %1593 = vmatpush2.msra.mxu0 %v1475
        %1594 = vmatprep.mubr.f32.mxu0 %v1456
        %1595 = vmatmul.mubr.f32.gmra.mxu0 %v1455
        %v1596 = vpop.f32.mrf.mxu0
        %v1597 = vadd.f32 %v1528, %v1596
        %v1598 = vpop.f32.mrf.mxu0
        %1599 = vdwg.mxu0
        %1600 = vmatprep.subr.mxu0 0.0
        %1601 = vmatpush1.msra.mxu0 %v1506
        %1602 = vmatprep.subr.mxu0 0.0
        %1603 = vmatpush1.msra.mxu0 %v1505
        %1604 = vmatprep.subr.mxu0 0.0
        %1605 = vmatpush1.msra.mxu0 %v1504
        %1606 = vmatprep.subr.mxu0 0.0
        %1607 = vmatpush1.msra.mxu0 %v1503
        %1608 = vmatprep.subr.mxu0 0.0
        %1609 = vmatpush1.msra.mxu0 %v1502
        %1610 = vmatprep.subr.mxu0 0.0
        %1611 = vmatpush1.msra.mxu0 %v1501
        %1612 = vmatprep.subr.mxu0 0.0
        %1613 = vmatpush1.msra.mxu0 %v1500
        %1614 = vmatprep.subr.mxu0 0.0
        %1615 = vmatpush1.msra.mxu0 %v1499
        %1616 = vmatprep.subr.mxu0 0.0
        %1617 = vmatpush1.msra.mxu0 %v1498
        %1618 = vmatprep.subr.mxu0 0.0
        %1619 = vmatpush1.msra.mxu0 %v1497
        %1620 = vmatprep.subr.mxu0 0.0
        %1621 = vmatpush1.msra.mxu0 %v1496
        %1622 = vmatprep.subr.mxu0 0.0
        %1623 = vmatpush1.msra.mxu0 %v1495
        %1624 = vmatprep.subr.mxu0 0.0
        %1625 = vmatpush1.msra.mxu0 %v1494
        %1626 = vmatprep.subr.mxu0 0.0
        %1627 = vmatpush1.msra.mxu0 %v1493
        %1628 = vmatprep.subr.mxu0 0.0
        %1629 = vmatpush1.msra.mxu0 %v1492
        %1630 = vmatprep.subr.mxu0 0.0
        %1631 = vmatpush1.msra.mxu0 %v1491
        %1632 = vmatprep.subr.mxu0 0.0
        %1633 = vmatpush2.msra.mxu0 %v1522
        %1634 = vmatprep.subr.mxu0 0.0
        %1635 = vmatpush2.msra.mxu0 %v1521
        %1636 = vmatprep.subr.mxu0 0.0
        %1637 = vmatpush2.msra.mxu0 %v1520
        %1638 = vmatprep.subr.mxu0 0.0
        %1639 = vmatpush2.msra.mxu0 %v1519
        %1640 = vmatprep.subr.mxu0 0.0
        %1641 = vmatpush2.msra.mxu0 %v1518
        %1642 = vmatprep.subr.mxu0 0.0
        %1643 = vmatpush2.msra.mxu0 %v1517
        %1644 = vmatprep.subr.mxu0 0.0
        %1645 = vmatpush2.msra.mxu0 %v1516
        %1646 = vmatprep.subr.mxu0 0.0
        %1647 = vmatpush2.msra.mxu0 %v1515
        %1648 = vmatprep.subr.mxu0 0.0
        %1649 = vmatpush2.msra.mxu0 %v1514
        %1650 = vmatprep.subr.mxu0 0.0
        %1651 = vmatpush2.msra.mxu0 %v1513
        %1652 = vmatprep.subr.mxu0 0.0
        %1653 = vmatpush2.msra.mxu0 %v1512
        %1654 = vmatprep.subr.mxu0 0.0
        %1655 = vmatpush2.msra.mxu0 %v1511
        %1656 = vmatprep.subr.mxu0 0.0
        %1657 = vmatpush2.msra.mxu0 %v1510
        %1658 = vmatprep.subr.mxu0 0.0
        %1659 = vmatpush2.msra.mxu0 %v1509
        %1660 = vmatprep.subr.mxu0 0.0
        %1661 = vmatpush2.msra.mxu0 %v1508
        %1662 = vmatprep.subr.mxu0 0.0
        %1663 = vmatpush2.msra.mxu0 %v1507
        %1664 = vmatprep.mubr.f32.mxu0 %v1458
        %1665 = vmatmul.mubr.f32.gmra.mxu0 %v1457
        %v1666 = vpop.f32.mrf.mxu0
        %v1667 = vadd.f32 %v1597, %v1666
        %v1668 = vpop.f32.mrf.mxu0
        %1669 = vdwg.mxu0
        %v1670 = vld [vmem:[%s12] sm:$0x1f]
        %v1671 = vld [vmem:[%s13] sm:$0x1f]
        %v1673 = vsel %vm1133, %v1670, 0
        %1675 = vmatprep.subr.mxu0 0.0
        %1676 = vmatpush1.msra.mxu0 0.0
        %1677 = vmatprep.subr.mxu0 0.0
        %1678 = vmatpush1.msra.mxu0 0.0
        %1679 = vmatprep.subr.mxu0 0.0
        %1680 = vmatpush1.msra.mxu0 0.0
        %1681 = vmatprep.subr.mxu0 0.0
        %1682 = vmatpush1.msra.mxu0 0.0
        %1683 = vmatprep.subr.mxu0 0.0
        %1684 = vmatpush1.msra.mxu0 0.0
        %1685 = vmatprep.subr.mxu0 0.0
        %1686 = vmatpush1.msra.mxu0 0.0
        %1687 = vmatprep.subr.mxu0 0.0
        %1688 = vmatpush1.msra.mxu0 0.0
        %1689 = vmatprep.subr.mxu0 0.0
        %1690 = vmatpush1.msra.mxu0 0.0
        %1691 = vmatprep.subr.mxu0 0.0
        %1692 = vmatpush1.msra.mxu0 0.0
        %1693 = vmatprep.subr.mxu0 0.0
        %1694 = vmatpush1.msra.mxu0 0.0
        %1695 = vmatprep.subr.mxu0 0.0
        %1696 = vmatpush1.msra.mxu0 0.0
        %1697 = vmatprep.subr.mxu0 0.0
        %1698 = vmatpush1.msra.mxu0 0.0
        %1699 = vmatprep.subr.mxu0 0.0
        %1700 = vmatpush1.msra.mxu0 0.0
        %1701 = vmatprep.subr.mxu0 0.0
        %1702 = vmatpush1.msra.mxu0 0.0
        %1703 = vmatprep.subr.mxu0 0.0
        %1704 = vmatpush1.msra.mxu0 0.0
        %1705 = vmatprep.subr.mxu0 0.0
        %1706 = vmatpush1.msra.mxu0 %v1667
        %1707 = vmatprep.subr.mxu0 0.0
        %1708 = vmatpush2.msra.mxu0 0.0
        %1709 = vmatprep.subr.mxu0 0.0
        %1710 = vmatpush2.msra.mxu0 0.0
        %1711 = vmatprep.subr.mxu0 0.0
        %1712 = vmatpush2.msra.mxu0 0.0
        %1713 = vmatprep.subr.mxu0 0.0
        %1714 = vmatpush2.msra.mxu0 0.0
        %1715 = vmatprep.subr.mxu0 0.0
        %1716 = vmatpush2.msra.mxu0 0.0
        %1717 = vmatprep.subr.mxu0 0.0
        %1718 = vmatpush2.msra.mxu0 0.0
        %1719 = vmatprep.subr.mxu0 0.0
        %1720 = vmatpush2.msra.mxu0 0.0
        %1721 = vmatprep.subr.mxu0 0.0
        %1722 = vmatpush2.msra.mxu0 0.0
        %1723 = vmatprep.subr.mxu0 0.0
        %1724 = vmatpush2.msra.mxu0 0.0
        %1725 = vmatprep.subr.mxu0 0.0
        %1726 = vmatpush2.msra.mxu0 0.0
        %1727 = vmatprep.subr.mxu0 0.0
        %1728 = vmatpush2.msra.mxu0 0.0
        %1729 = vmatprep.subr.mxu0 0.0
        %1730 = vmatpush2.msra.mxu0 0.0
        %1731 = vmatprep.subr.mxu0 0.0
        %1732 = vmatpush2.msra.mxu0 0.0
        %1733 = vmatprep.subr.mxu0 0.0
        %1734 = vmatpush2.msra.mxu0 0.0
        %1735 = vmatprep.subr.mxu0 0.0
        %1736 = vmatpush2.msra.mxu0 0.0
        %1737 = vmatprep.subr.mxu0 0.0
        %1738 = vmatpush2.msra.mxu0 0.0
        %1739 = vmatprep.mubr.f32.mxu0 0.0
        %1740 = vmatmul.mubr.f32.gmra.mxu0 %v1673
        %v1741 = vpop.f32.mrf.mxu0
        %v1742 = vadd.f32 %v1671, %v1741
        %v1743 = vpop.f32.mrf.mxu0
        %1744 = vdwg.mxu0
        %vm1745 = vcmp.gt.f32.partialorder %v1742, 0.0
        %v1746 = vmul.f32 %v1742, 0.2
        %v1747 = vsel %vm1745, %v1742, %v1746
        %v1748 = vld [vmem:[%s9] sm:$0xf]
        %v1749 = vld [vmem:[%s8] sm:$0xff]
        %v1750 = vld [vmem:[%s8 + $0x8] sm:$0xff]
        %v1751 = vld [vmem:[%s8 + $0x10] sm:$0xff]
        %v1752 = vld [vmem:[%s8 + $0x18] sm:$0xff]
        %v1753 = vld [vmem:[%s8 + $0x20] sm:$0xff]
        %v1754 = vld [vmem:[%s8 + $0x28] sm:$0xff]
        %v1755 = vld [vmem:[%s8 + $0x30] sm:$0xff]
        %v1756 = vld [vmem:[%s8 + $0x38] sm:$0xff]
        %v1757 = vld [vmem:[%s8 + $0x40] sm:$0xff]
        %v1758 = vld [vmem:[%s8 + $0x48] sm:$0xff]
        %v1759 = vld [vmem:[%s8 + $0x50] sm:$0xff]
        %v1760 = vld [vmem:[%s8 + $0x58] sm:$0xff]
        %v1761 = vld [vmem:[%s8 + $0x60] sm:$0xff]
        %v1762 = vld [vmem:[%s8 + $0x68] sm:$0xff]
        %v1763 = vld [vmem:[%s8 + $0x70] sm:$0xff]
        %v1764 = vld [vmem:[%s8 + $0x78] sm:$0xff]
        %v1765 = vld [vmem:[%s8 + $0x80] sm:$0xff]
        %v1766 = vld [vmem:[%s8 + $0x88] sm:$0xff]
        %v1767 = vld [vmem:[%s8 + $0x90] sm:$0xff]
        %v1768 = vld [vmem:[%s8 + $0x98] sm:$0xff]
        %v1769 = vld [vmem:[%s8 + $0xa0] sm:$0xff]
        %v1770 = vld [vmem:[%s8 + $0xa8] sm:$0xff]
        %v1771 = vld [vmem:[%s8 + $0xb0] sm:$0xff]
        %v1772 = vld [vmem:[%s8 + $0xb8] sm:$0xff]
        %v1773 = vld [vmem:[%s8 + $0xc0] sm:$0xff]
        %v1774 = vld [vmem:[%s8 + $0xc8] sm:$0xff]
        %v1775 = vld [vmem:[%s8 + $0xd0] sm:$0xff]
        %v1776 = vld [vmem:[%s8 + $0xd8] sm:$0xff]
        %v1777 = vld [vmem:[%s8 + $0xe0] sm:$0xff]
        %v1778 = vld [vmem:[%s8 + $0xe8] sm:$0xff]
        %v1779 = vld [vmem:[%s8 + $0xf0] sm:$0xff]
        %v1780 = vld [vmem:[%s8 + $0xf8] sm:$0xff]
        %v1781 = vld [vmem:[%s8 + $0x100] sm:$0xff]
        %v1782 = vld [vmem:[%s8 + $0x108] sm:$0xff]
        %v1783 = vld [vmem:[%s8 + $0x110] sm:$0xff]
        %v1784 = vld [vmem:[%s8 + $0x118] sm:$0xff]
        %v1785 = vld [vmem:[%s8 + $0x120] sm:$0xff]
        %v1786 = vld [vmem:[%s8 + $0x128] sm:$0xff]
        %v1787 = vld [vmem:[%s8 + $0x130] sm:$0xff]
        %v1788 = vld [vmem:[%s8 + $0x138] sm:$0xff]
        %v1789 = vld [vmem:[%s8 + $0x140] sm:$0xff]
        %v1790 = vld [vmem:[%s8 + $0x148] sm:$0xff]
        %v1791 = vld [vmem:[%s8 + $0x150] sm:$0xff]
        %v1792 = vld [vmem:[%s8 + $0x158] sm:$0xff]
        %v1793 = vld [vmem:[%s8 + $0x160] sm:$0xff]
        %v1794 = vld [vmem:[%s8 + $0x168] sm:$0xff]
        %v1795 = vld [vmem:[%s8 + $0x170] sm:$0xff]
        %v1796 = vld [vmem:[%s8 + $0x178] sm:$0xff]
        %v1797 = vld [vmem:[%s8 + $0x180] sm:$0xff]
        %v1798 = vld [vmem:[%s8 + $0x188] sm:$0xff]
        %v1799 = vld [vmem:[%s8 + $0x190] sm:$0xff]
        %v1800 = vld [vmem:[%s8 + $0x198] sm:$0xff]
        %v1801 = vld [vmem:[%s8 + $0x1a0] sm:$0xff]
        %v1802 = vld [vmem:[%s8 + $0x1a8] sm:$0xff]
        %v1803 = vld [vmem:[%s8 + $0x1b0] sm:$0xff]
        %v1804 = vld [vmem:[%s8 + $0x1b8] sm:$0xff]
        %v1805 = vld [vmem:[%s8 + $0x1c0] sm:$0xff]
        %v1806 = vld [vmem:[%s8 + $0x1c8] sm:$0xff]
        %v1807 = vld [vmem:[%s8 + $0x1d0] sm:$0xff]
        %v1808 = vld [vmem:[%s8 + $0x1d8] sm:$0xff]
        %v1809 = vld [vmem:[%s8 + $0x1e0] sm:$0xff]
        %v1810 = vld [vmem:[%s8 + $0x1e8] sm:$0xff]
        %v1811 = vld [vmem:[%s8 + $0x1f0] sm:$0xff]
        %v1812 = vld [vmem:[%s8 + $0x1f8] sm:$0xff]
        %1813 = vmatprep.subr.mxu0 0.0
        %1814 = vmatpush1.msra.mxu0 %v1764
        %1815 = vmatprep.subr.mxu0 0.0
        %1816 = vmatpush1.msra.mxu0 %v1763
        %1817 = vmatprep.subr.mxu0 0.0
        %1818 = vmatpush1.msra.mxu0 %v1762
        %1819 = vmatprep.subr.mxu0 0.0
        %1820 = vmatpush1.msra.mxu0 %v1761
        %1821 = vmatprep.subr.mxu0 0.0
        %1822 = vmatpush1.msra.mxu0 %v1760
        %1823 = vmatprep.subr.mxu0 0.0
        %1824 = vmatpush1.msra.mxu0 %v1759
        %1825 = vmatprep.subr.mxu0 0.0
        %1826 = vmatpush1.msra.mxu0 %v1758
        %1827 = vmatprep.subr.mxu0 0.0
        %1828 = vmatpush1.msra.mxu0 %v1757
        %1829 = vmatprep.subr.mxu0 0.0
        %1830 = vmatpush1.msra.mxu0 %v1756
        %1831 = vmatprep.subr.mxu0 0.0
        %1832 = vmatpush1.msra.mxu0 %v1755
        %1833 = vmatprep.subr.mxu0 0.0
        %1834 = vmatpush1.msra.mxu0 %v1754
        %1835 = vmatprep.subr.mxu0 0.0
        %1836 = vmatpush1.msra.mxu0 %v1753
        %1837 = vmatprep.subr.mxu0 0.0
        %1838 = vmatpush1.msra.mxu0 %v1752
        %1839 = vmatprep.subr.mxu0 0.0
        %1840 = vmatpush1.msra.mxu0 %v1751
        %1841 = vmatprep.subr.mxu0 0.0
        %1842 = vmatpush1.msra.mxu0 %v1750
        %1843 = vmatprep.subr.mxu0 0.0
        %1844 = vmatpush1.msra.mxu0 %v1749
        %1845 = vmatprep.subr.mxu0 0.0
        %1846 = vmatpush2.msra.mxu0 %v1780
        %1847 = vmatprep.subr.mxu0 0.0
        %1848 = vmatpush2.msra.mxu0 %v1779
        %1849 = vmatprep.subr.mxu0 0.0
        %1850 = vmatpush2.msra.mxu0 %v1778
        %1851 = vmatprep.subr.mxu0 0.0
        %1852 = vmatpush2.msra.mxu0 %v1777
        %1853 = vmatprep.subr.mxu0 0.0
        %1854 = vmatpush2.msra.mxu0 %v1776
        %1855 = vmatprep.subr.mxu0 0.0
        %1856 = vmatpush2.msra.mxu0 %v1775
        %1857 = vmatprep.subr.mxu0 0.0
        %1858 = vmatpush2.msra.mxu0 %v1774
        %1859 = vmatprep.subr.mxu0 0.0
        %1860 = vmatpush2.msra.mxu0 %v1773
        %1861 = vmatprep.subr.mxu0 0.0
        %1862 = vmatpush2.msra.mxu0 %v1772
        %1863 = vmatprep.subr.mxu0 0.0
        %1864 = vmatpush2.msra.mxu0 %v1771
        %1865 = vmatprep.subr.mxu0 0.0
        %1866 = vmatpush2.msra.mxu0 %v1770
        %1867 = vmatprep.subr.mxu0 0.0
        %1868 = vmatpush2.msra.mxu0 %v1769
        %1869 = vmatprep.subr.mxu0 0.0
        %1870 = vmatpush2.msra.mxu0 %v1768
        %1871 = vmatprep.subr.mxu0 0.0
        %1872 = vmatpush2.msra.mxu0 %v1767
        %1873 = vmatprep.subr.mxu0 0.0
        %1874 = vmatpush2.msra.mxu0 %v1766
        %1875 = vmatprep.subr.mxu0 0.0
        %1876 = vmatpush2.msra.mxu0 %v1765
        %1877 = vmatprep.mubr.f32.mxu0 %v1456
        %1878 = vmatmul.mubr.f32.gmra.mxu0 %v1455
        %v1879 = vpop.f32.mrf.mxu0
        %v1880 = vadd.f32 0.0, %v1879
        %v1881 = vpop.f32.mrf.mxu0
        %1882 = vdwg.mxu0
        %1883 = vmatprep.subr.mxu0 0.0
        %1884 = vmatpush1.msra.mxu0 %v1796
        %1885 = vmatprep.subr.mxu0 0.0
        %1886 = vmatpush1.msra.mxu0 %v1795
        %1887 = vmatprep.subr.mxu0 0.0
        %1888 = vmatpush1.msra.mxu0 %v1794
        %1889 = vmatprep.subr.mxu0 0.0
        %1890 = vmatpush1.msra.mxu0 %v1793
        %1891 = vmatprep.subr.mxu0 0.0
        %1892 = vmatpush1.msra.mxu0 %v1792
        %1893 = vmatprep.subr.mxu0 0.0
        %1894 = vmatpush1.msra.mxu0 %v1791
        %1895 = vmatprep.subr.mxu0 0.0
        %1896 = vmatpush1.msra.mxu0 %v1790
        %1897 = vmatprep.subr.mxu0 0.0
        %1898 = vmatpush1.msra.mxu0 %v1789
        %1899 = vmatprep.subr.mxu0 0.0
        %1900 = vmatpush1.msra.mxu0 %v1788
        %1901 = vmatprep.subr.mxu0 0.0
        %1902 = vmatpush1.msra.mxu0 %v1787
        %1903 = vmatprep.subr.mxu0 0.0
        %1904 = vmatpush1.msra.mxu0 %v1786
        %1905 = vmatprep.subr.mxu0 0.0
        %1906 = vmatpush1.msra.mxu0 %v1785
        %1907 = vmatprep.subr.mxu0 0.0
        %1908 = vmatpush1.msra.mxu0 %v1784
        %1909 = vmatprep.subr.mxu0 0.0
        %1910 = vmatpush1.msra.mxu0 %v1783
        %1911 = vmatprep.subr.mxu0 0.0
        %1912 = vmatpush1.msra.mxu0 %v1782
        %1913 = vmatprep.subr.mxu0 0.0
        %1914 = vmatpush1.msra.mxu0 %v1781
        %1915 = vmatprep.subr.mxu0 0.0
        %1916 = vmatpush2.msra.mxu0 %v1812
        %1917 = vmatprep.subr.mxu0 0.0
        %1918 = vmatpush2.msra.mxu0 %v1811
        %1919 = vmatprep.subr.mxu0 0.0
        %1920 = vmatpush2.msra.mxu0 %v1810
        %1921 = vmatprep.subr.mxu0 0.0
        %1922 = vmatpush2.msra.mxu0 %v1809
        %1923 = vmatprep.subr.mxu0 0.0
        %1924 = vmatpush2.msra.mxu0 %v1808
        %1925 = vmatprep.subr.mxu0 0.0
        %1926 = vmatpush2.msra.mxu0 %v1807
        %1927 = vmatprep.subr.mxu0 0.0
        %1928 = vmatpush2.msra.mxu0 %v1806
        %1929 = vmatprep.subr.mxu0 0.0
        %1930 = vmatpush2.msra.mxu0 %v1805
        %1931 = vmatprep.subr.mxu0 0.0
        %1932 = vmatpush2.msra.mxu0 %v1804
        %1933 = vmatprep.subr.mxu0 0.0
        %1934 = vmatpush2.msra.mxu0 %v1803
        %1935 = vmatprep.subr.mxu0 0.0
        %1936 = vmatpush2.msra.mxu0 %v1802
        %1937 = vmatprep.subr.mxu0 0.0
        %1938 = vmatpush2.msra.mxu0 %v1801
        %1939 = vmatprep.subr.mxu0 0.0
        %1940 = vmatpush2.msra.mxu0 %v1800
        %1941 = vmatprep.subr.mxu0 0.0
        %1942 = vmatpush2.msra.mxu0 %v1799
        %1943 = vmatprep.subr.mxu0 0.0
        %1944 = vmatpush2.msra.mxu0 %v1798
        %1945 = vmatprep.subr.mxu0 0.0
        %1946 = vmatpush2.msra.mxu0 %v1797
        %1947 = vmatprep.mubr.f32.mxu0 %v1458
        %1948 = vmatmul.mubr.f32.gmra.mxu0 %v1457
        %v1949 = vpop.f32.mrf.mxu0
        %v1950 = vadd.f32 %v1880, %v1949
        %v1951 = vpop.f32.mrf.mxu0
        %1952 = vdwg.mxu0
        %v1954 = vsel %vm1133, %v1748, 0
        %1956 = vmatprep.subr.mxu0 0.0
        %1957 = vmatpush1.msra.mxu0 0.0
        %1958 = vmatprep.subr.mxu0 0.0
        %1959 = vmatpush1.msra.mxu0 0.0
        %1960 = vmatprep.subr.mxu0 0.0
        %1961 = vmatpush1.msra.mxu0 0.0
        %1962 = vmatprep.subr.mxu0 0.0
        %1963 = vmatpush1.msra.mxu0 0.0
        %1964 = vmatprep.subr.mxu0 0.0
        %1965 = vmatpush1.msra.mxu0 0.0
        %1966 = vmatprep.subr.mxu0 0.0
        %1967 = vmatpush1.msra.mxu0 0.0
        %1968 = vmatprep.subr.mxu0 0.0
        %1969 = vmatpush1.msra.mxu0 0.0
        %1970 = vmatprep.subr.mxu0 0.0
        %1971 = vmatpush1.msra.mxu0 0.0
        %1972 = vmatprep.subr.mxu0 0.0
        %1973 = vmatpush1.msra.mxu0 0.0
        %1974 = vmatprep.subr.mxu0 0.0
        %1975 = vmatpush1.msra.mxu0 0.0
        %1976 = vmatprep.subr.mxu0 0.0
        %1977 = vmatpush1.msra.mxu0 0.0
        %1978 = vmatprep.subr.mxu0 0.0
        %1979 = vmatpush1.msra.mxu0 0.0
        %1980 = vmatprep.subr.mxu0 0.0
        %1981 = vmatpush1.msra.mxu0 0.0
        %1982 = vmatprep.subr.mxu0 0.0
        %1983 = vmatpush1.msra.mxu0 0.0
        %1984 = vmatprep.subr.mxu0 0.0
        %1985 = vmatpush1.msra.mxu0 0.0
        %1986 = vmatprep.subr.mxu0 0.0
        %1987 = vmatpush1.msra.mxu0 %v1950
        %1988 = vmatprep.subr.mxu0 0.0
        %1989 = vmatpush2.msra.mxu0 0.0
        %1990 = vmatprep.subr.mxu0 0.0
        %1991 = vmatpush2.msra.mxu0 0.0
        %1992 = vmatprep.subr.mxu0 0.0
        %1993 = vmatpush2.msra.mxu0 0.0
        %1994 = vmatprep.subr.mxu0 0.0
        %1995 = vmatpush2.msra.mxu0 0.0
        %1996 = vmatprep.subr.mxu0 0.0
        %1997 = vmatpush2.msra.mxu0 0.0
        %1998 = vmatprep.subr.mxu0 0.0
        %1999 = vmatpush2.msra.mxu0 0.0
        %2000 = vmatprep.subr.mxu0 0.0
        %2001 = vmatpush2.msra.mxu0 0.0
        %2002 = vmatprep.subr.mxu0 0.0
        %2003 = vmatpush2.msra.mxu0 0.0
        %2004 = vmatprep.subr.mxu0 0.0
        %2005 = vmatpush2.msra.mxu0 0.0
        %2006 = vmatprep.subr.mxu0 0.0
        %2007 = vmatpush2.msra.mxu0 0.0
        %2008 = vmatprep.subr.mxu0 0.0
        %2009 = vmatpush2.msra.mxu0 0.0
        %2010 = vmatprep.subr.mxu0 0.0
        %2011 = vmatpush2.msra.mxu0 0.0
        %2012 = vmatprep.subr.mxu0 0.0
        %2013 = vmatpush2.msra.mxu0 0.0
        %2014 = vmatprep.subr.mxu0 0.0
        %2015 = vmatpush2.msra.mxu0 0.0
        %2016 = vmatprep.subr.mxu0 0.0
        %2017 = vmatpush2.msra.mxu0 0.0
        %2018 = vmatprep.subr.mxu0 0.0
        %2019 = vmatpush2.msra.mxu0 0.0
        %2020 = vmatprep.mubr.f32.mxu0 0.0
        %2021 = vmatmul.mubr.f32.gmra.mxu0 %v1954
        %v2022 = vpop.f32.mrf.mxu0
        %v2023 = vadd.f32 0.0, %v2022
        %v2024 = vpop.f32.mrf.mxu0
        %2025 = vdwg.mxu0
        %s2026 = scalar_lea.vmem %s4, 256
        %v2027 = vld [vmem:[%s2026] sm:$0xff]
        %v2028 = vld [vmem:[%s2026 + $0x8] sm:$0xff]
        %v2029 = vld [vmem:[%s2026 + $0x10] sm:$0xff]
        %v2030 = vld [vmem:[%s2026 + $0x18] sm:$0xff]
        %v2031 = vld [vmem:[%s2026 + $0x20] sm:$0xff]
        %v2032 = vld [vmem:[%s2026 + $0x28] sm:$0xff]
        %v2033 = vld [vmem:[%s2026 + $0x30] sm:$0xff]
        %v2034 = vld [vmem:[%s2026 + $0x38] sm:$0xff]
        %v2035 = vld [vmem:[%s2026 + $0x40] sm:$0xff]
        %v2036 = vld [vmem:[%s2026 + $0x48] sm:$0xff]
        %v2037 = vld [vmem:[%s2026 + $0x50] sm:$0xff]
        %v2038 = vld [vmem:[%s2026 + $0x58] sm:$0xff]
        %v2039 = vld [vmem:[%s2026 + $0x60] sm:$0xff]
        %v2040 = vld [vmem:[%s2026 + $0x68] sm:$0xff]
        %v2041 = vld [vmem:[%s2026 + $0x70] sm:$0xff]
        %v2042 = vld [vmem:[%s2026 + $0x78] sm:$0xff]
        %v2043 = vld [vmem:[%s2026 + $0x80] sm:$0xff]
        %v2044 = vld [vmem:[%s2026 + $0x88] sm:$0xff]
        %v2045 = vld [vmem:[%s2026 + $0x90] sm:$0xff]
        %v2046 = vld [vmem:[%s2026 + $0x98] sm:$0xff]
        %v2047 = vld [vmem:[%s2026 + $0xa0] sm:$0xff]
        %v2048 = vld [vmem:[%s2026 + $0xa8] sm:$0xff]
        %v2049 = vld [vmem:[%s2026 + $0xb0] sm:$0xff]
        %v2050 = vld [vmem:[%s2026 + $0xb8] sm:$0xff]
        %v2051 = vld [vmem:[%s2026 + $0xc0] sm:$0xff]
        %v2052 = vld [vmem:[%s2026 + $0xc8] sm:$0xff]
        %v2053 = vld [vmem:[%s2026 + $0xd0] sm:$0xff]
        %v2054 = vld [vmem:[%s2026 + $0xd8] sm:$0xff]
        %v2055 = vld [vmem:[%s2026 + $0xe0] sm:$0xff]
        %v2056 = vld [vmem:[%s2026 + $0xe8] sm:$0xff]
        %v2057 = vld [vmem:[%s2026 + $0xf0] sm:$0xff]
        %v2058 = vld [vmem:[%s2026 + $0xf8] sm:$0xff]
        %v2059 = vld [vmem:[%s4] sm:$0xff]
        %v2060 = vld [vmem:[%s4 + $0x8] sm:$0xff]
        %v2061 = vld [vmem:[%s4 + $0x10] sm:$0xff]
        %v2062 = vld [vmem:[%s4 + $0x18] sm:$0xff]
        %v2063 = vld [vmem:[%s4 + $0x20] sm:$0xff]
        %v2064 = vld [vmem:[%s4 + $0x28] sm:$0xff]
        %v2065 = vld [vmem:[%s4 + $0x30] sm:$0xff]
        %v2066 = vld [vmem:[%s4 + $0x38] sm:$0xff]
        %v2067 = vld [vmem:[%s4 + $0x40] sm:$0xff]
        %v2068 = vld [vmem:[%s4 + $0x48] sm:$0xff]
        %v2069 = vld [vmem:[%s4 + $0x50] sm:$0xff]
        %v2070 = vld [vmem:[%s4 + $0x58] sm:$0xff]
        %v2071 = vld [vmem:[%s4 + $0x60] sm:$0xff]
        %v2072 = vld [vmem:[%s4 + $0x68] sm:$0xff]
        %v2073 = vld [vmem:[%s4 + $0x70] sm:$0xff]
        %v2074 = vld [vmem:[%s4 + $0x78] sm:$0xff]
        %v2075 = vld [vmem:[%s4 + $0x80] sm:$0xff]
        %v2076 = vld [vmem:[%s4 + $0x88] sm:$0xff]
        %v2077 = vld [vmem:[%s4 + $0x90] sm:$0xff]
        %v2078 = vld [vmem:[%s4 + $0x98] sm:$0xff]
        %v2079 = vld [vmem:[%s4 + $0xa0] sm:$0xff]
        %v2080 = vld [vmem:[%s4 + $0xa8] sm:$0xff]
        %v2081 = vld [vmem:[%s4 + $0xb0] sm:$0xff]
        %v2082 = vld [vmem:[%s4 + $0xb8] sm:$0xff]
        %v2083 = vld [vmem:[%s4 + $0xc0] sm:$0xff]
        %v2084 = vld [vmem:[%s4 + $0xc8] sm:$0xff]
        %v2085 = vld [vmem:[%s4 + $0xd0] sm:$0xff]
        %v2086 = vld [vmem:[%s4 + $0xd8] sm:$0xff]
        %v2087 = vld [vmem:[%s4 + $0xe0] sm:$0xff]
        %v2088 = vld [vmem:[%s4 + $0xe8] sm:$0xff]
        %v2089 = vld [vmem:[%s4 + $0xf0] sm:$0xff]
        %v2090 = vld [vmem:[%s4 + $0xf8] sm:$0xff]
        %2091 = vmatprep.subr.mxu0 %v2090
        %2092 = vmatpush1.msra.mxu0 %v2089
        %2093 = vmatprep.subr.mxu0 %v2088
        %2094 = vmatpush1.msra.mxu0 %v2087
        %2095 = vmatprep.subr.mxu0 %v2086
        %2096 = vmatpush1.msra.mxu0 %v2085
        %2097 = vmatprep.subr.mxu0 %v2084
        %2098 = vmatpush1.msra.mxu0 %v2083
        %2099 = vmatprep.subr.mxu0 %v2082
        %2100 = vmatpush1.msra.mxu0 %v2081
        %2101 = vmatprep.subr.mxu0 %v2080
        %2102 = vmatpush1.msra.mxu0 %v2079
        %2103 = vmatprep.subr.mxu0 %v2078
        %2104 = vmatpush1.msra.mxu0 %v2077
        %2105 = vmatprep.subr.mxu0 %v2076
        %2106 = vmatpush1.msra.mxu0 %v2075
        %2107 = vmatprep.subr.mxu0 %v2074
        %2108 = vmatpush1.msra.mxu0 %v2073
        %2109 = vmatprep.subr.mxu0 %v2072
        %2110 = vmatpush1.msra.mxu0 %v2071
        %2111 = vmatprep.subr.mxu0 %v2070
        %2112 = vmatpush1.msra.mxu0 %v2069
        %2113 = vmatprep.subr.mxu0 %v2068
        %2114 = vmatpush1.msra.mxu0 %v2067
        %2115 = vmatprep.subr.mxu0 %v2066
        %2116 = vmatpush1.msra.mxu0 %v2065
        %2117 = vmatprep.subr.mxu0 %v2064
        %2118 = vmatpush1.msra.mxu0 %v2063
        %2119 = vmatprep.subr.mxu0 %v2062
        %2120 = vmatpush1.msra.mxu0 %v2061
        %2121 = vmatprep.subr.mxu0 %v2060
        %2122 = vmatpush1.msra.mxu0 %v2059
        %2123 = vmatprep.subr.mxu0 0.0
        %2124 = vmatpush2.msra.mxu0 0.0
        %2125 = vmatprep.subr.mxu0 0.0
        %2126 = vmatpush2.msra.mxu0 0.0
        %2127 = vmatprep.subr.mxu0 0.0
        %2128 = vmatpush2.msra.mxu0 0.0
        %2129 = vmatprep.subr.mxu0 0.0
        %2130 = vmatpush2.msra.mxu0 0.0
        %2131 = vmatprep.subr.mxu0 0.0
        %2132 = vmatpush2.msra.mxu0 0.0
        %2133 = vmatprep.subr.mxu0 0.0
        %2134 = vmatpush2.msra.mxu0 0.0
        %2135 = vmatprep.subr.mxu0 0.0
        %2136 = vmatpush2.msra.mxu0 0.0
        %2137 = vmatprep.subr.mxu0 0.0
        %2138 = vmatpush2.msra.mxu0 0.0
        %2139 = vmatprep.subr.mxu0 0.0
        %2140 = vmatpush2.msra.mxu0 0.0
        %2141 = vmatprep.subr.mxu0 0.0
        %2142 = vmatpush2.msra.mxu0 0.0
        %2143 = vmatprep.subr.mxu0 0.0
        %2144 = vmatpush2.msra.mxu0 0.0
        %2145 = vmatprep.subr.mxu0 0.0
        %2146 = vmatpush2.msra.mxu0 0.0
        %2147 = vmatprep.subr.mxu0 0.0
        %2148 = vmatpush2.msra.mxu0 0.0
        %2149 = vmatprep.subr.mxu0 0.0
        %2150 = vmatpush2.msra.mxu0 0.0
        %2151 = vmatprep.subr.mxu0 0.0
        %2152 = vmatpush2.msra.mxu0 0.0
        %2153 = vmatprep.subr.mxu0 0.0
        %2154 = vmatpush2.msra.mxu0 0.0
        %2155 = vmatprep.mubr.f32.mxu0 0.0
        %2156 = vmatmul.mubr.f32.gmra.mxu0 %v2023
        %v2157 = vpop.f32.mrf.mxu0
        %v2158 = vadd.f32 0.0, %v2157
        %v2159 = vpop.f32.mrf.mxu0
        %v2160 = vadd.f32 0.0, %v2159
        %2161 = vdwg.mxu0
        %vm2162 = vcmask 31744
        %v2163 = vsel %vm2162, %v926, 0
        %vm2165 = vcmask 1043456
        %v2167 = vsel %vm2165, %v2158, 0
        %v2170 = vsel %vm2165, %v2160, 0
        %2172 = vmatprep.subr.mxu0 0.0
        %2173 = vmatpush1.msra.mxu0 0.0
        %2174 = vmatprep.subr.mxu0 0.0
        %2175 = vmatpush1.msra.mxu0 0.0
        %2176 = vmatprep.subr.mxu0 0.0
        %2177 = vmatpush1.msra.mxu0 0.0
        %2178 = vmatprep.subr.mxu0 0.0
        %2179 = vmatpush1.msra.mxu0 0.0
        %2180 = vmatprep.subr.mxu0 0.0
        %2181 = vmatpush1.msra.mxu0 0.0
        %2182 = vmatprep.subr.mxu0 0.0
        %2183 = vmatpush1.msra.mxu0 0.0
        %2184 = vmatprep.subr.mxu0 0.0
        %2185 = vmatpush1.msra.mxu0 0.0
        %2186 = vmatprep.subr.mxu0 0.0
        %2187 = vmatpush1.msra.mxu0 0.0
        %2188 = vmatprep.subr.mxu0 0.0
        %2189 = vmatpush1.msra.mxu0 0.0
        %2190 = vmatprep.subr.mxu0 0.0
        %2191 = vmatpush1.msra.mxu0 0.0
        %2192 = vmatprep.subr.mxu0 0.0
        %2193 = vmatpush1.msra.mxu0 0.0
        %2194 = vmatprep.subr.mxu0 0.0
        %2195 = vmatpush1.msra.mxu0 0.0
        %2196 = vmatprep.subr.mxu0 0.0
        %2197 = vmatpush1.msra.mxu0 0.0
        %2198 = vmatprep.subr.mxu0 0.0
        %2199 = vmatpush1.msra.mxu0 0.0
        %2200 = vmatprep.subr.mxu0 0.0
        %2201 = vmatpush1.msra.mxu0 0.0
        %2202 = vmatprep.subr.mxu0 %v2170
        %2203 = vmatpush1.msra.mxu0 %v2167
        %2204 = vmatprep.subr.mxu0 0.0
        %2205 = vmatpush2.msra.mxu0 0.0
        %2206 = vmatprep.subr.mxu0 0.0
        %2207 = vmatpush2.msra.mxu0 0.0
        %2208 = vmatprep.subr.mxu0 0.0
        %2209 = vmatpush2.msra.mxu0 0.0
        %2210 = vmatprep.subr.mxu0 0.0
        %2211 = vmatpush2.msra.mxu0 0.0
        %2212 = vmatprep.subr.mxu0 0.0
        %2213 = vmatpush2.msra.mxu0 0.0
        %2214 = vmatprep.subr.mxu0 0.0
        %2215 = vmatpush2.msra.mxu0 0.0
        %2216 = vmatprep.subr.mxu0 0.0
        %2217 = vmatpush2.msra.mxu0 0.0
        %2218 = vmatprep.subr.mxu0 0.0
        %2219 = vmatpush2.msra.mxu0 0.0
        %2220 = vmatprep.subr.mxu0 0.0
        %2221 = vmatpush2.msra.mxu0 0.0
        %2222 = vmatprep.subr.mxu0 0.0
        %2223 = vmatpush2.msra.mxu0 0.0
        %2224 = vmatprep.subr.mxu0 0.0
        %2225 = vmatpush2.msra.mxu0 0.0
        %2226 = vmatprep.subr.mxu0 0.0
        %2227 = vmatpush2.msra.mxu0 0.0
        %2228 = vmatprep.subr.mxu0 0.0
        %2229 = vmatpush2.msra.mxu0 0.0
        %2230 = vmatprep.subr.mxu0 0.0
        %2231 = vmatpush2.msra.mxu0 0.0
        %2232 = vmatprep.subr.mxu0 0.0
        %2233 = vmatpush2.msra.mxu0 0.0
        %2234 = vmatprep.subr.mxu0 0.0
        %2235 = vmatpush2.msra.mxu0 0.0
        %2236 = vmatprep.mubr.f32.mxu0 0.0
        %2237 = vmatmul.mubr.f32.gmra.mxu0 %v2163
        %v2238 = vpop.f32.mrf.mxu0
        %v2239 = vadd.f32 0.0, %v2238
        %v2240 = vpop.f32.mrf.mxu0
        %v2241 = vadd.f32 0.0, %v2240
        %2242 = vdwg.mxu0
        %2243 = vmatprep.subr.mxu0 %v2058
        %2244 = vmatpush1.msra.mxu0 %v2057
        %2245 = vmatprep.subr.mxu0 %v2056
        %2246 = vmatpush1.msra.mxu0 %v2055
        %2247 = vmatprep.subr.mxu0 %v2054
        %2248 = vmatpush1.msra.mxu0 %v2053
        %2249 = vmatprep.subr.mxu0 %v2052
        %2250 = vmatpush1.msra.mxu0 %v2051
        %2251 = vmatprep.subr.mxu0 %v2050
        %2252 = vmatpush1.msra.mxu0 %v2049
        %2253 = vmatprep.subr.mxu0 %v2048
        %2254 = vmatpush1.msra.mxu0 %v2047
        %2255 = vmatprep.subr.mxu0 %v2046
        %2256 = vmatpush1.msra.mxu0 %v2045
        %2257 = vmatprep.subr.mxu0 %v2044
        %2258 = vmatpush1.msra.mxu0 %v2043
        %2259 = vmatprep.subr.mxu0 %v2042
        %2260 = vmatpush1.msra.mxu0 %v2041
        %2261 = vmatprep.subr.mxu0 %v2040
        %2262 = vmatpush1.msra.mxu0 %v2039
        %2263 = vmatprep.subr.mxu0 %v2038
        %2264 = vmatpush1.msra.mxu0 %v2037
        %2265 = vmatprep.subr.mxu0 %v2036
        %2266 = vmatpush1.msra.mxu0 %v2035
        %2267 = vmatprep.subr.mxu0 %v2034
        %2268 = vmatpush1.msra.mxu0 %v2033
        %2269 = vmatprep.subr.mxu0 %v2032
        %2270 = vmatpush1.msra.mxu0 %v2031
        %2271 = vmatprep.subr.mxu0 %v2030
        %2272 = vmatpush1.msra.mxu0 %v2029
        %2273 = vmatprep.subr.mxu0 %v2028
        %2274 = vmatpush1.msra.mxu0 %v2027
        %2275 = vmatprep.subr.mxu0 0.0
        %2276 = vmatpush2.msra.mxu0 0.0
        %2277 = vmatprep.subr.mxu0 0.0
        %2278 = vmatpush2.msra.mxu0 0.0
        %2279 = vmatprep.subr.mxu0 0.0
        %2280 = vmatpush2.msra.mxu0 0.0
        %2281 = vmatprep.subr.mxu0 0.0
        %2282 = vmatpush2.msra.mxu0 0.0
        %2283 = vmatprep.subr.mxu0 0.0
        %2284 = vmatpush2.msra.mxu0 0.0
        %2285 = vmatprep.subr.mxu0 0.0
        %2286 = vmatpush2.msra.mxu0 0.0
        %2287 = vmatprep.subr.mxu0 0.0
        %2288 = vmatpush2.msra.mxu0 0.0
        %2289 = vmatprep.subr.mxu0 0.0
        %2290 = vmatpush2.msra.mxu0 0.0
        %2291 = vmatprep.subr.mxu0 0.0
        %2292 = vmatpush2.msra.mxu0 0.0
        %2293 = vmatprep.subr.mxu0 0.0
        %2294 = vmatpush2.msra.mxu0 0.0
        %2295 = vmatprep.subr.mxu0 0.0
        %2296 = vmatpush2.msra.mxu0 0.0
        %2297 = vmatprep.subr.mxu0 0.0
        %2298 = vmatpush2.msra.mxu0 0.0
        %2299 = vmatprep.subr.mxu0 0.0
        %2300 = vmatpush2.msra.mxu0 0.0
        %2301 = vmatprep.subr.mxu0 0.0
        %2302 = vmatpush2.msra.mxu0 0.0
        %2303 = vmatprep.subr.mxu0 0.0
        %2304 = vmatpush2.msra.mxu0 0.0
        %2305 = vmatprep.subr.mxu0 0.0
        %2306 = vmatpush2.msra.mxu0 0.0
        %2307 = vmatprep.mubr.f32.mxu0 0.0
        %2308 = vmatmul.mubr.f32.gmra.mxu0 %v2023
        %v2309 = vpop.f32.mrf.mxu0
        %v2310 = vadd.f32 %v2239, %v2309
        %v2311 = vpop.f32.mrf.mxu0
        %v2312 = vadd.f32 %v2241, %v2311
        %2313 = vdwg.mxu0
        %v2314 = vld [vmem:[%s5] sm:$0x3]
        %v2316 = vlaneseq
        %v2317 = vshrl.u32 %v2316, 7
        %v2318 = vsub.s32 0, %v2317
        %v2319 = vrot.slane %v2314, %v2318
        %v2320 = vlaneseq
        %v2321 = vshrl.u32 %v2320, 7
        %v2322 = vsub.s32 1, %v2321
        %v2323 = vrot.slane %v2314, %v2322
        %v2326 = vadd.f32 %v2310, %v2319
        %v2327 = vadd.f32 %v2312, %v2323
        %v2328 = vld [vmem:[%s6] sm:$0xff]
        %v2329 = vld [vmem:[%s6 + $0x8] sm:$0xff]
        %v2330 = vld [vmem:[%s6 + $0x10] sm:$0xff]
        %v2331 = vld [vmem:[%s6 + $0x18] sm:$0xff]
        %v2332 = vld [vmem:[%s6 + $0x20] sm:$0xff]
        %v2333 = vld [vmem:[%s6 + $0x28] sm:$0xff]
        %v2334 = vld [vmem:[%s6 + $0x30] sm:$0xff]
        %v2335 = vld [vmem:[%s6 + $0x38] sm:$0xff]
        %v2336 = vld [vmem:[%s6 + $0x40] sm:$0xff]
        %v2337 = vld [vmem:[%s6 + $0x48] sm:$0xff]
        %v2338 = vld [vmem:[%s6 + $0x50] sm:$0xff]
        %v2339 = vld [vmem:[%s6 + $0x58] sm:$0xff]
        %v2340 = vld [vmem:[%s6 + $0x60] sm:$0xff]
        %v2341 = vld [vmem:[%s6 + $0x68] sm:$0xff]
        %v2342 = vld [vmem:[%s6 + $0x70] sm:$0xff]
        %v2343 = vld [vmem:[%s6 + $0x78] sm:$0xff]
        %v2344 = vld [vmem:[%s6 + $0x80] sm:$0xff]
        %v2345 = vld [vmem:[%s6 + $0x88] sm:$0xff]
        %v2346 = vld [vmem:[%s6 + $0x90] sm:$0xff]
        %v2347 = vld [vmem:[%s6 + $0x98] sm:$0xff]
        %v2348 = vld [vmem:[%s6 + $0xa0] sm:$0xff]
        %v2349 = vld [vmem:[%s6 + $0xa8] sm:$0xff]
        %v2350 = vld [vmem:[%s6 + $0xb0] sm:$0xff]
        %v2351 = vld [vmem:[%s6 + $0xb8] sm:$0xff]
        %v2352 = vld [vmem:[%s6 + $0xc0] sm:$0xff]
        %v2353 = vld [vmem:[%s6 + $0xc8] sm:$0xff]
        %v2354 = vld [vmem:[%s6 + $0xd0] sm:$0xff]
        %v2355 = vld [vmem:[%s6 + $0xd8] sm:$0xff]
        %v2356 = vld [vmem:[%s6 + $0xe0] sm:$0xff]
        %v2357 = vld [vmem:[%s6 + $0xe8] sm:$0xff]
        %v2358 = vld [vmem:[%s6 + $0xf0] sm:$0xff]
        %v2359 = vld [vmem:[%s6 + $0xf8] sm:$0xff]
        %v2360 = vld [vmem:[%s7] sm:$0x3]
        %v2362 = vlaneseq
        %v2363 = vshrl.u32 %v2362, 7
        %v2364 = vsub.s32 0, %v2363
        %v2365 = vrot.slane %v2360, %v2364
        %v2366 = vlaneseq
        %v2367 = vshrl.u32 %v2366, 7
        %v2368 = vsub.s32 1, %v2367
        %v2369 = vrot.slane %v2360, %v2368
        %2372 = vmatprep.subr.mxu0 %v2359
        %2373 = vmatpush1.msra.mxu0 %v2358
        %2374 = vmatprep.subr.mxu0 %v2357
        %2375 = vmatpush1.msra.mxu0 %v2356
        %2376 = vmatprep.subr.mxu0 %v2355
        %2377 = vmatpush1.msra.mxu0 %v2354
        %2378 = vmatprep.subr.mxu0 %v2353
        %2379 = vmatpush1.msra.mxu0 %v2352
        %2380 = vmatprep.subr.mxu0 %v2351
        %2381 = vmatpush1.msra.mxu0 %v2350
        %2382 = vmatprep.subr.mxu0 %v2349
        %2383 = vmatpush1.msra.mxu0 %v2348
        %2384 = vmatprep.subr.mxu0 %v2347
        %2385 = vmatpush1.msra.mxu0 %v2346
        %2386 = vmatprep.subr.mxu0 %v2345
        %2387 = vmatpush1.msra.mxu0 %v2344
        %2388 = vmatprep.subr.mxu0 %v2343
        %2389 = vmatpush1.msra.mxu0 %v2342
        %2390 = vmatprep.subr.mxu0 %v2341
        %2391 = vmatpush1.msra.mxu0 %v2340
        %2392 = vmatprep.subr.mxu0 %v2339
        %2393 = vmatpush1.msra.mxu0 %v2338
        %2394 = vmatprep.subr.mxu0 %v2337
        %2395 = vmatpush1.msra.mxu0 %v2336
        %2396 = vmatprep.subr.mxu0 %v2335
        %2397 = vmatpush1.msra.mxu0 %v2334
        %2398 = vmatprep.subr.mxu0 %v2333
        %2399 = vmatpush1.msra.mxu0 %v2332
        %2400 = vmatprep.subr.mxu0 %v2331
        %2401 = vmatpush1.msra.mxu0 %v2330
        %2402 = vmatprep.subr.mxu0 %v2329
        %2403 = vmatpush1.msra.mxu0 %v2328
        %2404 = vmatprep.subr.mxu0 0.0
        %2405 = vmatpush2.msra.mxu0 0.0
        %2406 = vmatprep.subr.mxu0 0.0
        %2407 = vmatpush2.msra.mxu0 0.0
        %2408 = vmatprep.subr.mxu0 0.0
        %2409 = vmatpush2.msra.mxu0 0.0
        %2410 = vmatprep.subr.mxu0 0.0
        %2411 = vmatpush2.msra.mxu0 0.0
        %2412 = vmatprep.subr.mxu0 0.0
        %2413 = vmatpush2.msra.mxu0 0.0
        %2414 = vmatprep.subr.mxu0 0.0
        %2415 = vmatpush2.msra.mxu0 0.0
        %2416 = vmatprep.subr.mxu0 0.0
        %2417 = vmatpush2.msra.mxu0 0.0
        %2418 = vmatprep.subr.mxu0 0.0
        %2419 = vmatpush2.msra.mxu0 0.0
        %2420 = vmatprep.subr.mxu0 0.0
        %2421 = vmatpush2.msra.mxu0 0.0
        %2422 = vmatprep.subr.mxu0 0.0
        %2423 = vmatpush2.msra.mxu0 0.0
        %2424 = vmatprep.subr.mxu0 0.0
        %2425 = vmatpush2.msra.mxu0 0.0
        %2426 = vmatprep.subr.mxu0 0.0
        %2427 = vmatpush2.msra.mxu0 0.0
        %2428 = vmatprep.subr.mxu0 0.0
        %2429 = vmatpush2.msra.mxu0 0.0
        %2430 = vmatprep.subr.mxu0 0.0
        %2431 = vmatpush2.msra.mxu0 0.0
        %2432 = vmatprep.subr.mxu0 0.0
        %2433 = vmatpush2.msra.mxu0 0.0
        %2434 = vmatprep.subr.mxu0 0.0
        %2435 = vmatpush2.msra.mxu0 0.0
        %2436 = vmatprep.mubr.f32.mxu0 0.0
        %2437 = vmatmul.mubr.f32.gmra.mxu0 %v2023
        %v2438 = vpop.f32.mrf.mxu0
        %v2439 = vadd.f32 %v2365, %v2438
        %v2440 = vpop.f32.mrf.mxu0
        %v2441 = vadd.f32 %v2369, %v2440
        %2442 = vdwg.mxu0
        %v2443 = vadd.f32 %v2326, %v2439
        %v2444 = vadd.f32 %v2327, %v2441
        %vm2445 = vcmp.gt.f32.partialorder %v2443, 0.0
        %vm2446 = vcmp.gt.f32.partialorder %v2444, 0.0
        %v2447 = vmul.f32 %v2443, 0.2
        %v2448 = vmul.f32 %v2444, 0.2
        %v2449 = vsel %vm2445, %v2443, %v2447
        %v2450 = vsel %vm2446, %v2444, %v2448
        %v2451 = vld [vmem:[%s14] sm:$0xff]
        %v2452 = vld [vmem:[%s14 + $0x8] sm:$0xff]
        %v2453 = vld [vmem:[%s14 + $0x10] sm:$0xff]
        %v2454 = vld [vmem:[%s14 + $0x18] sm:$0xff]
        %v2455 = vld [vmem:[%s14 + $0x20] sm:$0xff]
        %v2456 = vld [vmem:[%s14 + $0x28] sm:$0xff]
        %v2457 = vld [vmem:[%s14 + $0x30] sm:$0xff]
        %v2458 = vld [vmem:[%s14 + $0x38] sm:$0xff]
        %v2459 = vld [vmem:[%s14 + $0x40] sm:$0xff]
        %v2460 = vld [vmem:[%s14 + $0x48] sm:$0xff]
        %v2461 = vld [vmem:[%s14 + $0x50] sm:$0xff]
        %v2462 = vld [vmem:[%s14 + $0x58] sm:$0xff]
        %v2463 = vld [vmem:[%s14 + $0x60] sm:$0xff]
        %v2464 = vld [vmem:[%s14 + $0x68] sm:$0xff]
        %v2465 = vld [vmem:[%s14 + $0x70] sm:$0xff]
        %v2466 = vld [vmem:[%s14 + $0x78] sm:$0xff]
        %v2467 = vld [vmem:[%s14 + $0x80] sm:$0xff]
        %v2468 = vld [vmem:[%s14 + $0x88] sm:$0xff]
        %v2469 = vld [vmem:[%s14 + $0x90] sm:$0xff]
        %v2470 = vld [vmem:[%s14 + $0x98] sm:$0xff]
        %v2471 = vld [vmem:[%s14 + $0xa0] sm:$0xff]
        %v2472 = vld [vmem:[%s14 + $0xa8] sm:$0xff]
        %v2473 = vld [vmem:[%s14 + $0xb0] sm:$0xff]
        %v2474 = vld [vmem:[%s14 + $0xb8] sm:$0xff]
        %v2475 = vld [vmem:[%s14 + $0xc0] sm:$0xff]
        %v2476 = vld [vmem:[%s14 + $0xc8] sm:$0xff]
        %v2477 = vld [vmem:[%s14 + $0xd0] sm:$0xff]
        %v2478 = vld [vmem:[%s14 + $0xd8] sm:$0xff]
        %v2479 = vld [vmem:[%s14 + $0xe0] sm:$0xff]
        %v2480 = vld [vmem:[%s14 + $0xe8] sm:$0xff]
        %v2481 = vld [vmem:[%s14 + $0xf0] sm:$0xff]
        %v2482 = vld [vmem:[%s14 + $0xf8] sm:$0xff]
        %v2483 = vld [vmem:[%s15] sm:$0x1]
        %v2485 = vlaneseq
        %v2486 = vshrl.u32 %v2485, 7
        %v2487 = vsub.s32 0, %v2486
        %v2488 = vrot.slane %v2483, %v2487
        %2490 = vmatprep.subr.mxu0 0.0
        %2491 = vmatpush1.msra.mxu0 %v2466
        %2492 = vmatprep.subr.mxu0 0.0
        %2493 = vmatpush1.msra.mxu0 %v2465
        %2494 = vmatprep.subr.mxu0 0.0
        %2495 = vmatpush1.msra.mxu0 %v2464
        %2496 = vmatprep.subr.mxu0 0.0
        %2497 = vmatpush1.msra.mxu0 %v2463
        %2498 = vmatprep.subr.mxu0 0.0
        %2499 = vmatpush1.msra.mxu0 %v2462
        %2500 = vmatprep.subr.mxu0 0.0
        %2501 = vmatpush1.msra.mxu0 %v2461
        %2502 = vmatprep.subr.mxu0 0.0
        %2503 = vmatpush1.msra.mxu0 %v2460
        %2504 = vmatprep.subr.mxu0 0.0
        %2505 = vmatpush1.msra.mxu0 %v2459
        %2506 = vmatprep.subr.mxu0 0.0
        %2507 = vmatpush1.msra.mxu0 %v2458
        %2508 = vmatprep.subr.mxu0 0.0
        %2509 = vmatpush1.msra.mxu0 %v2457
        %2510 = vmatprep.subr.mxu0 0.0
        %2511 = vmatpush1.msra.mxu0 %v2456
        %2512 = vmatprep.subr.mxu0 0.0
        %2513 = vmatpush1.msra.mxu0 %v2455
        %2514 = vmatprep.subr.mxu0 0.0
        %2515 = vmatpush1.msra.mxu0 %v2454
        %2516 = vmatprep.subr.mxu0 0.0
        %2517 = vmatpush1.msra.mxu0 %v2453
        %2518 = vmatprep.subr.mxu0 0.0
        %2519 = vmatpush1.msra.mxu0 %v2452
        %2520 = vmatprep.subr.mxu0 0.0
        %2521 = vmatpush1.msra.mxu0 %v2451
        %2522 = vmatprep.subr.mxu0 0.0
        %2523 = vmatpush2.msra.mxu0 %v2482
        %2524 = vmatprep.subr.mxu0 0.0
        %2525 = vmatpush2.msra.mxu0 %v2481
        %2526 = vmatprep.subr.mxu0 0.0
        %2527 = vmatpush2.msra.mxu0 %v2480
        %2528 = vmatprep.subr.mxu0 0.0
        %2529 = vmatpush2.msra.mxu0 %v2479
        %2530 = vmatprep.subr.mxu0 0.0
        %2531 = vmatpush2.msra.mxu0 %v2478
        %2532 = vmatprep.subr.mxu0 0.0
        %2533 = vmatpush2.msra.mxu0 %v2477
        %2534 = vmatprep.subr.mxu0 0.0
        %2535 = vmatpush2.msra.mxu0 %v2476
        %2536 = vmatprep.subr.mxu0 0.0
        %2537 = vmatpush2.msra.mxu0 %v2475
        %2538 = vmatprep.subr.mxu0 0.0
        %2539 = vmatpush2.msra.mxu0 %v2474
        %2540 = vmatprep.subr.mxu0 0.0
        %2541 = vmatpush2.msra.mxu0 %v2473
        %2542 = vmatprep.subr.mxu0 0.0
        %2543 = vmatpush2.msra.mxu0 %v2472
        %2544 = vmatprep.subr.mxu0 0.0
        %2545 = vmatpush2.msra.mxu0 %v2471
        %2546 = vmatprep.subr.mxu0 0.0
        %2547 = vmatpush2.msra.mxu0 %v2470
        %2548 = vmatprep.subr.mxu0 0.0
        %2549 = vmatpush2.msra.mxu0 %v2469
        %2550 = vmatprep.subr.mxu0 0.0
        %2551 = vmatpush2.msra.mxu0 %v2468
        %2552 = vmatprep.subr.mxu0 0.0
        %2553 = vmatpush2.msra.mxu0 %v2467
        %2554 = vmatprep.mubr.f32.mxu0 %v2450
        %2555 = vmatmul.mubr.f32.gmra.mxu0 %v2449
        %v2556 = vpop.f32.mrf.mxu0
        %v2557 = vadd.f32 %v2488, %v2556
        %v2558 = vpop.f32.mrf.mxu0
        %2559 = vdwg.mxu0
        %v2560 = vld [vmem:[%s16] sm:$0x7]
        %v2561 = vld [vmem:[%s17] sm:$0x7]
        %v2563 = vsel %vm2162, %v2560, 0
        %v2566 = vsel %vm2165, %v2557, 0
        %2568 = vmatprep.subr.mxu0 0.0
        %2569 = vmatpush1.msra.mxu0 0.0
        %2570 = vmatprep.subr.mxu0 0.0
        %2571 = vmatpush1.msra.mxu0 0.0
        %2572 = vmatprep.subr.mxu0 0.0
        %2573 = vmatpush1.msra.mxu0 0.0
        %2574 = vmatprep.subr.mxu0 0.0
        %2575 = vmatpush1.msra.mxu0 0.0
        %2576 = vmatprep.subr.mxu0 0.0
        %2577 = vmatpush1.msra.mxu0 0.0
        %2578 = vmatprep.subr.mxu0 0.0
        %2579 = vmatpush1.msra.mxu0 0.0
        %2580 = vmatprep.subr.mxu0 0.0
        %2581 = vmatpush1.msra.mxu0 0.0
        %2582 = vmatprep.subr.mxu0 0.0
        %2583 = vmatpush1.msra.mxu0 0.0
        %2584 = vmatprep.subr.mxu0 0.0
        %2585 = vmatpush1.msra.mxu0 0.0
        %2586 = vmatprep.subr.mxu0 0.0
        %2587 = vmatpush1.msra.mxu0 0.0
        %2588 = vmatprep.subr.mxu0 0.0
        %2589 = vmatpush1.msra.mxu0 0.0
        %2590 = vmatprep.subr.mxu0 0.0
        %2591 = vmatpush1.msra.mxu0 0.0
        %2592 = vmatprep.subr.mxu0 0.0
        %2593 = vmatpush1.msra.mxu0 0.0
        %2594 = vmatprep.subr.mxu0 0.0
        %2595 = vmatpush1.msra.mxu0 0.0
        %2596 = vmatprep.subr.mxu0 0.0
        %2597 = vmatpush1.msra.mxu0 0.0
        %2598 = vmatprep.subr.mxu0 0.0
        %2599 = vmatpush1.msra.mxu0 %v2566
        %2600 = vmatprep.subr.mxu0 0.0
        %2601 = vmatpush2.msra.mxu0 0.0
        %2602 = vmatprep.subr.mxu0 0.0
        %2603 = vmatpush2.msra.mxu0 0.0
        %2604 = vmatprep.subr.mxu0 0.0
        %2605 = vmatpush2.msra.mxu0 0.0
        %2606 = vmatprep.subr.mxu0 0.0
        %2607 = vmatpush2.msra.mxu0 0.0
        %2608 = vmatprep.subr.mxu0 0.0
        %2609 = vmatpush2.msra.mxu0 0.0
        %2610 = vmatprep.subr.mxu0 0.0
        %2611 = vmatpush2.msra.mxu0 0.0
        %2612 = vmatprep.subr.mxu0 0.0
        %2613 = vmatpush2.msra.mxu0 0.0
        %2614 = vmatprep.subr.mxu0 0.0
        %2615 = vmatpush2.msra.mxu0 0.0
        %2616 = vmatprep.subr.mxu0 0.0
        %2617 = vmatpush2.msra.mxu0 0.0
        %2618 = vmatprep.subr.mxu0 0.0
        %2619 = vmatpush2.msra.mxu0 0.0
        %2620 = vmatprep.subr.mxu0 0.0
        %2621 = vmatpush2.msra.mxu0 0.0
        %2622 = vmatprep.subr.mxu0 0.0
        %2623 = vmatpush2.msra.mxu0 0.0
        %2624 = vmatprep.subr.mxu0 0.0
        %2625 = vmatpush2.msra.mxu0 0.0
        %2626 = vmatprep.subr.mxu0 0.0
        %2627 = vmatpush2.msra.mxu0 0.0
        %2628 = vmatprep.subr.mxu0 0.0
        %2629 = vmatpush2.msra.mxu0 0.0
        %2630 = vmatprep.subr.mxu0 0.0
        %2631 = vmatpush2.msra.mxu0 0.0
        %2632 = vmatprep.mubr.f32.mxu0 0.0
        %2633 = vmatmul.mubr.f32.gmra.mxu0 %v2563
        %v2634 = vpop.f32.mrf.mxu0
        %v2635 = vadd.f32 %v2561, %v2634
        %v2636 = vpop.f32.mrf.mxu0
        %2637 = vdwg.mxu0
        %vm2638 = vcmp.gt.f32.partialorder %v2635, 0.0
        %v2639 = vmul.f32 %v2635, 0.2
        %v2640 = vsel %vm2638, %v2635, %v2639
        %v2641 = vld [vmem:[%s20] sm:$0x1]
        %v2642 = vld [vmem:[%s18] sm:$0xff]
        %v2643 = vld [vmem:[%s18 + $0x8] sm:$0xff]
        %v2644 = vld [vmem:[%s18 + $0x10] sm:$0xff]
        %v2645 = vld [vmem:[%s18 + $0x18] sm:$0xff]
        %v2646 = vld [vmem:[%s18 + $0x20] sm:$0xff]
        %v2647 = vld [vmem:[%s18 + $0x28] sm:$0xff]
        %vm2648 = vcmask 392192
        %v2650 = vsel %vm2648, %v1747, 0
        %2652 = vmatprep.subr.mxu0 0.0
        %2653 = vmatpush1.msra.mxu0 0.0
        %2654 = vmatprep.subr.mxu0 0.0
        %2655 = vmatpush1.msra.mxu0 0.0
        %2656 = vmatprep.subr.mxu0 0.0
        %2657 = vmatpush1.msra.mxu0 0.0
        %2658 = vmatprep.subr.mxu0 0.0
        %2659 = vmatpush1.msra.mxu0 0.0
        %2660 = vmatprep.subr.mxu0 0.0
        %2661 = vmatpush1.msra.mxu0 0.0
        %2662 = vmatprep.subr.mxu0 0.0
        %2663 = vmatpush1.msra.mxu0 0.0
        %2664 = vmatprep.subr.mxu0 0.0
        %2665 = vmatpush1.msra.mxu0 0.0
        %2666 = vmatprep.subr.mxu0 0.0
        %2667 = vmatpush1.msra.mxu0 0.0
        %2668 = vmatprep.subr.mxu0 0.0
        %2669 = vmatpush1.msra.mxu0 0.0
        %2670 = vmatprep.subr.mxu0 0.0
        %2671 = vmatpush1.msra.mxu0 0.0
        %2672 = vmatprep.subr.mxu0 0.0
        %2673 = vmatpush1.msra.mxu0 %v2647
        %2674 = vmatprep.subr.mxu0 0.0
        %2675 = vmatpush1.msra.mxu0 %v2646
        %2676 = vmatprep.subr.mxu0 0.0
        %2677 = vmatpush1.msra.mxu0 %v2645
        %2678 = vmatprep.subr.mxu0 0.0
        %2679 = vmatpush1.msra.mxu0 %v2644
        %2680 = vmatprep.subr.mxu0 0.0
        %2681 = vmatpush1.msra.mxu0 %v2643
        %2682 = vmatprep.subr.mxu0 0.0
        %2683 = vmatpush1.msra.mxu0 %v2642
        %2684 = vmatprep.subr.mxu0 0.0
        %2685 = vmatpush2.msra.mxu0 0.0
        %2686 = vmatprep.subr.mxu0 0.0
        %2687 = vmatpush2.msra.mxu0 0.0
        %2688 = vmatprep.subr.mxu0 0.0
        %2689 = vmatpush2.msra.mxu0 0.0
        %2690 = vmatprep.subr.mxu0 0.0
        %2691 = vmatpush2.msra.mxu0 0.0
        %2692 = vmatprep.subr.mxu0 0.0
        %2693 = vmatpush2.msra.mxu0 0.0
        %2694 = vmatprep.subr.mxu0 0.0
        %2695 = vmatpush2.msra.mxu0 0.0
        %2696 = vmatprep.subr.mxu0 0.0
        %2697 = vmatpush2.msra.mxu0 0.0
        %2698 = vmatprep.subr.mxu0 0.0
        %2699 = vmatpush2.msra.mxu0 0.0
        %2700 = vmatprep.subr.mxu0 0.0
        %2701 = vmatpush2.msra.mxu0 0.0
        %2702 = vmatprep.subr.mxu0 0.0
        %2703 = vmatpush2.msra.mxu0 0.0
        %2704 = vmatprep.subr.mxu0 0.0
        %2705 = vmatpush2.msra.mxu0 0.0
        %2706 = vmatprep.subr.mxu0 0.0
        %2707 = vmatpush2.msra.mxu0 0.0
        %2708 = vmatprep.subr.mxu0 0.0
        %2709 = vmatpush2.msra.mxu0 0.0
        %2710 = vmatprep.subr.mxu0 0.0
        %2711 = vmatpush2.msra.mxu0 0.0
        %2712 = vmatprep.subr.mxu0 0.0
        %2713 = vmatpush2.msra.mxu0 0.0
        %2714 = vmatprep.subr.mxu0 0.0
        %2715 = vmatpush2.msra.mxu0 0.0
        %2716 = vmatprep.mubr.f32.mxu0 0.0
        %2717 = vmatmul.mubr.f32.gmra.mxu0 %v2650
        %v2718 = vpop.f32.mrf.mxu0
        %v2719 = vadd.f32 0.0, %v2718
        %v2720 = vpop.f32.mrf.mxu0
        %2721 = vdwg.mxu0
        %v2722 = vadd.f32 %v2641, %v2719
        %s2723 = scalar_lea.vmem %s18, 48
        %v2724 = vld [vmem:[%s2723] sm:$0xff]
        %v2725 = vld [vmem:[%s2723 + $0x8] sm:$0xff]
        %v2726 = vld [vmem:[%s2723 + $0x10] sm:$0xff]
        %v2727 = vld [vmem:[%s2723 + $0x18] sm:$0xff]
        %v2728 = vld [vmem:[%s2723 + $0x20] sm:$0xff]
        %v2729 = vld [vmem:[%s2723 + $0x28] sm:$0xff]
        %v2730 = vrot.slane %v1747, 1
        %v2731 = vsel %vm2648, %v2730, 0
        %2733 = vmatprep.subr.mxu0 0.0
        %2734 = vmatpush1.msra.mxu0 0.0
        %2735 = vmatprep.subr.mxu0 0.0
        %2736 = vmatpush1.msra.mxu0 0.0
        %2737 = vmatprep.subr.mxu0 0.0
        %2738 = vmatpush1.msra.mxu0 0.0
        %2739 = vmatprep.subr.mxu0 0.0
        %2740 = vmatpush1.msra.mxu0 0.0
        %2741 = vmatprep.subr.mxu0 0.0
        %2742 = vmatpush1.msra.mxu0 0.0
        %2743 = vmatprep.subr.mxu0 0.0
        %2744 = vmatpush1.msra.mxu0 0.0
        %2745 = vmatprep.subr.mxu0 0.0
        %2746 = vmatpush1.msra.mxu0 0.0
        %2747 = vmatprep.subr.mxu0 0.0
        %2748 = vmatpush1.msra.mxu0 0.0
        %2749 = vmatprep.subr.mxu0 0.0
        %2750 = vmatpush1.msra.mxu0 0.0
        %2751 = vmatprep.subr.mxu0 0.0
        %2752 = vmatpush1.msra.mxu0 0.0
        %2753 = vmatprep.subr.mxu0 0.0
        %2754 = vmatpush1.msra.mxu0 %v2729
        %2755 = vmatprep.subr.mxu0 0.0
        %2756 = vmatpush1.msra.mxu0 %v2728
        %2757 = vmatprep.subr.mxu0 0.0
        %2758 = vmatpush1.msra.mxu0 %v2727
        %2759 = vmatprep.subr.mxu0 0.0
        %2760 = vmatpush1.msra.mxu0 %v2726
        %2761 = vmatprep.subr.mxu0 0.0
        %2762 = vmatpush1.msra.mxu0 %v2725
        %2763 = vmatprep.subr.mxu0 0.0
        %2764 = vmatpush1.msra.mxu0 %v2724
        %2765 = vmatprep.subr.mxu0 0.0
        %2766 = vmatpush2.msra.mxu0 0.0
        %2767 = vmatprep.subr.mxu0 0.0
        %2768 = vmatpush2.msra.mxu0 0.0
        %2769 = vmatprep.subr.mxu0 0.0
        %2770 = vmatpush2.msra.mxu0 0.0
        %2771 = vmatprep.subr.mxu0 0.0
        %2772 = vmatpush2.msra.mxu0 0.0
        %2773 = vmatprep.subr.mxu0 0.0
        %2774 = vmatpush2.msra.mxu0 0.0
        %2775 = vmatprep.subr.mxu0 0.0
        %2776 = vmatpush2.msra.mxu0 0.0
        %2777 = vmatprep.subr.mxu0 0.0
        %2778 = vmatpush2.msra.mxu0 0.0
        %2779 = vmatprep.subr.mxu0 0.0
        %2780 = vmatpush2.msra.mxu0 0.0
        %2781 = vmatprep.subr.mxu0 0.0
        %2782 = vmatpush2.msra.mxu0 0.0
        %2783 = vmatprep.subr.mxu0 0.0
        %2784 = vmatpush2.msra.mxu0 0.0
        %2785 = vmatprep.subr.mxu0 0.0
        %2786 = vmatpush2.msra.mxu0 0.0
        %2787 = vmatprep.subr.mxu0 0.0
        %2788 = vmatpush2.msra.mxu0 0.0
        %2789 = vmatprep.subr.mxu0 0.0
        %2790 = vmatpush2.msra.mxu0 0.0
        %2791 = vmatprep.subr.mxu0 0.0
        %2792 = vmatpush2.msra.mxu0 0.0
        %2793 = vmatprep.subr.mxu0 0.0
        %2794 = vmatpush2.msra.mxu0 0.0
        %2795 = vmatprep.subr.mxu0 0.0
        %2796 = vmatpush2.msra.mxu0 0.0
        %2797 = vmatprep.mubr.f32.mxu0 0.0
        %2798 = vmatmul.mubr.f32.gmra.mxu0 %v2731
        %v2799 = vpop.f32.mrf.mxu0
        %v2800 = vadd.f32 0.0, %v2799
        %v2801 = vpop.f32.mrf.mxu0
        %2802 = vdwg.mxu0
        %v2803 = vadd.f32 %v2722, %v2800
        %s2804 = scalar_lea.vmem %s18, 96
        %v2805 = vld [vmem:[%s2804] sm:$0xff]
        %v2806 = vld [vmem:[%s2804 + $0x8] sm:$0xff]
        %v2807 = vld [vmem:[%s2804 + $0x10] sm:$0xff]
        %v2808 = vld [vmem:[%s2804 + $0x18] sm:$0xff]
        %v2809 = vld [vmem:[%s2804 + $0x20] sm:$0xff]
        %v2810 = vld [vmem:[%s2804 + $0x28] sm:$0xff]
        %v2811 = vrot.slane %v1747, 2
        %v2812 = vsel %vm2648, %v2811, 0
        %2814 = vmatprep.subr.mxu0 0.0
        %2815 = vmatpush1.msra.mxu0 0.0
        %2816 = vmatprep.subr.mxu0 0.0
        %2817 = vmatpush1.msra.mxu0 0.0
        %2818 = vmatprep.subr.mxu0 0.0
        %2819 = vmatpush1.msra.mxu0 0.0
        %2820 = vmatprep.subr.mxu0 0.0
        %2821 = vmatpush1.msra.mxu0 0.0
        %2822 = vmatprep.subr.mxu0 0.0
        %2823 = vmatpush1.msra.mxu0 0.0
        %2824 = vmatprep.subr.mxu0 0.0
        %2825 = vmatpush1.msra.mxu0 0.0
        %2826 = vmatprep.subr.mxu0 0.0
        %2827 = vmatpush1.msra.mxu0 0.0
        %2828 = vmatprep.subr.mxu0 0.0
        %2829 = vmatpush1.msra.mxu0 0.0
        %2830 = vmatprep.subr.mxu0 0.0
        %2831 = vmatpush1.msra.mxu0 0.0
        %2832 = vmatprep.subr.mxu0 0.0
        %2833 = vmatpush1.msra.mxu0 0.0
        %2834 = vmatprep.subr.mxu0 0.0
        %2835 = vmatpush1.msra.mxu0 %v2810
        %2836 = vmatprep.subr.mxu0 0.0
        %2837 = vmatpush1.msra.mxu0 %v2809
        %2838 = vmatprep.subr.mxu0 0.0
        %2839 = vmatpush1.msra.mxu0 %v2808
        %2840 = vmatprep.subr.mxu0 0.0
        %2841 = vmatpush1.msra.mxu0 %v2807
        %2842 = vmatprep.subr.mxu0 0.0
        %2843 = vmatpush1.msra.mxu0 %v2806
        %2844 = vmatprep.subr.mxu0 0.0
        %2845 = vmatpush1.msra.mxu0 %v2805
        %2846 = vmatprep.subr.mxu0 0.0
        %2847 = vmatpush2.msra.mxu0 0.0
        %2848 = vmatprep.subr.mxu0 0.0
        %2849 = vmatpush2.msra.mxu0 0.0
        %2850 = vmatprep.subr.mxu0 0.0
        %2851 = vmatpush2.msra.mxu0 0.0
        %2852 = vmatprep.subr.mxu0 0.0
        %2853 = vmatpush2.msra.mxu0 0.0
        %2854 = vmatprep.subr.mxu0 0.0
        %2855 = vmatpush2.msra.mxu0 0.0
        %2856 = vmatprep.subr.mxu0 0.0
        %2857 = vmatpush2.msra.mxu0 0.0
        %2858 = vmatprep.subr.mxu0 0.0
        %2859 = vmatpush2.msra.mxu0 0.0
        %2860 = vmatprep.subr.mxu0 0.0
        %2861 = vmatpush2.msra.mxu0 0.0
        %2862 = vmatprep.subr.mxu0 0.0
        %2863 = vmatpush2.msra.mxu0 0.0
        %2864 = vmatprep.subr.mxu0 0.0
        %2865 = vmatpush2.msra.mxu0 0.0
        %2866 = vmatprep.subr.mxu0 0.0
        %2867 = vmatpush2.msra.mxu0 0.0
        %2868 = vmatprep.subr.mxu0 0.0
        %2869 = vmatpush2.msra.mxu0 0.0
        %2870 = vmatprep.subr.mxu0 0.0
        %2871 = vmatpush2.msra.mxu0 0.0
        %2872 = vmatprep.subr.mxu0 0.0
        %2873 = vmatpush2.msra.mxu0 0.0
        %2874 = vmatprep.subr.mxu0 0.0
        %2875 = vmatpush2.msra.mxu0 0.0
        %2876 = vmatprep.subr.mxu0 0.0
        %2877 = vmatpush2.msra.mxu0 0.0
        %2878 = vmatprep.mubr.f32.mxu0 0.0
        %2879 = vmatmul.mubr.f32.gmra.mxu0 %v2812
        %v2880 = vpop.f32.mrf.mxu0
        %v2881 = vadd.f32 0.0, %v2880
        %v2882 = vpop.f32.mrf.mxu0
        %2883 = vdwg.mxu0
        %v2884 = vadd.f32 %v2803, %v2881
        %s2885 = scalar_lea.vmem %s18, 144
        %v2886 = vld [vmem:[%s2885] sm:$0xff]
        %v2887 = vld [vmem:[%s2885 + $0x8] sm:$0xff]
        %v2888 = vld [vmem:[%s2885 + $0x10] sm:$0xff]
        %v2889 = vld [vmem:[%s2885 + $0x18] sm:$0xff]
        %v2890 = vld [vmem:[%s2885 + $0x20] sm:$0xff]
        %v2891 = vld [vmem:[%s2885 + $0x28] sm:$0xff]
        %v2892 = vrot.slane %v1747, 3
        %v2893 = vsel %vm2648, %v2892, 0
        %2895 = vmatprep.subr.mxu0 0.0
        %2896 = vmatpush1.msra.mxu0 0.0
        %2897 = vmatprep.subr.mxu0 0.0
        %2898 = vmatpush1.msra.mxu0 0.0
        %2899 = vmatprep.subr.mxu0 0.0
        %2900 = vmatpush1.msra.mxu0 0.0
        %2901 = vmatprep.subr.mxu0 0.0
        %2902 = vmatpush1.msra.mxu0 0.0
        %2903 = vmatprep.subr.mxu0 0.0
        %2904 = vmatpush1.msra.mxu0 0.0
        %2905 = vmatprep.subr.mxu0 0.0
        %2906 = vmatpush1.msra.mxu0 0.0
        %2907 = vmatprep.subr.mxu0 0.0
        %2908 = vmatpush1.msra.mxu0 0.0
        %2909 = vmatprep.subr.mxu0 0.0
        %2910 = vmatpush1.msra.mxu0 0.0
        %2911 = vmatprep.subr.mxu0 0.0
        %2912 = vmatpush1.msra.mxu0 0.0
        %2913 = vmatprep.subr.mxu0 0.0
        %2914 = vmatpush1.msra.mxu0 0.0
        %2915 = vmatprep.subr.mxu0 0.0
        %2916 = vmatpush1.msra.mxu0 %v2891
        %2917 = vmatprep.subr.mxu0 0.0
        %2918 = vmatpush1.msra.mxu0 %v2890
        %2919 = vmatprep.subr.mxu0 0.0
        %2920 = vmatpush1.msra.mxu0 %v2889
        %2921 = vmatprep.subr.mxu0 0.0
        %2922 = vmatpush1.msra.mxu0 %v2888
        %2923 = vmatprep.subr.mxu0 0.0
        %2924 = vmatpush1.msra.mxu0 %v2887
        %2925 = vmatprep.subr.mxu0 0.0
        %2926 = vmatpush1.msra.mxu0 %v2886
        %2927 = vmatprep.subr.mxu0 0.0
        %2928 = vmatpush2.msra.mxu0 0.0
        %2929 = vmatprep.subr.mxu0 0.0
        %2930 = vmatpush2.msra.mxu0 0.0
        %2931 = vmatprep.subr.mxu0 0.0
        %2932 = vmatpush2.msra.mxu0 0.0
        %2933 = vmatprep.subr.mxu0 0.0
        %2934 = vmatpush2.msra.mxu0 0.0
        %2935 = vmatprep.subr.mxu0 0.0
        %2936 = vmatpush2.msra.mxu0 0.0
        %2937 = vmatprep.subr.mxu0 0.0
        %2938 = vmatpush2.msra.mxu0 0.0
        %2939 = vmatprep.subr.mxu0 0.0
        %2940 = vmatpush2.msra.mxu0 0.0
        %2941 = vmatprep.subr.mxu0 0.0
        %2942 = vmatpush2.msra.mxu0 0.0
        %2943 = vmatprep.subr.mxu0 0.0
        %2944 = vmatpush2.msra.mxu0 0.0
        %2945 = vmatprep.subr.mxu0 0.0
        %2946 = vmatpush2.msra.mxu0 0.0
        %2947 = vmatprep.subr.mxu0 0.0
        %2948 = vmatpush2.msra.mxu0 0.0
        %2949 = vmatprep.subr.mxu0 0.0
        %2950 = vmatpush2.msra.mxu0 0.0
        %2951 = vmatprep.subr.mxu0 0.0
        %2952 = vmatpush2.msra.mxu0 0.0
        %2953 = vmatprep.subr.mxu0 0.0
        %2954 = vmatpush2.msra.mxu0 0.0
        %2955 = vmatprep.subr.mxu0 0.0
        %2956 = vmatpush2.msra.mxu0 0.0
        %2957 = vmatprep.subr.mxu0 0.0
        %2958 = vmatpush2.msra.mxu0 0.0
        %2959 = vmatprep.mubr.f32.mxu0 0.0
        %2960 = vmatmul.mubr.f32.gmra.mxu0 %v2893
        %v2961 = vpop.f32.mrf.mxu0
        %v2962 = vadd.f32 0.0, %v2961
        %v2963 = vpop.f32.mrf.mxu0
        %2964 = vdwg.mxu0
        %v2965 = vadd.f32 %v2884, %v2962
        %s2966 = scalar_lea.vmem %s18, 192
        %v2967 = vld [vmem:[%s2966] sm:$0xff]
        %v2968 = vld [vmem:[%s2966 + $0x8] sm:$0xff]
        %v2969 = vld [vmem:[%s2966 + $0x10] sm:$0xff]
        %v2970 = vld [vmem:[%s2966 + $0x18] sm:$0xff]
        %v2971 = vld [vmem:[%s2966 + $0x20] sm:$0xff]
        %v2972 = vld [vmem:[%s2966 + $0x28] sm:$0xff]
        %v2973 = vrot.slane %v1747, 4
        %v2974 = vsel %vm2648, %v2973, 0
        %2976 = vmatprep.subr.mxu0 0.0
        %2977 = vmatpush1.msra.mxu0 0.0
        %2978 = vmatprep.subr.mxu0 0.0
        %2979 = vmatpush1.msra.mxu0 0.0
        %2980 = vmatprep.subr.mxu0 0.0
        %2981 = vmatpush1.msra.mxu0 0.0
        %2982 = vmatprep.subr.mxu0 0.0
        %2983 = vmatpush1.msra.mxu0 0.0
        %2984 = vmatprep.subr.mxu0 0.0
        %2985 = vmatpush1.msra.mxu0 0.0
        %2986 = vmatprep.subr.mxu0 0.0
        %2987 = vmatpush1.msra.mxu0 0.0
        %2988 = vmatprep.subr.mxu0 0.0
        %2989 = vmatpush1.msra.mxu0 0.0
        %2990 = vmatprep.subr.mxu0 0.0
        %2991 = vmatpush1.msra.mxu0 0.0
        %2992 = vmatprep.subr.mxu0 0.0
        %2993 = vmatpush1.msra.mxu0 0.0
        %2994 = vmatprep.subr.mxu0 0.0
        %2995 = vmatpush1.msra.mxu0 0.0
        %2996 = vmatprep.subr.mxu0 0.0
        %2997 = vmatpush1.msra.mxu0 %v2972
        %2998 = vmatprep.subr.mxu0 0.0
        %2999 = vmatpush1.msra.mxu0 %v2971
        %3000 = vmatprep.subr.mxu0 0.0
        %3001 = vmatpush1.msra.mxu0 %v2970
        %3002 = vmatprep.subr.mxu0 0.0
        %3003 = vmatpush1.msra.mxu0 %v2969
        %3004 = vmatprep.subr.mxu0 0.0
        %3005 = vmatpush1.msra.mxu0 %v2968
        %3006 = vmatprep.subr.mxu0 0.0
        %3007 = vmatpush1.msra.mxu0 %v2967
        %3008 = vmatprep.subr.mxu0 0.0
        %3009 = vmatpush2.msra.mxu0 0.0
        %3010 = vmatprep.subr.mxu0 0.0
        %3011 = vmatpush2.msra.mxu0 0.0
        %3012 = vmatprep.subr.mxu0 0.0
        %3013 = vmatpush2.msra.mxu0 0.0
        %3014 = vmatprep.subr.mxu0 0.0
        %3015 = vmatpush2.msra.mxu0 0.0
        %3016 = vmatprep.subr.mxu0 0.0
        %3017 = vmatpush2.msra.mxu0 0.0
        %3018 = vmatprep.subr.mxu0 0.0
        %3019 = vmatpush2.msra.mxu0 0.0
        %3020 = vmatprep.subr.mxu0 0.0
        %3021 = vmatpush2.msra.mxu0 0.0
        %3022 = vmatprep.subr.mxu0 0.0
        %3023 = vmatpush2.msra.mxu0 0.0
        %3024 = vmatprep.subr.mxu0 0.0
        %3025 = vmatpush2.msra.mxu0 0.0
        %3026 = vmatprep.subr.mxu0 0.0
        %3027 = vmatpush2.msra.mxu0 0.0
        %3028 = vmatprep.subr.mxu0 0.0
        %3029 = vmatpush2.msra.mxu0 0.0
        %3030 = vmatprep.subr.mxu0 0.0
        %3031 = vmatpush2.msra.mxu0 0.0
        %3032 = vmatprep.subr.mxu0 0.0
        %3033 = vmatpush2.msra.mxu0 0.0
        %3034 = vmatprep.subr.mxu0 0.0
        %3035 = vmatpush2.msra.mxu0 0.0
        %3036 = vmatprep.subr.mxu0 0.0
        %3037 = vmatpush2.msra.mxu0 0.0
        %3038 = vmatprep.subr.mxu0 0.0
        %3039 = vmatpush2.msra.mxu0 0.0
        %3040 = vmatprep.mubr.f32.mxu0 0.0
        %3041 = vmatmul.mubr.f32.gmra.mxu0 %v2974
        %v3042 = vpop.f32.mrf.mxu0
        %v3043 = vadd.f32 0.0, %v3042
        %v3044 = vpop.f32.mrf.mxu0
        %3045 = vdwg.mxu0
        %v3046 = vadd.f32 %v2965, %v3043
        %v3047 = vld [vmem:[%s19] sm:$0xff]
        %v3048 = vld [vmem:[%s19 + $0x8] sm:$0xff]
        %v3049 = vld [vmem:[%s19 + $0x10] sm:$0xff]
        %v3050 = vld [vmem:[%s19 + $0x18] sm:$0xff]
        %v3051 = vld [vmem:[%s19 + $0x20] sm:$0xff]
        %v3052 = vld [vmem:[%s19 + $0x28] sm:$0xff]
        %v3053 = vld [vmem:[%s19 + $0x30] sm:$0xff]
        %v3054 = vld [vmem:[%s19 + $0x38] sm:$0xff]
        %vm3055 = vcmask 523264
        %v3057 = vsel %vm3055, %v2640, 0
        %3059 = vmatprep.subr.mxu0 0.0
        %3060 = vmatpush1.msra.mxu0 0.0
        %3061 = vmatprep.subr.mxu0 0.0
        %3062 = vmatpush1.msra.mxu0 0.0
        %3063 = vmatprep.subr.mxu0 0.0
        %3064 = vmatpush1.msra.mxu0 0.0
        %3065 = vmatprep.subr.mxu0 0.0
        %3066 = vmatpush1.msra.mxu0 0.0
        %3067 = vmatprep.subr.mxu0 0.0
        %3068 = vmatpush1.msra.mxu0 0.0
        %3069 = vmatprep.subr.mxu0 0.0
        %3070 = vmatpush1.msra.mxu0 0.0
        %3071 = vmatprep.subr.mxu0 0.0
        %3072 = vmatpush1.msra.mxu0 0.0
        %3073 = vmatprep.subr.mxu0 0.0
        %3074 = vmatpush1.msra.mxu0 0.0
        %3075 = vmatprep.subr.mxu0 0.0
        %3076 = vmatpush1.msra.mxu0 %v3054
        %3077 = vmatprep.subr.mxu0 0.0
        %3078 = vmatpush1.msra.mxu0 %v3053
        %3079 = vmatprep.subr.mxu0 0.0
        %3080 = vmatpush1.msra.mxu0 %v3052
        %3081 = vmatprep.subr.mxu0 0.0
        %3082 = vmatpush1.msra.mxu0 %v3051
        %3083 = vmatprep.subr.mxu0 0.0
        %3084 = vmatpush1.msra.mxu0 %v3050
        %3085 = vmatprep.subr.mxu0 0.0
        %3086 = vmatpush1.msra.mxu0 %v3049
        %3087 = vmatprep.subr.mxu0 0.0
        %3088 = vmatpush1.msra.mxu0 %v3048
        %3089 = vmatprep.subr.mxu0 0.0
        %3090 = vmatpush1.msra.mxu0 %v3047
        %3091 = vmatprep.subr.mxu0 0.0
        %3092 = vmatpush2.msra.mxu0 0.0
        %3093 = vmatprep.subr.mxu0 0.0
        %3094 = vmatpush2.msra.mxu0 0.0
        %3095 = vmatprep.subr.mxu0 0.0
        %3096 = vmatpush2.msra.mxu0 0.0
        %3097 = vmatprep.subr.mxu0 0.0
        %3098 = vmatpush2.msra.mxu0 0.0
        %3099 = vmatprep.subr.mxu0 0.0
        %3100 = vmatpush2.msra.mxu0 0.0
        %3101 = vmatprep.subr.mxu0 0.0
        %3102 = vmatpush2.msra.mxu0 0.0
        %3103 = vmatprep.subr.mxu0 0.0
        %3104 = vmatpush2.msra.mxu0 0.0
        %3105 = vmatprep.subr.mxu0 0.0
        %3106 = vmatpush2.msra.mxu0 0.0
        %3107 = vmatprep.subr.mxu0 0.0
        %3108 = vmatpush2.msra.mxu0 0.0
        %3109 = vmatprep.subr.mxu0 0.0
        %3110 = vmatpush2.msra.mxu0 0.0
        %3111 = vmatprep.subr.mxu0 0.0
        %3112 = vmatpush2.msra.mxu0 0.0
        %3113 = vmatprep.subr.mxu0 0.0
        %3114 = vmatpush2.msra.mxu0 0.0
        %3115 = vmatprep.subr.mxu0 0.0
        %3116 = vmatpush2.msra.mxu0 0.0
        %3117 = vmatprep.subr.mxu0 0.0
        %3118 = vmatpush2.msra.mxu0 0.0
        %3119 = vmatprep.subr.mxu0 0.0
        %3120 = vmatpush2.msra.mxu0 0.0
        %3121 = vmatprep.subr.mxu0 0.0
        %3122 = vmatpush2.msra.mxu0 0.0
        %3123 = vmatprep.mubr.f32.mxu0 0.0
        %3124 = vmatmul.mubr.f32.gmra.mxu0 %v3057
        %v3125 = vpop.f32.mrf.mxu0
        %v3126 = vadd.f32 0.0, %v3125
        %v3127 = vpop.f32.mrf.mxu0
        %3128 = vdwg.mxu0
        %v3129 = vadd.f32 %v3046, %v3126
        %s3130 = scalar_lea.vmem %s19, 64
        %v3131 = vld [vmem:[%s3130] sm:$0xff]
        %v3132 = vld [vmem:[%s3130 + $0x8] sm:$0xff]
        %v3133 = vld [vmem:[%s3130 + $0x10] sm:$0xff]
        %v3134 = vld [vmem:[%s3130 + $0x18] sm:$0xff]
        %v3135 = vld [vmem:[%s3130 + $0x20] sm:$0xff]
        %v3136 = vld [vmem:[%s3130 + $0x28] sm:$0xff]
        %v3137 = vld [vmem:[%s3130 + $0x30] sm:$0xff]
        %v3138 = vld [vmem:[%s3130 + $0x38] sm:$0xff]
        %v3139 = vrot.slane %v2640, 1
        %v3140 = vsel %vm3055, %v3139, 0
        %3142 = vmatprep.subr.mxu0 0.0
        %3143 = vmatpush1.msra.mxu0 0.0
        %3144 = vmatprep.subr.mxu0 0.0
        %3145 = vmatpush1.msra.mxu0 0.0
        %3146 = vmatprep.subr.mxu0 0.0
        %3147 = vmatpush1.msra.mxu0 0.0
        %3148 = vmatprep.subr.mxu0 0.0
        %3149 = vmatpush1.msra.mxu0 0.0
        %3150 = vmatprep.subr.mxu0 0.0
        %3151 = vmatpush1.msra.mxu0 0.0
        %3152 = vmatprep.subr.mxu0 0.0
        %3153 = vmatpush1.msra.mxu0 0.0
        %3154 = vmatprep.subr.mxu0 0.0
        %3155 = vmatpush1.msra.mxu0 0.0
        %3156 = vmatprep.subr.mxu0 0.0
        %3157 = vmatpush1.msra.mxu0 0.0
        %3158 = vmatprep.subr.mxu0 0.0
        %3159 = vmatpush1.msra.mxu0 %v3138
        %3160 = vmatprep.subr.mxu0 0.0
        %3161 = vmatpush1.msra.mxu0 %v3137
        %3162 = vmatprep.subr.mxu0 0.0
        %3163 = vmatpush1.msra.mxu0 %v3136
        %3164 = vmatprep.subr.mxu0 0.0
        %3165 = vmatpush1.msra.mxu0 %v3135
        %3166 = vmatprep.subr.mxu0 0.0
        %3167 = vmatpush1.msra.mxu0 %v3134
        %3168 = vmatprep.subr.mxu0 0.0
        %3169 = vmatpush1.msra.mxu0 %v3133
        %3170 = vmatprep.subr.mxu0 0.0
        %3171 = vmatpush1.msra.mxu0 %v3132
        %3172 = vmatprep.subr.mxu0 0.0
        %3173 = vmatpush1.msra.mxu0 %v3131
        %3174 = vmatprep.subr.mxu0 0.0
        %3175 = vmatpush2.msra.mxu0 0.0
        %3176 = vmatprep.subr.mxu0 0.0
        %3177 = vmatpush2.msra.mxu0 0.0
        %3178 = vmatprep.subr.mxu0 0.0
        %3179 = vmatpush2.msra.mxu0 0.0
        %3180 = vmatprep.subr.mxu0 0.0
        %3181 = vmatpush2.msra.mxu0 0.0
        %3182 = vmatprep.subr.mxu0 0.0
        %3183 = vmatpush2.msra.mxu0 0.0
        %3184 = vmatprep.subr.mxu0 0.0
        %3185 = vmatpush2.msra.mxu0 0.0
        %3186 = vmatprep.subr.mxu0 0.0
        %3187 = vmatpush2.msra.mxu0 0.0
        %3188 = vmatprep.subr.mxu0 0.0
        %3189 = vmatpush2.msra.mxu0 0.0
        %3190 = vmatprep.subr.mxu0 0.0
        %3191 = vmatpush2.msra.mxu0 0.0
        %3192 = vmatprep.subr.mxu0 0.0
        %3193 = vmatpush2.msra.mxu0 0.0
        %3194 = vmatprep.subr.mxu0 0.0
        %3195 = vmatpush2.msra.mxu0 0.0
        %3196 = vmatprep.subr.mxu0 0.0
        %3197 = vmatpush2.msra.mxu0 0.0
        %3198 = vmatprep.subr.mxu0 0.0
        %3199 = vmatpush2.msra.mxu0 0.0
        %3200 = vmatprep.subr.mxu0 0.0
        %3201 = vmatpush2.msra.mxu0 0.0
        %3202 = vmatprep.subr.mxu0 0.0
        %3203 = vmatpush2.msra.mxu0 0.0
        %3204 = vmatprep.subr.mxu0 0.0
        %3205 = vmatpush2.msra.mxu0 0.0
        %3206 = vmatprep.mubr.f32.mxu0 0.0
        %3207 = vmatmul.mubr.f32.gmra.mxu0 %v3140
        %v3208 = vpop.f32.mrf.mxu0
        %v3209 = vadd.f32 0.0, %v3208
        %v3210 = vpop.f32.mrf.mxu0
        %3211 = vdwg.mxu0
        %v3212 = vadd.f32 %v3129, %v3209
        %s3213 = scalar_lea.vmem %s19, 128
        %v3214 = vld [vmem:[%s3213] sm:$0xff]
        %v3215 = vld [vmem:[%s3213 + $0x8] sm:$0xff]
        %v3216 = vld [vmem:[%s3213 + $0x10] sm:$0xff]
        %v3217 = vld [vmem:[%s3213 + $0x18] sm:$0xff]
        %v3218 = vld [vmem:[%s3213 + $0x20] sm:$0xff]
        %v3219 = vld [vmem:[%s3213 + $0x28] sm:$0xff]
        %v3220 = vld [vmem:[%s3213 + $0x30] sm:$0xff]
        %v3221 = vld [vmem:[%s3213 + $0x38] sm:$0xff]
        %v3222 = vrot.slane %v2640, 2
        %v3223 = vsel %vm3055, %v3222, 0
        %3225 = vmatprep.subr.mxu0 0.0
        %3226 = vmatpush1.msra.mxu0 0.0
        %3227 = vmatprep.subr.mxu0 0.0
        %3228 = vmatpush1.msra.mxu0 0.0
        %3229 = vmatprep.subr.mxu0 0.0
        %3230 = vmatpush1.msra.mxu0 0.0
        %3231 = vmatprep.subr.mxu0 0.0
        %3232 = vmatpush1.msra.mxu0 0.0
        %3233 = vmatprep.subr.mxu0 0.0
        %3234 = vmatpush1.msra.mxu0 0.0
        %3235 = vmatprep.subr.mxu0 0.0
        %3236 = vmatpush1.msra.mxu0 0.0
        %3237 = vmatprep.subr.mxu0 0.0
        %3238 = vmatpush1.msra.mxu0 0.0
        %3239 = vmatprep.subr.mxu0 0.0
        %3240 = vmatpush1.msra.mxu0 0.0
        %3241 = vmatprep.subr.mxu0 0.0
        %3242 = vmatpush1.msra.mxu0 %v3221
        %3243 = vmatprep.subr.mxu0 0.0
        %3244 = vmatpush1.msra.mxu0 %v3220
        %3245 = vmatprep.subr.mxu0 0.0
        %3246 = vmatpush1.msra.mxu0 %v3219
        %3247 = vmatprep.subr.mxu0 0.0
        %3248 = vmatpush1.msra.mxu0 %v3218
        %3249 = vmatprep.subr.mxu0 0.0
        %3250 = vmatpush1.msra.mxu0 %v3217
        %3251 = vmatprep.subr.mxu0 0.0
        %3252 = vmatpush1.msra.mxu0 %v3216
        %3253 = vmatprep.subr.mxu0 0.0
        %3254 = vmatpush1.msra.mxu0 %v3215
        %3255 = vmatprep.subr.mxu0 0.0
        %3256 = vmatpush1.msra.mxu0 %v3214
        %3257 = vmatprep.subr.mxu0 0.0
        %3258 = vmatpush2.msra.mxu0 0.0
        %3259 = vmatprep.subr.mxu0 0.0
        %3260 = vmatpush2.msra.mxu0 0.0
        %3261 = vmatprep.subr.mxu0 0.0
        %3262 = vmatpush2.msra.mxu0 0.0
        %3263 = vmatprep.subr.mxu0 0.0
        %3264 = vmatpush2.msra.mxu0 0.0
        %3265 = vmatprep.subr.mxu0 0.0
        %3266 = vmatpush2.msra.mxu0 0.0
        %3267 = vmatprep.subr.mxu0 0.0
        %3268 = vmatpush2.msra.mxu0 0.0
        %3269 = vmatprep.subr.mxu0 0.0
        %3270 = vmatpush2.msra.mxu0 0.0
        %3271 = vmatprep.subr.mxu0 0.0
        %3272 = vmatpush2.msra.mxu0 0.0
        %3273 = vmatprep.subr.mxu0 0.0
        %3274 = vmatpush2.msra.mxu0 0.0
        %3275 = vmatprep.subr.mxu0 0.0
        %3276 = vmatpush2.msra.mxu0 0.0
        %3277 = vmatprep.subr.mxu0 0.0
        %3278 = vmatpush2.msra.mxu0 0.0
        %3279 = vmatprep.subr.mxu0 0.0
        %3280 = vmatpush2.msra.mxu0 0.0
        %3281 = vmatprep.subr.mxu0 0.0
        %3282 = vmatpush2.msra.mxu0 0.0
        %3283 = vmatprep.subr.mxu0 0.0
        %3284 = vmatpush2.msra.mxu0 0.0
        %3285 = vmatprep.subr.mxu0 0.0
        %3286 = vmatpush2.msra.mxu0 0.0
        %3287 = vmatprep.subr.mxu0 0.0
        %3288 = vmatpush2.msra.mxu0 0.0
        %3289 = vmatprep.mubr.f32.mxu0 0.0
        %3290 = vmatmul.mubr.f32.gmra.mxu0 %v3223
        %v3291 = vpop.f32.mrf.mxu0
        %v3292 = vadd.f32 0.0, %v3291
        %v3293 = vpop.f32.mrf.mxu0
        %3294 = vdwg.mxu0
        %v3295 = vadd.f32 %v3212, %v3292
        %v3296 = vmul.f32 %v3295, 0.5
        %v3297 = vmul.f32 %v3296, 1.442695
        %v3298 = vpow.pop %v3297
        %v3299 = vld [vmem:[%s848] sm:$0x1]
        %3301 = vrot.lane.b32.xlu0 %v3299, 16
        %v3302 = vpop.permute.xlu0 %3301
        %v3304 = vmul.f32 %v3298, %v3302
        %3306 = vrot.lane.b32.xlu0 %v3304, 112
        %v3307 = vpop.permute.xlu0 %3306
        %v3309 = vadd.f32 %v3295, %v3307
        %v3310 = vld [vmem:[%s21] sm:$0xff]
        %v3311 = vld [vmem:[%s21 + $0x8] sm:$0xff]
        %v3312 = vld [vmem:[%s22] sm:$0x1]
        %vm3313 = vcmask 130048
        %v3315 = vsel %vm3313, %v3309, 0
        %3317 = vmatprep.subr.mxu0 0.0
        %3318 = vmatpush1.msra.mxu0 0.0
        %3319 = vmatprep.subr.mxu0 0.0
        %3320 = vmatpush1.msra.mxu0 0.0
        %3321 = vmatprep.subr.mxu0 0.0
        %3322 = vmatpush1.msra.mxu0 0.0
        %3323 = vmatprep.subr.mxu0 0.0
        %3324 = vmatpush1.msra.mxu0 0.0
        %3325 = vmatprep.subr.mxu0 0.0
        %3326 = vmatpush1.msra.mxu0 0.0
        %3327 = vmatprep.subr.mxu0 0.0
        %3328 = vmatpush1.msra.mxu0 0.0
        %3329 = vmatprep.subr.mxu0 0.0
        %3330 = vmatpush1.msra.mxu0 0.0
        %3331 = vmatprep.subr.mxu0 0.0
        %3332 = vmatpush1.msra.mxu0 0.0
        %3333 = vmatprep.subr.mxu0 0.0
        %3334 = vmatpush1.msra.mxu0 0.0
        %3335 = vmatprep.subr.mxu0 0.0
        %3336 = vmatpush1.msra.mxu0 0.0
        %3337 = vmatprep.subr.mxu0 0.0
        %3338 = vmatpush1.msra.mxu0 0.0
        %3339 = vmatprep.subr.mxu0 0.0
        %3340 = vmatpush1.msra.mxu0 0.0
        %3341 = vmatprep.subr.mxu0 0.0
        %3342 = vmatpush1.msra.mxu0 0.0
        %3343 = vmatprep.subr.mxu0 0.0
        %3344 = vmatpush1.msra.mxu0 0.0
        %3345 = vmatprep.subr.mxu0 0.0
        %3346 = vmatpush1.msra.mxu0 %v3311
        %3347 = vmatprep.subr.mxu0 0.0
        %3348 = vmatpush1.msra.mxu0 %v3310
        %3349 = vmatprep.subr.mxu0 0.0
        %3350 = vmatpush2.msra.mxu0 0.0
        %3351 = vmatprep.subr.mxu0 0.0
        %3352 = vmatpush2.msra.mxu0 0.0
        %3353 = vmatprep.subr.mxu0 0.0
        %3354 = vmatpush2.msra.mxu0 0.0
        %3355 = vmatprep.subr.mxu0 0.0
        %3356 = vmatpush2.msra.mxu0 0.0
        %3357 = vmatprep.subr.mxu0 0.0
        %3358 = vmatpush2.msra.mxu0 0.0
        %3359 = vmatprep.subr.mxu0 0.0
        %3360 = vmatpush2.msra.mxu0 0.0
        %3361 = vmatprep.subr.mxu0 0.0
        %3362 = vmatpush2.msra.mxu0 0.0
        %3363 = vmatprep.subr.mxu0 0.0
        %3364 = vmatpush2.msra.mxu0 0.0
        %3365 = vmatprep.subr.mxu0 0.0
        %3366 = vmatpush2.msra.mxu0 0.0
        %3367 = vmatprep.subr.mxu0 0.0
        %3368 = vmatpush2.msra.mxu0 0.0
        %3369 = vmatprep.subr.mxu0 0.0
        %3370 = vmatpush2.msra.mxu0 0.0
        %3371 = vmatprep.subr.mxu0 0.0
        %3372 = vmatpush2.msra.mxu0 0.0
        %3373 = vmatprep.subr.mxu0 0.0
        %3374 = vmatpush2.msra.mxu0 0.0
        %3375 = vmatprep.subr.mxu0 0.0
        %3376 = vmatpush2.msra.mxu0 0.0
        %3377 = vmatprep.subr.mxu0 0.0
        %3378 = vmatpush2.msra.mxu0 0.0
        %3379 = vmatprep.subr.mxu0 0.0
        %3380 = vmatpush2.msra.mxu0 0.0
        %3381 = vmatprep.mubr.f32.mxu0 0.0
        %3382 = vmatmul.mubr.f32.gmra.mxu0 %v3315
        %v3383 = vpop.f32.mrf.mxu0
        %v3384 = vadd.f32 %v3312, %v3383
        %v3385 = vpop.f32.mrf.mxu0
        %3386 = vdwg.mxu0
        %v3387 = vld [vmem:[%s23] sm:$0xff]
        %v3388 = vld [vmem:[%s23 + $0x8] sm:$0xff]
        %v3389 = vld [vmem:[%s23 + $0x10] sm:$0xff]
        %v3390 = vld [vmem:[%s23 + $0x18] sm:$0xff]
        %v3391 = vld [vmem:[%s23 + $0x20] sm:$0xff]
        %v3392 = vld [vmem:[%s23 + $0x28] sm:$0xff]
        %v3393 = vld [vmem:[%s23 + $0x30] sm:$0xff]
        %v3394 = vld [vmem:[%s23 + $0x38] sm:$0xff]
        %v3395 = vld [vmem:[%s23 + $0x40] sm:$0xff]
        %v3396 = vld [vmem:[%s23 + $0x48] sm:$0xff]
        %v3397 = vld [vmem:[%s23 + $0x50] sm:$0xff]
        %v3398 = vld [vmem:[%s23 + $0x58] sm:$0xff]
        %v3399 = vld [vmem:[%s23 + $0x60] sm:$0xff]
        %v3400 = vld [vmem:[%s23 + $0x68] sm:$0xff]
        %v3401 = vld [vmem:[%s23 + $0x70] sm:$0xff]
        %v3402 = vld [vmem:[%s23 + $0x78] sm:$0xff]
        %v3403 = vld [vmem:[%s23 + $0x80] sm:$0xff]
        %v3404 = vld [vmem:[%s23 + $0x88] sm:$0xff]
        %v3405 = vld [vmem:[%s23 + $0x90] sm:$0xff]
        %v3406 = vld [vmem:[%s23 + $0x98] sm:$0xff]
        %v3407 = vld [vmem:[%s23 + $0xa0] sm:$0xff]
        %v3408 = vld [vmem:[%s23 + $0xa8] sm:$0xff]
        %v3409 = vld [vmem:[%s23 + $0xb0] sm:$0xff]
        %v3410 = vld [vmem:[%s23 + $0xb8] sm:$0xff]
        %v3411 = vld [vmem:[%s23 + $0xc0] sm:$0xff]
        %v3412 = vld [vmem:[%s23 + $0xc8] sm:$0xff]
        %v3413 = vld [vmem:[%s23 + $0xd0] sm:$0xff]
        %v3414 = vld [vmem:[%s23 + $0xd8] sm:$0xff]
        %v3415 = vld [vmem:[%s23 + $0xe0] sm:$0xff]
        %v3416 = vld [vmem:[%s23 + $0xe8] sm:$0xff]
        %v3417 = vld [vmem:[%s23 + $0xf0] sm:$0xff]
        %v3418 = vld [vmem:[%s23 + $0xf8] sm:$0xff]
        %3419 = vmatprep.subr.mxu0 %v3418
        %3420 = vmatpush1.msra.mxu0 %v3417
        %3421 = vmatprep.subr.mxu0 %v3416
        %3422 = vmatpush1.msra.mxu0 %v3415
        %3423 = vmatprep.subr.mxu0 %v3414
        %3424 = vmatpush1.msra.mxu0 %v3413
        %3425 = vmatprep.subr.mxu0 %v3412
        %3426 = vmatpush1.msra.mxu0 %v3411
        %3427 = vmatprep.subr.mxu0 %v3410
        %3428 = vmatpush1.msra.mxu0 %v3409
        %3429 = vmatprep.subr.mxu0 %v3408
        %3430 = vmatpush1.msra.mxu0 %v3407
        %3431 = vmatprep.subr.mxu0 %v3406
        %3432 = vmatpush1.msra.mxu0 %v3405
        %3433 = vmatprep.subr.mxu0 %v3404
        %3434 = vmatpush1.msra.mxu0 %v3403
        %3435 = vmatprep.subr.mxu0 %v3402
        %3436 = vmatpush1.msra.mxu0 %v3401
        %3437 = vmatprep.subr.mxu0 %v3400
        %3438 = vmatpush1.msra.mxu0 %v3399
        %3439 = vmatprep.subr.mxu0 %v3398
        %3440 = vmatpush1.msra.mxu0 %v3397
        %3441 = vmatprep.subr.mxu0 %v3396
        %3442 = vmatpush1.msra.mxu0 %v3395
        %3443 = vmatprep.subr.mxu0 %v3394
        %3444 = vmatpush1.msra.mxu0 %v3393
        %3445 = vmatprep.subr.mxu0 %v3392
        %3446 = vmatpush1.msra.mxu0 %v3391
        %3447 = vmatprep.subr.mxu0 %v3390
        %3448 = vmatpush1.msra.mxu0 %v3389
        %3449 = vmatprep.subr.mxu0 %v3388
        %3450 = vmatpush1.msra.mxu0 %v3387
        %3451 = vmatprep.subr.mxu0 0.0
        %3452 = vmatpush2.msra.mxu0 0.0
        %3453 = vmatprep.subr.mxu0 0.0
        %3454 = vmatpush2.msra.mxu0 0.0
        %3455 = vmatprep.subr.mxu0 0.0
        %3456 = vmatpush2.msra.mxu0 0.0
        %3457 = vmatprep.subr.mxu0 0.0
        %3458 = vmatpush2.msra.mxu0 0.0
        %3459 = vmatprep.subr.mxu0 0.0
        %3460 = vmatpush2.msra.mxu0 0.0
        %3461 = vmatprep.subr.mxu0 0.0
        %3462 = vmatpush2.msra.mxu0 0.0
        %3463 = vmatprep.subr.mxu0 0.0
        %3464 = vmatpush2.msra.mxu0 0.0
        %3465 = vmatprep.subr.mxu0 0.0
        %3466 = vmatpush2.msra.mxu0 0.0
        %3467 = vmatprep.subr.mxu0 0.0
        %3468 = vmatpush2.msra.mxu0 0.0
        %3469 = vmatprep.subr.mxu0 0.0
        %3470 = vmatpush2.msra.mxu0 0.0
        %3471 = vmatprep.subr.mxu0 0.0
        %3472 = vmatpush2.msra.mxu0 0.0
        %3473 = vmatprep.subr.mxu0 0.0
        %3474 = vmatpush2.msra.mxu0 0.0
        %3475 = vmatprep.subr.mxu0 0.0
        %3476 = vmatpush2.msra.mxu0 0.0
        %3477 = vmatprep.subr.mxu0 0.0
        %3478 = vmatpush2.msra.mxu0 0.0
        %3479 = vmatprep.subr.mxu0 0.0
        %3480 = vmatpush2.msra.mxu0 0.0
        %3481 = vmatprep.subr.mxu0 0.0
        %3482 = vmatpush2.msra.mxu0 0.0
        %3483 = vmatprep.mubr.f32.mxu0 0.0
        %3484 = vmatmul.mubr.f32.gmra.mxu0 %v3384
        %v3485 = vpop.f32.mrf.mxu0
        %v3486 = vadd.f32 0.0, %v3485
        %v3487 = vpop.f32.mrf.mxu0
        %v3488 = vadd.f32 0.0, %v3487
        %3489 = vdwg.mxu0
        %vm3490 = vcmp.gt.f32.partialorder %v3486, 0.0
        %vm3491 = vcmp.gt.f32.partialorder %v3488, 0.0
        %v3492 = vmul.f32 %v3486, 0.2
        %v3493 = vmul.f32 %v3488, 0.2
        %v3494 = vsel %vm3490, %v3486, %v3492
        %v3495 = vsel %vm3491, %v3488, %v3493
        %vm3496 = vcmask 122880
        %3497 = vst.msk [vmem:[%s823] sm:$0x1] %vm3496, %v3309
        %3498 = vst.msk [vmem:[%s829] sm:$0x1] %vm3496, %v3295
        %v3500 = vlaneseq
        %v3501 = vshrl.u32 %v3500, 7
        %v3502 = vsub.s32 0, %v3501
        %v3503 = vrot.slane %v3295, %v3502
        %3504 = vrot.lane.b32.xlu0 %v3503, 112
        %v3505 = vpop.permute.xlu0 %3504
        %3507 = vst.msk [vmem:[%s835] sm:$0x1] %vm3496, %v3505
        %v3510 = vcombine.low %v3494, %v3495
        %v3512 = vunpack.c.l.s4 1966171168
        %v3513 = vunpack.c.0.s8 %v3512
        %v3514 = vlaneseq
        %v3515 = vshrl.u32 %v3514, 7
        %v3516 = vsub.s32 %v3513, %v3515
        %v3517 = vrot.slane %v3510, %v3516
        %v3519 = vunpack.c.l.s4 1966171168
        %v3520 = vunpack.c.0.s8 %v3519
        %v3521 = vlaneseq
        %v3522 = vshrl.u32 %v3521, 7
        %v3523 = vsub.s32 %v3520, %v3522
        %v3524 = vrot.slane %v3517, %v3523
        %v3526 = vlaneseq
        %vm3527 = vcmp.ge.s32.totalorder %v3526, 0
        %vm3528 = vcmp.lt.s32.totalorder %v3526, 256
        %vm3529 = vmand %vm3527, %vm3528
        %3530 = vst.msk [vmem:[%s852] sm:$0x3] %vm3529, %v3524
        %s3531 = sand.u32 %s567, 1
        %s3532 = scalar_lea.sflag [#allocation3], %s3531
        %s3533 = sand.u32 %s567, 1
        %s3534 = scalar_lea.vmem [#allocation2], %s3533
        %s3535 = sand.u32 %s45, 1
        %s3536 = scalar_lea.sflag [#allocation5], %s3535
        %s3537 = sand.u32 %s593, 1
        %s3538 = scalar_lea.vmem [#allocation4], %s3537
        %s3539 = sand.u32 %s45, 1
        %s3540 = scalar_lea.sflag [#allocation5], %s3539
        %s3541 = sand.u32 %s619, 1
        %s3542 = scalar_lea.vmem [#allocation6], %s3541
        %p3543 = scmp.lt.s32.totalorder %s45, 1
        %s3544 = scalar_select %p3543, %s45, 1
        %s3545 = smul.addr %s3544, 2
        %s3546 = scalar_lea.vmem %s27, %s3545
        // Predicated region
        $region117: #{predictive_vae_forward.1} parent=115 // pred_check
          %p3547 = pneg %p577
        $region118: #{predictive_vae_forward.1} parent=115 // pred_check_branch
          %3549 = sbr.rel (%p3547) target = $region120
        $region119: #{predictive_vae_forward.1} parent=115 // pred_region
          %s3551 = ssub.s32 16, 16
          %3552 = vsyncadd %s3532, %s3551
          %s3553 = smul.addr %s45, 16
          %s3554 = scalar_lea.hbm %s24, %s3553
          %s3556 = sshll.u32 %s3534, 4
          %s3557 = int_to_ptr.vmem [resolvable:$true] %s3556
          %3559 = dma.vmem_to_hbm [thread:$0]  %s3557, 16, %s3554, %s3532
        $region120: #{predictive_vae_forward.1} parent=115 // pred_fallthru
          _
        // Predicated region
        $region121: #{predictive_vae_forward.1} parent=115 // pred_check
          %p3560 = pneg %p603
        $region122: #{predictive_vae_forward.1} parent=115 // pred_check_branch
          %3562 = sbr.rel (%p3560) target = $region124
        $region123: #{predictive_vae_forward.1} parent=115 // pred_region
          %s3564 = ssub.s32 16, 16
          %3565 = vsyncadd %s3536, %s3564
          %s3566 = smul.addr %s45, 16
          %s3567 = scalar_lea.hbm %s25, %s3566
          %s3569 = sshll.u32 %s3538, 4
          %s3570 = int_to_ptr.vmem [resolvable:$true] %s3569
          %3572 = dma.vmem_to_hbm [thread:$0]  %s3570, 16, %s3567, %s3536
        $region124: #{predictive_vae_forward.1} parent=115 // pred_fallthru
          _
        // Predicated region
        $region125: #{predictive_vae_forward.1} parent=115 // pred_check
          %p3573 = pneg %p629
        $region126: #{predictive_vae_forward.1} parent=115 // pred_check_branch
          %3575 = sbr.rel (%p3573) target = $region128
        $region127: #{predictive_vae_forward.1} parent=115 // pred_region
          %s3577 = ssub.s32 16, 16
          %3578 = vsyncadd %s3540, %s3577
          %s3579 = smul.addr %s45, 16
          %s3580 = scalar_lea.hbm %s26, %s3579
          %s3582 = sshll.u32 %s3542, 4
          %s3583 = int_to_ptr.vmem [resolvable:$true] %s3582
          %3585 = dma.vmem_to_hbm [thread:$0]  %s3583, 16, %s3580, %s3540
        $region128: #{predictive_vae_forward.1} parent=115 // pred_fallthru
          _
        // Predicated region
        $region129: #{predictive_vae_forward.1} parent=115 // pred_check
          %p3586 = pneg %p655
        $region130: #{predictive_vae_forward.1} parent=115 // pred_check_branch
          %3588 = sbr.rel (%p3586) target = $region132
        $region131: #{predictive_vae_forward.1} parent=115 // pred_region
          _
        $region132: #{predictive_vae_forward.1} parent=115 // pred_fallthru
          _
      $region116: #{predictive_vae_forward.1} parent=5 // pred_fallthru
        _
      %p3589 = scmp.le.s32.totalorder 2, %s40
      // Predicated region
      $region133: #{predictive_vae_forward.1} parent=5 // pred_check
        %p3590 = pneg %p3589
      $region134: #{predictive_vae_forward.1} parent=5 // pred_check_branch
        %3592 = sbr.rel (%p3590) target = $region136
      $region135: #{predictive_vae_forward.1} parent=5 // pred_region
        %s3593 = ssub.s32 %s40, 2
        // Predicated region
        $region137: #{predictive_vae_forward.1} parent=135 // pred_check
          %p3594 = pneg %p583
        $region138: #{predictive_vae_forward.1} parent=135 // pred_check_branch
          %3596 = sbr.rel (%p3594) target = $region140
        $region139: #{predictive_vae_forward.1} parent=135 // pred_region
          %s3597 = sand.u32 %s568, 1
          %s3598 = scalar_lea.sflag [#allocation3], %s3597
          %s3599 = sand.u32 %s568, 1
          %s3600 = scalar_lea.vmem [#allocation2], %s3599
          %3601 = dma.done %s3598, 16
        $region140: #{predictive_vae_forward.1} parent=135 // pred_fallthru
          _
        // Predicated region
        $region141: #{predictive_vae_forward.1} parent=135 // pred_check
          %p3602 = pneg %p609
        $region142: #{predictive_vae_forward.1} parent=135 // pred_check_branch
          %3604 = sbr.rel (%p3602) target = $region144
        $region143: #{predictive_vae_forward.1} parent=135 // pred_region
          %s3605 = sand.u32 %s46, 1
          %s3606 = scalar_lea.sflag [#allocation5], %s3605
          %s3607 = sand.u32 %s594, 1
          %s3608 = scalar_lea.vmem [#allocation4], %s3607
          %3609 = dma.done %s3606, 16
        $region144: #{predictive_vae_forward.1} parent=135 // pred_fallthru
          _
        // Predicated region
        $region145: #{predictive_vae_forward.1} parent=135 // pred_check
          %p3610 = pneg %p635
        $region146: #{predictive_vae_forward.1} parent=135 // pred_check_branch
          %3612 = sbr.rel (%p3610) target = $region148
        $region147: #{predictive_vae_forward.1} parent=135 // pred_region
          %s3613 = sand.u32 %s46, 1
          %s3614 = scalar_lea.sflag [#allocation5], %s3613
          %s3615 = sand.u32 %s620, 1
          %s3616 = scalar_lea.vmem [#allocation6], %s3615
          %3617 = dma.done %s3614, 16
        $region148: #{predictive_vae_forward.1} parent=135 // pred_fallthru
          _
        // Predicated region
        $region149: #{predictive_vae_forward.1} parent=135 // pred_check
          %p3618 = pneg %p661
        $region150: #{predictive_vae_forward.1} parent=135 // pred_check_branch
          %3620 = sbr.rel (%p3618) target = $region152
        $region151: #{predictive_vae_forward.1} parent=135 // pred_region
          %p3621 = scmp.lt.s32.totalorder %s46, 1
          %s3622 = scalar_select %p3621, %s46, 1
          %s3623 = smul.addr %s3622, 2
          %s3624 = scalar_lea.vmem %s27, %s3623
        $region152: #{predictive_vae_forward.1} parent=135 // pred_fallthru
          _
      $region136: #{predictive_vae_forward.1} parent=5 // pred_fallthru
        _
    $region6: #{predictive_vae_forward.1} parent=1 // loop_footer
      %s44 = sadd.s32 1, %s40
    $region7: #{predictive_vae_forward.1} parent=1 // loop_footer_branch
      %39 = sbr.rel target = $region3
    $region8: #{predictive_vae_forward.1} parent=1 // loop_exit
      _
    %3625 = vsyncpa [#allocation3], 1
    %s3626 = scalar_lea.sflag [#allocation3], 1
    %3627 = vsyncpa %s3626, 1
    %3628 = vsyncpa [#allocation5], 1
    %s3629 = scalar_lea.sflag [#allocation5], 1
    %3630 = vsyncpa %s3629, 1

</llo_original>
